<compile_context>
chip_gen: v6e
topology: v6e:2x2x1
jax: 0.10.0
libtpu: 0.0.40
codegen_flags: <defaults>
</compile_context>

<pallas_src>
import jax
import jax.numpy as jnp
import numpy as np
from jax import lax
from jax.experimental import pallas as pl
from jax.experimental.pallas import tpu as pltpu

# ----------------------------- problem sizes --------------------------------
B = 2
H = W = 16
HW = H * W
C = 4                  # num_channels (= L = prev_out_channels)
K0 = 3                 # kernel_sizes[0] (initial masked conv)
K1 = 3                 # kernel_sizes[1] (state-dependent conv)
KK0 = K0 * K0
KK1 = K1 * K1
MID = KK1 // 2         # masked / center tap index (original tap order)
LKKR = C * (KK1 - 1)   # 32: A/b1 rows with the masked center tap dropped
HID = 64               # SimpleMLP hidden dim inside StateDependentConv2D

_HP = jax.lax.Precision.HIGHEST
_NONC = np.array([i for i in range(KK1) if i != MID])   # non-center taps
_ORDER = np.concatenate([[MID], _NONC])                  # center tap first


def _silu(v):
    # v * sigmoid(v) with sigmoid = 0.5*(tanh(v/2)+1): tanh runs on the EUP.
    return v * (0.5 * (jnp.tanh(0.5 * v) + 1.0))


# ------------------------------ Pallas kernel -------------------------------
def spin_rate_kernel(x_unf_ref,    # (B, KK1, HW)  circular unfold of x, center tap first
                     w0t_ref,      # (B, C+1, KK0) (1+t)*masked initial-conv weights, last row 0
                     mmat_ref,     # (B, KK1, LKKR) (1+t)*lin tap-select matrix, row 0 = 0
                     bias_ref,     # (B, KK1, 1)   (1+t)*(lin@b2 + sum(lin)*temb), row 0 = 0
                     bmask_ref,    # (KK1, HW)     border mask: circular unfold -> zero-pad unfold
                     amatb_ref,    # (LKKR, C+1)   A (center rows dropped) with b1 as last column
                     out_ref):     # (B, 1, HW)
    bmask = bmask_ref[...]
    amatb = amatb_ref[...]
    cc = w0t_ref.shape[1]          # C + 1
    # (C+1,1) one-hot column selecting the appended "ones" row (b1 fold).
    e_last = (lax.broadcasted_iota(jnp.int32, (cc, 1), 0) == cc - 1
              ).astype(jnp.float32)

    for b in range(x_unf_ref.shape[0]):          # B is tiny and static: unroll
        xu = x_unf_ref[b]                        # (KK1, HW); row 0 == x
        xz = xu * bmask                          # zero-padded unfold of x

        # Initial masked conv (zero padding), (1+t) folded into the weights.
        mid = jnp.dot(w0t_ref[b], xz,
                      preferred_element_type=jnp.float32,
                      precision=_HP)             # (C+1, HW); last row exactly 0
        post = _silu(mid) + e_last               # rows 0..C-1: SiLU, row C: exactly 1

        # State-dependent conv channel mix with b1 folded in: silu(A.post + b1).
        kx = _silu(jnp.dot(amatb, post,
                           preferred_element_type=jnp.float32,
                           precision=_HP))       # (LKKR, HW)

        # Channel reduction + linear weights + (1+t), then b2/temb bias.
        s = jnp.dot(mmat_ref[b], kx,
                    preferred_element_type=jnp.float32,
                    precision=_HP) + bias_ref[b]  # (KK1, HW); row 0 stays 0

        # Tap reduction against the circular unfold, then * x  (x_t's (1+t) is
        # already folded into mmat/bias).  Dense lane-major (1, HW) store.
        row = jnp.sum(s * xu, axis=0, keepdims=True)   # (1, HW)
        out_ref[b] = row * xu[0:1, :]


# ------------------------------ JAX glue -------------------------------------
def _unfold_zero(x, K):
    # im2col with zero padding (matches F.conv2d(padding=K//2) tap ordering).
    p = K // 2
    Bn, Hn, Wn = x.shape
    xp = jnp.pad(x, ((0, 0), (p, p), (p, p)))
    taps = [xp[:, u:u + Hn, v:v + Wn] for u in range(K) for v in range(K)]
    return jnp.stack(taps, axis=1).reshape(Bn, K * K, Hn * Wn)


def _unfold_circular(x, K, order):
    # im2col with circular padding (matches unfold_with_circular_padding),
    # taps stacked in `order` so pixels end up on the lane (last) axis.
    p = K // 2
    Bn, Hn, Wn = x.shape
    taps = []
    for idx in order:
        u, v = int(idx) // K, int(idx) % K
        taps.append(jnp.roll(x, shift=(p - u, p - v), axis=(1, 2)))
    return jnp.stack(taps, axis=1).reshape(Bn, K * K, Hn * Wn)


def _border_mask(K, Hn, Wn):
    # Constant 0/1 mask turning the circular unfold into the zero-padded one
    # (tap order = _ORDER, center first).  Built in numpy at trace time.
    p = K // 2
    hh = np.arange(Hn)[:, None]
    ww = np.arange(Wn)[None, :]
    rows = []
    for idx in _ORDER:
        u, v = int(idx) // K, int(idx) % K
        m = ((hh + u - p >= 0) & (hh + u - p < Hn) &
             (ww + v - p >= 0) & (ww + v - p < Wn))
        rows.append(m.astype(np.float32).reshape(-1))
    return np.stack(rows, axis=0)                           # (KK, HW)


def _time_mlp(t, params):
    # SimpleMLP(kernel_size=3, hidden_dim=64): [B,1] -> [B, KK1] time embedding.
    # TODO(synk): this [B,1]-input MLP is too small to benefit from a kernel;
    # it stays in plain-JAX glue.
    h = t[:, None]
    h = _silu(h @ params["mlp_w1"] + params["mlp_b1"])
    h = _silu(h @ params["mlp_w2"] + params["mlp_b2"])
    return h @ params["mlp_w3"] + params["mlp_b3"]


def conv_spin_rate_forward(sigma, t, params):
    """sigma_vec: [B, H, W] float32 spins, time_vec: [B] float32 -> [B, H, W]."""
    Bn, Hn, Wn = sigma.shape
    HWn = Hn * Wn
    t1 = 1.0 + t                                             # (B,)

    # The only per-pixel data shipped to the kernel: circular unfold of x
    # (center tap first) + a constant border mask.
    x_unf1 = _unfold_circular(sigma, K1, _ORDER)             # (B, KK1, HW)
    bmask = jnp.asarray(_border_mask(K1, Hn, Wn))            # (KK1, HW)

    # ---- fold parameters into the kernel operand forms (all tiny) ----
    # Initial conv weights: reorder taps, append a zero row (ones-row trick),
    # fold (1+t) per batch.
    w0_new = params["w0m"][:, _ORDER]                        # (C, KK0)
    w0_aug = jnp.concatenate(
        [w0_new, jnp.zeros((1, KK0), jnp.float32)], axis=0)  # (C+1, KK0)
    w0t_b = t1[:, None, None] * w0_aug[None]                 # (B, C+1, KK0)

    # A with masked center-tap rows dropped and b1 folded in as an extra column.
    a_red = params["A"][:, _NONC, :].reshape(LKKR, C)        # (32, 4)
    b1_red = params["b1"][:, _NONC].reshape(LKKR, 1)         # (32, 1)
    amatb = jnp.concatenate([a_red, b1_red], axis=1)         # (32, 5)

    # Tap-select / channel-mix matrix with `linear` and (1+t) folded in.
    eye = jnp.eye(KK1 - 1, dtype=jnp.float32)
    m_body = (params["lin"][:, None, None] * eye[None]
              ).transpose(1, 0, 2).reshape(KK1 - 1, LKKR)    # (8, 32)
    m_mat = jnp.concatenate(
        [jnp.zeros((1, LKKR), jnp.float32), m_body], axis=0)  # (KK1, 32)
    m_b = t1[:, None, None] * m_mat[None]                    # (B, KK1, 32)

    # b2 + time embedding, pre-contracted with `linear`, center tap zeroed,
    # (1+t) folded in -> one (KK1,1) per-batch bias column.
    temb = _time_mlp(t, params)                              # (B, KK1) orig order
    bias_full = (params["lin"] @ params["b2"])[None, :] \
        + jnp.sum(params["lin"]) * temb                      # (B, KK1)
    bias_new = bias_full[:, _ORDER].at[:, 0].set(0.0)        # center-first order
    bias_b = (t1[:, None] * bias_new)[:, :, None]            # (B, KK1, 1)

    out = pl.pallas_call(
        spin_rate_kernel,
        out_shape=jax.ShapeDtypeStruct((Bn, 1, HWn), jnp.float32),
        grid=(1,),                                           # batch fused: one step
        in_specs=[
            pl.BlockSpec((Bn, KK1, HWn), lambda i: (0, 0, 0)),
            pl.BlockSpec((Bn, C + 1, KK0), lambda i: (0, 0, 0)),
            pl.BlockSpec((Bn, KK1, LKKR), lambda i: (0, 0, 0)),
            pl.BlockSpec((Bn, KK1, 1), lambda i: (0, 0, 0)),
            pl.BlockSpec((KK1, HWn), lambda i: (0, 0)),
            pl.BlockSpec((LKKR, C + 1), lambda i: (0, 0)),
        ],
        out_specs=pl.BlockSpec((Bn, 1, HWn), lambda i: (0, 0, 0)),
        compiler_params=pltpu.CompilerParams(
            dimension_semantics=("arbitrary",)),
    )(x_unf1, w0t_b, m_b, bias_b, bmask, amatb)
    return out.reshape(Bn, Hn, Wn)


# --------------------- deterministic parameter init --------------------------
def init_params(key):
    ks = jax.random.split(key, 11)

    def unif(k, fan_in, shape):
        lim = 1.0 / np.sqrt(fan_in)
        return jax.random.uniform(k, shape, jnp.float32, -lim, lim)

    # NewMaskedConv2d(1, C, K0): weight [C, 1, K0, K0], bias=False, center masked.
    w0 = unif(ks[0], 1 * K0 * K0, (C, 1, K0, K0))
    mask = jnp.ones((C, 1, K0, K0), jnp.float32).at[:, :, K0 // 2, K0 // 2].set(0.0)
    w0m = (w0 * mask)[:, 0].reshape(C, KK0)                  # [C, KK0] orig tap order

    # StateDependentConv2D parameters (original tap order).
    A = 0.002 * jax.random.uniform(ks[1], (C, KK1, C), jnp.float32) / np.sqrt(KK1)
    b1 = 0.002 * jax.random.uniform(ks[2], (C, KK1), jnp.float32)
    b2 = 0.002 * jax.random.uniform(ks[3], (C, KK1), jnp.float32)

    # SimpleMLP(3, hidden_dim=64): Linear(1,64) -> SiLU -> Linear(64,64) -> SiLU -> Linear(64,KK1)
    mlp_w1 = unif(ks[4], 1, (1, HID));      mlp_b1 = unif(ks[5], 1, (1, HID))
    mlp_w2 = unif(ks[6], HID, (HID, HID));  mlp_b2 = unif(ks[7], HID, (1, HID))
    mlp_w3 = unif(ks[8], HID, (HID, KK1));  mlp_b3 = unif(ks[9], HID, (1, KK1))

    lin = (jax.random.normal(ks[10], (C,)) / np.sqrt(C)).astype(jnp.float32)

    return dict(w0m=w0m, A=A, b1=b1, b2=b2, lin=lin,
                mlp_w1=mlp_w1, mlp_b1=mlp_b1, mlp_w2=mlp_w2, mlp_b2=mlp_b2,
                mlp_w3=mlp_w3, mlp_b3=mlp_b3)


# --------------------------- pure-JAX reference ------------------------------
def forward_reference(sigma, t, params):
    Bn, Hn, Wn = sigma.shape
    xt = (1.0 + t)[:, None, None] * sigma
    xt_unf0 = _unfold_zero(xt, K0)                                   # [B, KK0, HW]
    x_unf1 = _unfold_circular(sigma, K1, np.arange(KK1))             # [B, KK1, HW]
    mid_pre = jnp.einsum('ck,bkp->bcp', params["w0m"], xt_unf0, precision=_HP)
    post = _silu(mid_pre)                                            # [B, C, HW]
    a_prev = jnp.einsum('lic,bcp->blip', params["A"], post, precision=_HP)
    temb = _time_mlp(t, params)                                      # [B, KK1]
    kx = _silu(a_prev + params["b1"][None, :, :, None]) \
        + params["b2"][None, :, :, None] + temb[:, None, :, None]
    kx = kx.at[:, :, MID].set(0.0)
    chan = jnp.sum(kx * x_unf1[:, None], axis=2)                     # [B, C, HW]
    out = jnp.sum(chan * params["lin"][None, :, None], axis=1)       # [B, HW]
    out = out * xt.reshape(Bn, Hn * Wn)
    return out.reshape(Bn, Hn, Wn)


if __name__ == "__main__":
    key = jax.random.PRNGKey(0)
    k_sigma, k_t, k_params = jax.random.split(key, 3)
    # spin configuration in {-1, +1}: batch of 2, 16x16 lattice; time in [0, 1)
    sigma_vec = jnp.where(jax.random.bernoulli(k_sigma, 0.5, (B, H, W)),
                          1.0, -1.0).astype(jnp.float32)
    time_vec = jax.random.uniform(k_t, (B,), jnp.float32)
    params = init_params(k_params)

    out = jax.jit(conv_spin_rate_forward)(sigma_vec, time_vec, params)
    out = jax.block_until_ready(out)

    ref = forward_reference(sigma_vec, time_vec, params)
    assert out.shape == (B, H, W)
    np.testing.assert_allclose(np.asarray(out), np.asarray(ref),
                               rtol=1e-4, atol=5e-5)
    print("KERNEL_OK")
</pallas_src>

<mosaic_0001>
module attributes {stable_mosaic.version = 11 : i64} {
  func.func @spin_rate_kernel(%arg0: i32, %arg1: memref<2x9x256xf32, #tpu.memory_space<vmem>>, %arg2: memref<2x5x9xf32, #tpu.memory_space<vmem>>, %arg3: memref<2x9x32xf32, #tpu.memory_space<vmem>>, %arg4: memref<2x9x1xf32, #tpu.memory_space<vmem>>, %arg5: memref<9x256xf32, #tpu.memory_space<vmem>>, %arg6: memref<32x5xf32, #tpu.memory_space<vmem>>, %arg7: memref<2x1x256xf32, #tpu.memory_space<vmem>>) attributes {dimension_semantics = [#tpu.dimension_semantics<arbitrary>], iteration_bounds = array<i64: 1>, scalar_prefetch = 0 : i64, scratch_operands = 0 : i64, tpu.core_type = #tpu.core_type<tc>, window_params = [{pipeline_mode = #tpu.pipeline_mode<synchronous>, transform_indices = @transform_0, window_bounds = array<i64: 2, 9, 256>}, {pipeline_mode = #tpu.pipeline_mode<synchronous>, transform_indices = @transform_1, window_bounds = array<i64: 2, 5, 9>}, {pipeline_mode = #tpu.pipeline_mode<synchronous>, transform_indices = @transform_2, window_bounds = array<i64: 2, 9, 32>}, {pipeline_mode = #tpu.pipeline_mode<synchronous>, transform_indices = @transform_3, window_bounds = array<i64: 2, 9, 1>}, {pipeline_mode = #tpu.pipeline_mode<synchronous>, transform_indices = @transform_4, window_bounds = array<i64: 9, 256>}, {pipeline_mode = #tpu.pipeline_mode<synchronous>, transform_indices = @transform_5, window_bounds = array<i64: 32, 5>}, {pipeline_mode = #tpu.pipeline_mode<synchronous>, transform_indices = @transform_6, window_bounds = array<i64: 2, 1, 256>}]} {
    %c0 = arith.constant 0 : index
    %c0_0 = arith.constant 0 : index
    %0 = vector.load %arg5[%c0, %c0_0] : memref<9x256xf32, #tpu.memory_space<vmem>>, vector<9x256xf32>
    %c0_1 = arith.constant 0 : index
    %c0_2 = arith.constant 0 : index
    %1 = vector.load %arg6[%c0_1, %c0_2] : memref<32x5xf32, #tpu.memory_space<vmem>>, vector<32x5xf32>
    %2 = tpu.iota {dimensions = array<i32: 0>} : vector<5x1xi32>
    %c4_i32 = arith.constant 4 : i32
    %3 = vector.broadcast %c4_i32 : i32 to vector<5x1xi32>
    %4 = arith.cmpi eq, %2, %3 : vector<5x1xi32>
    %5 = arith.extui %4 : vector<5x1xi1> to vector<5x1xi32>
    %6 = arith.sitofp %5 : vector<5x1xi32> to vector<5x1xf32>
    %c0_3 = arith.constant 0 : index
    %c0_4 = arith.constant 0 : index
    %c0_5 = arith.constant 0 : index
    %7 = vector.load %arg1[%c0_3, %c0_4, %c0_5] : memref<2x9x256xf32, #tpu.memory_space<vmem>>, vector<1x9x256xf32>
    %8 = vector.shape_cast %7 : vector<1x9x256xf32> to vector<9x256xf32>
    %9 = arith.mulf %8, %0 : vector<9x256xf32>
    %c0_6 = arith.constant 0 : index
    %c0_7 = arith.constant 0 : index
    %c0_8 = arith.constant 0 : index
    %10 = vector.load %arg2[%c0_6, %c0_7, %c0_8] : memref<2x5x9xf32, #tpu.memory_space<vmem>>, vector<1x5x9xf32>
    %11 = vector.shape_cast %10 : vector<1x5x9xf32> to vector<5x9xf32>
    %cst = arith.constant dense<0.000000e+00> : vector<5x256xf32>
    %12 = tpu.matmul %11, %9, %cst {dimension_numbers = #tpu.dot_dimension_numbers<[1], [0], [0], [1], [0, 0, 1, 1], [], []>, precision = #tpu.contract_precision<fp32>} : vector<5x9xf32>, vector<9x256xf32>, vector<5x256xf32> -> vector<5x256xf32>
    %cst_9 = arith.constant 5.000000e-01 : f32
    %13 = vector.broadcast %cst_9 : f32 to vector<5x256xf32>
    %14 = arith.mulf %13, %12 : vector<5x256xf32>
    %15 = math.tanh %14 : vector<5x256xf32>
    %cst_10 = arith.constant 1.000000e+00 : f32
    %16 = vector.broadcast %cst_10 : f32 to vector<5x256xf32>
    %17 = arith.addf %15, %16 : vector<5x256xf32>
    %cst_11 = arith.constant 5.000000e-01 : f32
    %18 = vector.broadcast %cst_11 : f32 to vector<5x256xf32>
    %19 = arith.mulf %18, %17 : vector<5x256xf32>
    %20 = arith.mulf %12, %19 : vector<5x256xf32>
    %21 = vector.broadcast %6 : vector<5x1xf32> to vector<5x256xf32>
    %22 = arith.addf %20, %21 : vector<5x256xf32>
    %cst_12 = arith.constant dense<0.000000e+00> : vector<32x256xf32>
    %23 = tpu.matmul %1, %22, %cst_12 {dimension_numbers = #tpu.dot_dimension_numbers<[1], [0], [0], [1], [0, 0, 1, 1], [], []>, precision = #tpu.contract_precision<fp32>} : vector<32x5xf32>, vector<5x256xf32>, vector<32x256xf32> -> vector<32x256xf32>
    %cst_13 = arith.constant 5.000000e-01 : f32
    %24 = vector.broadcast %cst_13 : f32 to vector<32x256xf32>
    %25 = arith.mulf %24, %23 : vector<32x256xf32>
    %26 = math.tanh %25 : vector<32x256xf32>
    %cst_14 = arith.constant 1.000000e+00 : f32
    %27 = vector.broadcast %cst_14 : f32 to vector<32x256xf32>
    %28 = arith.addf %26, %27 : vector<32x256xf32>
    %cst_15 = arith.constant 5.000000e-01 : f32
    %29 = vector.broadcast %cst_15 : f32 to vector<32x256xf32>
    %30 = arith.mulf %29, %28 : vector<32x256xf32>
    %31 = arith.mulf %23, %30 : vector<32x256xf32>
    %c0_16 = arith.constant 0 : index
    %c0_17 = arith.constant 0 : index
    %c0_18 = arith.constant 0 : index
    %32 = vector.load %arg3[%c0_16, %c0_17, %c0_18] : memref<2x9x32xf32, #tpu.memory_space<vmem>>, vector<1x9x32xf32>
    %33 = vector.shape_cast %32 : vector<1x9x32xf32> to vector<9x32xf32>
    %cst_19 = arith.constant dense<0.000000e+00> : vector<9x256xf32>
    %34 = tpu.matmul %33, %31, %cst_19 {dimension_numbers = #tpu.dot_dimension_numbers<[1], [0], [0], [1], [0, 0, 1, 1], [], []>, precision = #tpu.contract_precision<fp32>} : vector<9x32xf32>, vector<32x256xf32>, vector<9x256xf32> -> vector<9x256xf32>
    %c0_20 = arith.constant 0 : index
    %c0_21 = arith.constant 0 : index
    %c0_22 = arith.constant 0 : index
    %35 = vector.load %arg4[%c0_20, %c0_21, %c0_22] : memref<2x9x1xf32, #tpu.memory_space<vmem>>, vector<1x9x1xf32>
    %36 = vector.shape_cast %35 : vector<1x9x1xf32> to vector<9x1xf32>
    %37 = vector.broadcast %36 : vector<9x1xf32> to vector<9x256xf32>
    %38 = arith.addf %34, %37 : vector<9x256xf32>
    %39 = arith.mulf %38, %8 : vector<9x256xf32>
    %cst_23 = arith.constant dense<0.000000e+00> : vector<256xf32>
    %40 = vector.multi_reduction <add>, %39, %cst_23 [0] : vector<9x256xf32> to vector<256xf32>
    %41 = vector.shape_cast %40 : vector<256xf32> to vector<1x256xf32>
    %42 = vector.extract_strided_slice %8 {offsets = [0, 0], sizes = [1, 256], strides = [1, 1]} : vector<9x256xf32> to vector<1x256xf32>
    %43 = arith.mulf %41, %42 : vector<1x256xf32>
    %c0_24 = arith.constant 0 : index
    %c0_25 = arith.constant 0 : index
    %c0_26 = arith.constant 0 : index
    %44 = vector.load %arg7[%c0_24, %c0_25, %c0_26] : memref<2x1x256xf32, #tpu.memory_space<vmem>>, vector<1x1x256xf32>
    %45 = vector.shape_cast %44 : vector<1x1x256xf32> to vector<1x256xf32>
    %46 = vector.shape_cast %43 : vector<1x256xf32> to vector<1x1x256xf32>
    tpu.vector_store %arg7[%c0_24, %c0_25, %c0_26], %46 {strides = array<i32>} : memref<2x1x256xf32, #tpu.memory_space<vmem>>, vector<1x1x256xf32>,
    %c1 = arith.constant 1 : index
    %c0_27 = arith.constant 0 : index
    %c0_28 = arith.constant 0 : index
    %47 = vector.load %arg1[%c1, %c0_27, %c0_28] : memref<2x9x256xf32, #tpu.memory_space<vmem>>, vector<1x9x256xf32>
    %48 = vector.shape_cast %47 : vector<1x9x256xf32> to vector<9x256xf32>
    %49 = arith.mulf %48, %0 : vector<9x256xf32>
    %c1_29 = arith.constant 1 : index
    %c0_30 = arith.constant 0 : index
    %c0_31 = arith.constant 0 : index
    %50 = vector.load %arg2[%c1_29, %c0_30, %c0_31] : memref<2x5x9xf32, #tpu.memory_space<vmem>>, vector<1x5x9xf32>
    %51 = vector.shape_cast %50 : vector<1x5x9xf32> to vector<5x9xf32>
    %cst_32 = arith.constant dense<0.000000e+00> : vector<5x256xf32>
    %52 = tpu.matmul %51, %49, %cst_32 {dimension_numbers = #tpu.dot_dimension_numbers<[1], [0], [0], [1], [0, 0, 1, 1], [], []>, precision = #tpu.contract_precision<fp32>} : vector<5x9xf32>, vector<9x256xf32>, vector<5x256xf32> -> vector<5x256xf32>
    %cst_33 = arith.constant 5.000000e-01 : f32
    %53 = vector.broadcast %cst_33 : f32 to vector<5x256xf32>
    %54 = arith.mulf %53, %52 : vector<5x256xf32>
    %55 = math.tanh %54 : vector<5x256xf32>
    %cst_34 = arith.constant 1.000000e+00 : f32
    %56 = vector.broadcast %cst_34 : f32 to vector<5x256xf32>
    %57 = arith.addf %55, %56 : vector<5x256xf32>
    %cst_35 = arith.constant 5.000000e-01 : f32
    %58 = vector.broadcast %cst_35 : f32 to vector<5x256xf32>
    %59 = arith.mulf %58, %57 : vector<5x256xf32>
    %60 = arith.mulf %52, %59 : vector<5x256xf32>
    %61 = vector.broadcast %6 : vector<5x1xf32> to vector<5x256xf32>
    %62 = arith.addf %60, %61 : vector<5x256xf32>
    %cst_36 = arith.constant dense<0.000000e+00> : vector<32x256xf32>
    %63 = tpu.matmul %1, %62, %cst_36 {dimension_numbers = #tpu.dot_dimension_numbers<[1], [0], [0], [1], [0, 0, 1, 1], [], []>, precision = #tpu.contract_precision<fp32>} : vector<32x5xf32>, vector<5x256xf32>, vector<32x256xf32> -> vector<32x256xf32>
    %cst_37 = arith.constant 5.000000e-01 : f32
    %64 = vector.broadcast %cst_37 : f32 to vector<32x256xf32>
    %65 = arith.mulf %64, %63 : vector<32x256xf32>
    %66 = math.tanh %65 : vector<32x256xf32>
    %cst_38 = arith.constant 1.000000e+00 : f32
    %67 = vector.broadcast %cst_38 : f32 to vector<32x256xf32>
    %68 = arith.addf %66, %67 : vector<32x256xf32>
    %cst_39 = arith.constant 5.000000e-01 : f32
    %69 = vector.broadcast %cst_39 : f32 to vector<32x256xf32>
    %70 = arith.mulf %69, %68 : vector<32x256xf32>
    %71 = arith.mulf %63, %70 : vector<32x256xf32>
    %c1_40 = arith.constant 1 : index
    %c0_41 = arith.constant 0 : index
    %c0_42 = arith.constant 0 : index
    %72 = vector.load %arg3[%c1_40, %c0_41, %c0_42] : memref<2x9x32xf32, #tpu.memory_space<vmem>>, vector<1x9x32xf32>
    %73 = vector.shape_cast %72 : vector<1x9x32xf32> to vector<9x32xf32>
    %cst_43 = arith.constant dense<0.000000e+00> : vector<9x256xf32>
    %74 = tpu.matmul %73, %71, %cst_43 {dimension_numbers = #tpu.dot_dimension_numbers<[1], [0], [0], [1], [0, 0, 1, 1], [], []>, precision = #tpu.contract_precision<fp32>} : vector<9x32xf32>, vector<32x256xf32>, vector<9x256xf32> -> vector<9x256xf32>
    %c1_44 = arith.constant 1 : index
    %c0_45 = arith.constant 0 : index
    %c0_46 = arith.constant 0 : index
    %75 = vector.load %arg4[%c1_44, %c0_45, %c0_46] : memref<2x9x1xf32, #tpu.memory_space<vmem>>, vector<1x9x1xf32>
    %76 = vector.shape_cast %75 : vector<1x9x1xf32> to vector<9x1xf32>
    %77 = vector.broadcast %76 : vector<9x1xf32> to vector<9x256xf32>
    %78 = arith.addf %74, %77 : vector<9x256xf32>
    %79 = arith.mulf %78, %48 : vector<9x256xf32>
    %cst_47 = arith.constant dense<0.000000e+00> : vector<256xf32>
    %80 = vector.multi_reduction <add>, %79, %cst_47 [0] : vector<9x256xf32> to vector<256xf32>
    %81 = vector.shape_cast %80 : vector<256xf32> to vector<1x256xf32>
    %82 = vector.extract_strided_slice %48 {offsets = [0, 0], sizes = [1, 256], strides = [1, 1]} : vector<9x256xf32> to vector<1x256xf32>
    %83 = arith.mulf %81, %82 : vector<1x256xf32>
    %c1_48 = arith.constant 1 : index
    %c0_49 = arith.constant 0 : index
    %c0_50 = arith.constant 0 : index
    %84 = vector.load %arg7[%c1_48, %c0_49, %c0_50] : memref<2x1x256xf32, #tpu.memory_space<vmem>>, vector<1x1x256xf32>
    %85 = vector.shape_cast %84 : vector<1x1x256xf32> to vector<1x256xf32>
    %86 = vector.shape_cast %83 : vector<1x256xf32> to vector<1x1x256xf32>
    tpu.vector_store %arg7[%c1_48, %c0_49, %c0_50], %86 {strides = array<i32>} : memref<2x1x256xf32, #tpu.memory_space<vmem>>, vector<1x1x256xf32>,
    return
  }
  func.func @transform_0(%arg0: i32) -> (i32, i32, i32) {
    %c0_i32 = arith.constant 0 : i32
    %c0_i32_0 = arith.constant 0 : i32
    %c0_i32_1 = arith.constant 0 : i32
    %c0_i32_2 = arith.constant 0 : i32
    return %c0_i32, %c0_i32_0, %c0_i32_1 : i32, i32, i32
  }
  func.func @transform_1(%arg0: i32) -> (i32, i32, i32) {
    %c0_i32 = arith.constant 0 : i32
    %c0_i32_0 = arith.constant 0 : i32
    %c0_i32_1 = arith.constant 0 : i32
    %c0_i32_2 = arith.constant 0 : i32
    return %c0_i32, %c0_i32_0, %c0_i32_1 : i32, i32, i32
  }
  func.func @transform_2(%arg0: i32) -> (i32, i32, i32) {
    %c0_i32 = arith.constant 0 : i32
    %c0_i32_0 = arith.constant 0 : i32
    %c0_i32_1 = arith.constant 0 : i32
    %c0_i32_2 = arith.constant 0 : i32
    return %c0_i32, %c0_i32_0, %c0_i32_1 : i32, i32, i32
  }
  func.func @transform_3(%arg0: i32) -> (i32, i32, i32) {
    %c0_i32 = arith.constant 0 : i32
    %c0_i32_0 = arith.constant 0 : i32
    %c0_i32_1 = arith.constant 0 : i32
    %c0_i32_2 = arith.constant 0 : i32
    return %c0_i32, %c0_i32_0, %c0_i32_1 : i32, i32, i32
  }
  func.func @transform_4(%arg0: i32) -> (i32, i32) {
    %c0_i32 = arith.constant 0 : i32
    %c0_i32_0 = arith.constant 0 : i32
    %c0_i32_1 = arith.constant 0 : i32
    return %c0_i32, %c0_i32_0 : i32, i32
  }
  func.func @transform_5(%arg0: i32) -> (i32, i32) {
    %c0_i32 = arith.constant 0 : i32
    %c0_i32_0 = arith.constant 0 : i32
    %c0_i32_1 = arith.constant 0 : i32
    return %c0_i32, %c0_i32_0 : i32, i32
  }
  func.func @transform_6(%arg0: i32) -> (i32, i32, i32) {
    %c0_i32 = arith.constant 0 : i32
    %c0_i32_0 = arith.constant 0 : i32
    %c0_i32_1 = arith.constant 0 : i32
    %c0_i32_2 = arith.constant 0 : i32
    return %c0_i32, %c0_i32_0, %c0_i32_1 : i32, i32, i32
  }
}

</mosaic_0001>

<llo_original>
// kernel: conv_spin_rate_forward.1
$region0: #{conv_spin_rate_forward.1}
  #allocation0 [shape = 'u32[]', space=smem, size = 0x4, offset = 0x4, fixed_abs, tag = 'smem constant byte address 0x4 - core index']
  #allocation1 [shape = 'u32[144,128]{1,0:T(1,128)}', space=vmem, size = 0x12000, scoped, tag = 'internal scratch']
  %s0 = inlined_call_operand.vmem [shape: f32[2,9,256], index: 0, kind: input, shape index: {}]
  %s1 = inlined_call_operand.vmem [shape: f32[2,5,9], index: 1, kind: input, shape index: {}]
  %s2 = inlined_call_operand.vmem [shape: f32[2,9,32], index: 2, kind: input, shape index: {}]
  %s3 = inlined_call_operand.vmem [shape: f32[2,9,1], index: 3, kind: input, shape index: {}]
  %s4 = inlined_call_operand.vmem [shape: f32[9,256], index: 4, kind: input, shape index: {}]
  %s5 = inlined_call_operand.vmem [shape: f32[32,5], index: 5, kind: input, shape index: {}]
  %s6 = inlined_call_operand.vmem [shape: f32[2,1,256], index: 6, kind: output, shape index: {}]
  %s7 = sld [smem:[#allocation0]]
  $region34: #{conv_spin_rate_forward.1} parent=0
    _
  %s9 = ssub.s32 1, %s7
  %s10 = scalar_select 0, %s9, %s7
  // Predicated region
  $region2: #{conv_spin_rate_forward.1} parent=0 // pred_check
    _
  $region3: #{conv_spin_rate_forward.1} parent=0 // pred_check_branch
    %12 = sbr.rel (0) target = $region5
  $region4: #{conv_spin_rate_forward.1} parent=0 // pred_region
    _
  $region5: #{conv_spin_rate_forward.1} parent=0 // pred_fallthru
    _
  // Predicated region
  $region6: #{conv_spin_rate_forward.1} parent=0 // pred_check
    _
  $region7: #{conv_spin_rate_forward.1} parent=0 // pred_check_branch
    %14 = sbr.rel (0) target = $region9
  $region8: #{conv_spin_rate_forward.1} parent=0 // pred_region
    _
  $region9: #{conv_spin_rate_forward.1} parent=0 // pred_fallthru
    _
  // Predicated region
  $region10: #{conv_spin_rate_forward.1} parent=0 // pred_check
    _
  $region11: #{conv_spin_rate_forward.1} parent=0 // pred_check_branch
    %16 = sbr.rel (0) target = $region13
  $region12: #{conv_spin_rate_forward.1} parent=0 // pred_region
    _
  $region13: #{conv_spin_rate_forward.1} parent=0 // pred_fallthru
    _
  // Predicated region
  $region14: #{conv_spin_rate_forward.1} parent=0 // pred_check
    _
  $region15: #{conv_spin_rate_forward.1} parent=0 // pred_check_branch
    %18 = sbr.rel (0) target = $region17
  $region16: #{conv_spin_rate_forward.1} parent=0 // pred_region
    _
  $region17: #{conv_spin_rate_forward.1} parent=0 // pred_fallthru
    _
  // Predicated region
  $region18: #{conv_spin_rate_forward.1} parent=0 // pred_check
    _
  $region19: #{conv_spin_rate_forward.1} parent=0 // pred_check_branch
    %20 = sbr.rel (0) target = $region21
  $region20: #{conv_spin_rate_forward.1} parent=0 // pred_region
    _
  $region21: #{conv_spin_rate_forward.1} parent=0 // pred_fallthru
    _
  // Predicated region
  $region22: #{conv_spin_rate_forward.1} parent=0 // pred_check
    _
  $region23: #{conv_spin_rate_forward.1} parent=0 // pred_check_branch
    %22 = sbr.rel (0) target = $region25
  $region24: #{conv_spin_rate_forward.1} parent=0 // pred_region
    _
  $region25: #{conv_spin_rate_forward.1} parent=0 // pred_fallthru
    _
  %v23 = vld [vmem:[%s4] sm:$0xff]
  %v24 = vld [vmem:[%s4 + $0x8] sm:$0xff]
  %v25 = vld [vmem:[%s4 + $0x10] sm:$0x1]
  %v26 = vld [vmem:[%s4 + $0x18] sm:$0x1]
  %v27 = vld [vmem:[%s5] sm:$0xff]
  %v28 = vld [vmem:[%s5 + $0x8] sm:$0xff]
  %v29 = vld [vmem:[%s5 + $0x10] sm:$0xff]
  %v30 = vld [vmem:[%s5 + $0x18] sm:$0xff]
  %v31 = vlaneseq
  %v32 = vshrl.u32 %v31, 7
  %vm33 = vcmp.eq.s32.totalorder %v32, 4
  %v34 = vsel %vm33, 1, 0
  %v35 = vcvt.s32.f32 %v34
  %v36 = vld [vmem:[%s0] sm:$0xff]
  %v37 = vld [vmem:[%s0 + $0x8] sm:$0xff]
  %v38 = vld [vmem:[%s0 + $0x10] sm:$0x1]
  %v39 = vld [vmem:[%s0 + $0x18] sm:$0x1]
  %v40 = vmul.f32 %v36, %v23
  %v41 = vmul.f32 %v37, %v24
  %v42 = vmul.f32 %v38, %v25
  %v43 = vmul.f32 %v39, %v26
  %v44 = vld [vmem:[%s1] sm:$0x1f]
  %vm45 = vcmask 72704
  %v47 = vsel %vm45, %v44, 0
  %vm49 = vcmask 1040384
  %v51 = vsel %vm49, %v42, 0
  %v54 = vsel %vm49, %v43, 0
  %56 = vmatprep.subr.mxu0 0.0
  %57 = vmatpush1.msra.mxu0 0.0
  %58 = vmatprep.subr.mxu0 0.0
  %59 = vmatpush1.msra.mxu0 0.0
  %60 = vmatprep.subr.mxu0 0.0
  %61 = vmatpush1.msra.mxu0 0.0
  %62 = vmatprep.subr.mxu0 0.0
  %63 = vmatpush1.msra.mxu0 0.0
  %64 = vmatprep.subr.mxu0 0.0
  %65 = vmatpush1.msra.mxu0 0.0
  %66 = vmatprep.subr.mxu0 0.0
  %67 = vmatpush1.msra.mxu0 0.0
  %68 = vmatprep.subr.mxu0 0.0
  %69 = vmatpush1.msra.mxu0 0.0
  %70 = vmatprep.subr.mxu0 0.0
  %71 = vmatpush1.msra.mxu0 0.0
  %72 = vmatprep.subr.mxu0 0.0
  %73 = vmatpush1.msra.mxu0 0.0
  %74 = vmatprep.subr.mxu0 0.0
  %75 = vmatpush1.msra.mxu0 0.0
  %76 = vmatprep.subr.mxu0 0.0
  %77 = vmatpush1.msra.mxu0 0.0
  %78 = vmatprep.subr.mxu0 0.0
  %79 = vmatpush1.msra.mxu0 0.0
  %80 = vmatprep.subr.mxu0 0.0
  %81 = vmatpush1.msra.mxu0 0.0
  %82 = vmatprep.subr.mxu0 0.0
  %83 = vmatpush1.msra.mxu0 0.0
  %v84 = vand.u32 %v54, 4294901760
  %85 = vmatprep.subr.mxu0 %v84
  %v86 = vand.u32 %v51, 4294901760
  %87 = vmatpush1.msra.mxu0 %v86
  %v88 = vand.u32 %v41, 4294901760
  %89 = vmatprep.subr.mxu0 %v88
  %v90 = vand.u32 %v40, 4294901760
  %91 = vmatpush1.msra.mxu0 %v90
  %92 = vmatprep.subr.mxu0 0.0
  %93 = vmatpush2.msra.mxu0 0.0
  %94 = vmatprep.subr.mxu0 0.0
  %95 = vmatpush2.msra.mxu0 0.0
  %96 = vmatprep.subr.mxu0 0.0
  %97 = vmatpush2.msra.mxu0 0.0
  %98 = vmatprep.subr.mxu0 0.0
  %99 = vmatpush2.msra.mxu0 0.0
  %100 = vmatprep.subr.mxu0 0.0
  %101 = vmatpush2.msra.mxu0 0.0
  %102 = vmatprep.subr.mxu0 0.0
  %103 = vmatpush2.msra.mxu0 0.0
  %104 = vmatprep.subr.mxu0 0.0
  %105 = vmatpush2.msra.mxu0 0.0
  %106 = vmatprep.subr.mxu0 0.0
  %107 = vmatpush2.msra.mxu0 0.0
  %108 = vmatprep.subr.mxu0 0.0
  %109 = vmatpush2.msra.mxu0 0.0
  %110 = vmatprep.subr.mxu0 0.0
  %111 = vmatpush2.msra.mxu0 0.0
  %112 = vmatprep.subr.mxu0 0.0
  %113 = vmatpush2.msra.mxu0 0.0
  %114 = vmatprep.subr.mxu0 0.0
  %115 = vmatpush2.msra.mxu0 0.0
  %116 = vmatprep.subr.mxu0 0.0
  %117 = vmatpush2.msra.mxu0 0.0
  %118 = vmatprep.subr.mxu0 0.0
  %119 = vmatpush2.msra.mxu0 0.0
  %120 = vmatprep.subr.mxu0 0.0
  %121 = vmatpush2.msra.mxu0 0.0
  %122 = vmatprep.subr.mxu0 0.0
  %123 = vmatpush2.msra.mxu0 0.0
  %124 = vmatprep.mubr.f32.mxu0 0.0
  %v125 = vand.u32 %v47, 4294901760
  %v126 = vsub.f32 %v47, %v125
  %v127 = vand.u32 %v126, 4294901760
  %v128 = vsub.f32 %v126, %v127
  %v129 = vand.u32 %v128, 4294901760
  %130 = vmatmul.mubr.f32.gmra.mxu0 %v129
  %v131 = vpop.f32.mrf.mxu0
  %v132 = vadd.f32 0.0, %v131
  %v133 = vpop.f32.mrf.mxu0
  %v134 = vadd.f32 0.0, %v133
  %135 = vdwg.mxu0
  %136 = vmatprep.subr.mxu0 0.0
  %137 = vmatpush1.msra.mxu0 0.0
  %138 = vmatprep.subr.mxu0 0.0
  %139 = vmatpush1.msra.mxu0 0.0
  %140 = vmatprep.subr.mxu0 0.0
  %141 = vmatpush1.msra.mxu0 0.0
  %142 = vmatprep.subr.mxu0 0.0
  %143 = vmatpush1.msra.mxu0 0.0
  %144 = vmatprep.subr.mxu0 0.0
  %145 = vmatpush1.msra.mxu0 0.0
  %146 = vmatprep.subr.mxu0 0.0
  %147 = vmatpush1.msra.mxu0 0.0
  %148 = vmatprep.subr.mxu0 0.0
  %149 = vmatpush1.msra.mxu0 0.0
  %150 = vmatprep.subr.mxu0 0.0
  %151 = vmatpush1.msra.mxu0 0.0
  %152 = vmatprep.subr.mxu0 0.0
  %153 = vmatpush1.msra.mxu0 0.0
  %154 = vmatprep.subr.mxu0 0.0
  %155 = vmatpush1.msra.mxu0 0.0
  %156 = vmatprep.subr.mxu0 0.0
  %157 = vmatpush1.msra.mxu0 0.0
  %158 = vmatprep.subr.mxu0 0.0
  %159 = vmatpush1.msra.mxu0 0.0
  %160 = vmatprep.subr.mxu0 0.0
  %161 = vmatpush1.msra.mxu0 0.0
  %162 = vmatprep.subr.mxu0 0.0
  %163 = vmatpush1.msra.mxu0 0.0
  %v164 = vand.u32 %v54, 4294901760
  %v165 = vsub.f32 %v54, %v164
  %v166 = vand.u32 %v165, 4294901760
  %v167 = vsub.f32 %v165, %v166
  %v168 = vand.u32 %v167, 4294901760
  %169 = vmatprep.subr.mxu0 %v168
  %v170 = vand.u32 %v51, 4294901760
  %v171 = vsub.f32 %v51, %v170
  %v172 = vand.u32 %v171, 4294901760
  %v173 = vsub.f32 %v171, %v172
  %v174 = vand.u32 %v173, 4294901760
  %175 = vmatpush1.msra.mxu0 %v174
  %v176 = vand.u32 %v41, 4294901760
  %v177 = vsub.f32 %v41, %v176
  %v178 = vand.u32 %v177, 4294901760
  %v179 = vsub.f32 %v177, %v178
  %v180 = vand.u32 %v179, 4294901760
  %181 = vmatprep.subr.mxu0 %v180
  %v182 = vand.u32 %v40, 4294901760
  %v183 = vsub.f32 %v40, %v182
  %v184 = vand.u32 %v183, 4294901760
  %v185 = vsub.f32 %v183, %v184
  %v186 = vand.u32 %v185, 4294901760
  %187 = vmatpush1.msra.mxu0 %v186
  %188 = vmatprep.subr.mxu0 0.0
  %189 = vmatpush2.msra.mxu0 0.0
  %190 = vmatprep.subr.mxu0 0.0
  %191 = vmatpush2.msra.mxu0 0.0
  %192 = vmatprep.subr.mxu0 0.0
  %193 = vmatpush2.msra.mxu0 0.0
  %194 = vmatprep.subr.mxu0 0.0
  %195 = vmatpush2.msra.mxu0 0.0
  %196 = vmatprep.subr.mxu0 0.0
  %197 = vmatpush2.msra.mxu0 0.0
  %198 = vmatprep.subr.mxu0 0.0
  %199 = vmatpush2.msra.mxu0 0.0
  %200 = vmatprep.subr.mxu0 0.0
  %201 = vmatpush2.msra.mxu0 0.0
  %202 = vmatprep.subr.mxu0 0.0
  %203 = vmatpush2.msra.mxu0 0.0
  %204 = vmatprep.subr.mxu0 0.0
  %205 = vmatpush2.msra.mxu0 0.0
  %206 = vmatprep.subr.mxu0 0.0
  %207 = vmatpush2.msra.mxu0 0.0
  %208 = vmatprep.subr.mxu0 0.0
  %209 = vmatpush2.msra.mxu0 0.0
  %210 = vmatprep.subr.mxu0 0.0
  %211 = vmatpush2.msra.mxu0 0.0
  %212 = vmatprep.subr.mxu0 0.0
  %213 = vmatpush2.msra.mxu0 0.0
  %214 = vmatprep.subr.mxu0 0.0
  %215 = vmatpush2.msra.mxu0 0.0
  %216 = vmatprep.subr.mxu0 0.0
  %217 = vmatpush2.msra.mxu0 0.0
  %218 = vmatprep.subr.mxu0 0.0
  %219 = vmatpush2.msra.mxu0 0.0
  %220 = vmatprep.mubr.f32.mxu0 0.0
  %v221 = vand.u32 %v47, 4294901760
  %222 = vmatmul.mubr.f32.gmra.mxu0 %v221
  %v223 = vpop.f32.mrf.mxu0
  %v224 = vadd.f32 %v132, %v223
  %v225 = vpop.f32.mrf.mxu0
  %v226 = vadd.f32 %v134, %v225
  %227 = vdwg.mxu0
  %228 = vmatprep.subr.mxu0 0.0
  %229 = vmatpush1.msra.mxu0 0.0
  %230 = vmatprep.subr.mxu0 0.0
  %231 = vmatpush1.msra.mxu0 0.0
  %232 = vmatprep.subr.mxu0 0.0
  %233 = vmatpush1.msra.mxu0 0.0
  %234 = vmatprep.subr.mxu0 0.0
  %235 = vmatpush1.msra.mxu0 0.0
  %236 = vmatprep.subr.mxu0 0.0
  %237 = vmatpush1.msra.mxu0 0.0
  %238 = vmatprep.subr.mxu0 0.0
  %239 = vmatpush1.msra.mxu0 0.0
  %240 = vmatprep.subr.mxu0 0.0
  %241 = vmatpush1.msra.mxu0 0.0
  %242 = vmatprep.subr.mxu0 0.0
  %243 = vmatpush1.msra.mxu0 0.0
  %244 = vmatprep.subr.mxu0 0.0
  %245 = vmatpush1.msra.mxu0 0.0
  %246 = vmatprep.subr.mxu0 0.0
  %247 = vmatpush1.msra.mxu0 0.0
  %248 = vmatprep.subr.mxu0 0.0
  %249 = vmatpush1.msra.mxu0 0.0
  %250 = vmatprep.subr.mxu0 0.0
  %251 = vmatpush1.msra.mxu0 0.0
  %252 = vmatprep.subr.mxu0 0.0
  %253 = vmatpush1.msra.mxu0 0.0
  %254 = vmatprep.subr.mxu0 0.0
  %255 = vmatpush1.msra.mxu0 0.0
  %v256 = vand.u32 %v54, 4294901760
  %v257 = vsub.f32 %v54, %v256
  %258 = vmatprep.subr.mxu0 %v257
  %v259 = vand.u32 %v51, 4294901760
  %v260 = vsub.f32 %v51, %v259
  %261 = vmatpush1.msra.mxu0 %v260
  %v262 = vand.u32 %v41, 4294901760
  %v263 = vsub.f32 %v41, %v262
  %264 = vmatprep.subr.mxu0 %v263
  %v265 = vand.u32 %v40, 4294901760
  %v266 = vsub.f32 %v40, %v265
  %267 = vmatpush1.msra.mxu0 %v266
  %268 = vmatprep.subr.mxu0 0.0
  %269 = vmatpush2.msra.mxu0 0.0
  %270 = vmatprep.subr.mxu0 0.0
  %271 = vmatpush2.msra.mxu0 0.0
  %272 = vmatprep.subr.mxu0 0.0
  %273 = vmatpush2.msra.mxu0 0.0
  %274 = vmatprep.subr.mxu0 0.0
  %275 = vmatpush2.msra.mxu0 0.0
  %276 = vmatprep.subr.mxu0 0.0
  %277 = vmatpush2.msra.mxu0 0.0
  %278 = vmatprep.subr.mxu0 0.0
  %279 = vmatpush2.msra.mxu0 0.0
  %280 = vmatprep.subr.mxu0 0.0
  %281 = vmatpush2.msra.mxu0 0.0
  %282 = vmatprep.subr.mxu0 0.0
  %283 = vmatpush2.msra.mxu0 0.0
  %284 = vmatprep.subr.mxu0 0.0
  %285 = vmatpush2.msra.mxu0 0.0
  %286 = vmatprep.subr.mxu0 0.0
  %287 = vmatpush2.msra.mxu0 0.0
  %288 = vmatprep.subr.mxu0 0.0
  %289 = vmatpush2.msra.mxu0 0.0
  %290 = vmatprep.subr.mxu0 0.0
  %291 = vmatpush2.msra.mxu0 0.0
  %292 = vmatprep.subr.mxu0 0.0
  %293 = vmatpush2.msra.mxu0 0.0
  %294 = vmatprep.subr.mxu0 0.0
  %295 = vmatpush2.msra.mxu0 0.0
  %296 = vmatprep.subr.mxu0 0.0
  %297 = vmatpush2.msra.mxu0 0.0
  %298 = vmatprep.subr.mxu0 0.0
  %299 = vmatpush2.msra.mxu0 0.0
  %300 = vmatprep.mubr.f32.mxu0 0.0
  %v301 = vand.u32 %v47, 4294901760
  %v302 = vsub.f32 %v47, %v301
  %303 = vmatmul.mubr.f32.gmra.mxu0 %v302
  %v304 = vpop.f32.mrf.mxu0
  %v305 = vadd.f32 %v224, %v304
  %v306 = vpop.f32.mrf.mxu0
  %v307 = vadd.f32 %v226, %v306
  %308 = vdwg.mxu0
  %309 = vmatprep.subr.mxu0 0.0
  %310 = vmatpush1.msra.mxu0 0.0
  %311 = vmatprep.subr.mxu0 0.0
  %312 = vmatpush1.msra.mxu0 0.0
  %313 = vmatprep.subr.mxu0 0.0
  %314 = vmatpush1.msra.mxu0 0.0
  %315 = vmatprep.subr.mxu0 0.0
  %316 = vmatpush1.msra.mxu0 0.0
  %317 = vmatprep.subr.mxu0 0.0
  %318 = vmatpush1.msra.mxu0 0.0
  %319 = vmatprep.subr.mxu0 0.0
  %320 = vmatpush1.msra.mxu0 0.0
  %321 = vmatprep.subr.mxu0 0.0
  %322 = vmatpush1.msra.mxu0 0.0
  %323 = vmatprep.subr.mxu0 0.0
  %324 = vmatpush1.msra.mxu0 0.0
  %325 = vmatprep.subr.mxu0 0.0
  %326 = vmatpush1.msra.mxu0 0.0
  %327 = vmatprep.subr.mxu0 0.0
  %328 = vmatpush1.msra.mxu0 0.0
  %329 = vmatprep.subr.mxu0 0.0
  %330 = vmatpush1.msra.mxu0 0.0
  %331 = vmatprep.subr.mxu0 0.0
  %332 = vmatpush1.msra.mxu0 0.0
  %333 = vmatprep.subr.mxu0 0.0
  %334 = vmatpush1.msra.mxu0 0.0
  %335 = vmatprep.subr.mxu0 0.0
  %336 = vmatpush1.msra.mxu0 0.0
  %v337 = vand.u32 %v54, 4294901760
  %338 = vmatprep.subr.mxu0 %v337
  %v339 = vand.u32 %v51, 4294901760
  %340 = vmatpush1.msra.mxu0 %v339
  %v341 = vand.u32 %v41, 4294901760
  %342 = vmatprep.subr.mxu0 %v341
  %v343 = vand.u32 %v40, 4294901760
  %344 = vmatpush1.msra.mxu0 %v343
  %345 = vmatprep.subr.mxu0 0.0
  %346 = vmatpush2.msra.mxu0 0.0
  %347 = vmatprep.subr.mxu0 0.0
  %348 = vmatpush2.msra.mxu0 0.0
  %349 = vmatprep.subr.mxu0 0.0
  %350 = vmatpush2.msra.mxu0 0.0
  %351 = vmatprep.subr.mxu0 0.0
  %352 = vmatpush2.msra.mxu0 0.0
  %353 = vmatprep.subr.mxu0 0.0
  %354 = vmatpush2.msra.mxu0 0.0
  %355 = vmatprep.subr.mxu0 0.0
  %356 = vmatpush2.msra.mxu0 0.0
  %357 = vmatprep.subr.mxu0 0.0
  %358 = vmatpush2.msra.mxu0 0.0
  %359 = vmatprep.subr.mxu0 0.0
  %360 = vmatpush2.msra.mxu0 0.0
  %361 = vmatprep.subr.mxu0 0.0
  %362 = vmatpush2.msra.mxu0 0.0
  %363 = vmatprep.subr.mxu0 0.0
  %364 = vmatpush2.msra.mxu0 0.0
  %365 = vmatprep.subr.mxu0 0.0
  %366 = vmatpush2.msra.mxu0 0.0
  %367 = vmatprep.subr.mxu0 0.0
  %368 = vmatpush2.msra.mxu0 0.0
  %369 = vmatprep.subr.mxu0 0.0
  %370 = vmatpush2.msra.mxu0 0.0
  %371 = vmatprep.subr.mxu0 0.0
  %372 = vmatpush2.msra.mxu0 0.0
  %373 = vmatprep.subr.mxu0 0.0
  %374 = vmatpush2.msra.mxu0 0.0
  %375 = vmatprep.subr.mxu0 0.0
  %376 = vmatpush2.msra.mxu0 0.0
  %377 = vmatprep.mubr.f32.mxu0 0.0
  %v378 = vand.u32 %v47, 4294901760
  %v379 = vsub.f32 %v47, %v378
  %v380 = vand.u32 %v379, 4294901760
  %381 = vmatmul.mubr.f32.gmra.mxu0 %v380
  %v382 = vpop.f32.mrf.mxu0
  %v383 = vadd.f32 %v305, %v382
  %v384 = vpop.f32.mrf.mxu0
  %v385 = vadd.f32 %v307, %v384
  %386 = vdwg.mxu0
  %387 = vmatprep.subr.mxu0 0.0
  %388 = vmatpush1.msra.mxu0 0.0
  %389 = vmatprep.subr.mxu0 0.0
  %390 = vmatpush1.msra.mxu0 0.0
  %391 = vmatprep.subr.mxu0 0.0
  %392 = vmatpush1.msra.mxu0 0.0
  %393 = vmatprep.subr.mxu0 0.0
  %394 = vmatpush1.msra.mxu0 0.0
  %395 = vmatprep.subr.mxu0 0.0
  %396 = vmatpush1.msra.mxu0 0.0
  %397 = vmatprep.subr.mxu0 0.0
  %398 = vmatpush1.msra.mxu0 0.0
  %399 = vmatprep.subr.mxu0 0.0
  %400 = vmatpush1.msra.mxu0 0.0
  %401 = vmatprep.subr.mxu0 0.0
  %402 = vmatpush1.msra.mxu0 0.0
  %403 = vmatprep.subr.mxu0 0.0
  %404 = vmatpush1.msra.mxu0 0.0
  %405 = vmatprep.subr.mxu0 0.0
  %406 = vmatpush1.msra.mxu0 0.0
  %407 = vmatprep.subr.mxu0 0.0
  %408 = vmatpush1.msra.mxu0 0.0
  %409 = vmatprep.subr.mxu0 0.0
  %410 = vmatpush1.msra.mxu0 0.0
  %411 = vmatprep.subr.mxu0 0.0
  %412 = vmatpush1.msra.mxu0 0.0
  %413 = vmatprep.subr.mxu0 0.0
  %414 = vmatpush1.msra.mxu0 0.0
  %v415 = vand.u32 %v54, 4294901760
  %v416 = vsub.f32 %v54, %v415
  %v417 = vand.u32 %v416, 4294901760
  %418 = vmatprep.subr.mxu0 %v417
  %v419 = vand.u32 %v51, 4294901760
  %v420 = vsub.f32 %v51, %v419
  %v421 = vand.u32 %v420, 4294901760
  %422 = vmatpush1.msra.mxu0 %v421
  %v423 = vand.u32 %v41, 4294901760
  %v424 = vsub.f32 %v41, %v423
  %v425 = vand.u32 %v424, 4294901760
  %426 = vmatprep.subr.mxu0 %v425
  %v427 = vand.u32 %v40, 4294901760
  %v428 = vsub.f32 %v40, %v427
  %v429 = vand.u32 %v428, 4294901760
  %430 = vmatpush1.msra.mxu0 %v429
  %431 = vmatprep.subr.mxu0 0.0
  %432 = vmatpush2.msra.mxu0 0.0
  %433 = vmatprep.subr.mxu0 0.0
  %434 = vmatpush2.msra.mxu0 0.0
  %435 = vmatprep.subr.mxu0 0.0
  %436 = vmatpush2.msra.mxu0 0.0
  %437 = vmatprep.subr.mxu0 0.0
  %438 = vmatpush2.msra.mxu0 0.0
  %439 = vmatprep.subr.mxu0 0.0
  %440 = vmatpush2.msra.mxu0 0.0
  %441 = vmatprep.subr.mxu0 0.0
  %442 = vmatpush2.msra.mxu0 0.0
  %443 = vmatprep.subr.mxu0 0.0
  %444 = vmatpush2.msra.mxu0 0.0
  %445 = vmatprep.subr.mxu0 0.0
  %446 = vmatpush2.msra.mxu0 0.0
  %447 = vmatprep.subr.mxu0 0.0
  %448 = vmatpush2.msra.mxu0 0.0
  %449 = vmatprep.subr.mxu0 0.0
  %450 = vmatpush2.msra.mxu0 0.0
  %451 = vmatprep.subr.mxu0 0.0
  %452 = vmatpush2.msra.mxu0 0.0
  %453 = vmatprep.subr.mxu0 0.0
  %454 = vmatpush2.msra.mxu0 0.0
  %455 = vmatprep.subr.mxu0 0.0
  %456 = vmatpush2.msra.mxu0 0.0
  %457 = vmatprep.subr.mxu0 0.0
  %458 = vmatpush2.msra.mxu0 0.0
  %459 = vmatprep.subr.mxu0 0.0
  %460 = vmatpush2.msra.mxu0 0.0
  %461 = vmatprep.subr.mxu0 0.0
  %462 = vmatpush2.msra.mxu0 0.0
  %463 = vmatprep.mubr.f32.mxu0 0.0
  %v464 = vand.u32 %v47, 4294901760
  %465 = vmatmul.mubr.f32.gmra.mxu0 %v464
  %v466 = vpop.f32.mrf.mxu0
  %v467 = vadd.f32 %v383, %v466
  %v468 = vpop.f32.mrf.mxu0
  %v469 = vadd.f32 %v385, %v468
  %470 = vdwg.mxu0
  %471 = vmatprep.subr.mxu0 0.0
  %472 = vmatpush1.msra.mxu0 0.0
  %473 = vmatprep.subr.mxu0 0.0
  %474 = vmatpush1.msra.mxu0 0.0
  %475 = vmatprep.subr.mxu0 0.0
  %476 = vmatpush1.msra.mxu0 0.0
  %477 = vmatprep.subr.mxu0 0.0
  %478 = vmatpush1.msra.mxu0 0.0
  %479 = vmatprep.subr.mxu0 0.0
  %480 = vmatpush1.msra.mxu0 0.0
  %481 = vmatprep.subr.mxu0 0.0
  %482 = vmatpush1.msra.mxu0 0.0
  %483 = vmatprep.subr.mxu0 0.0
  %484 = vmatpush1.msra.mxu0 0.0
  %485 = vmatprep.subr.mxu0 0.0
  %486 = vmatpush1.msra.mxu0 0.0
  %487 = vmatprep.subr.mxu0 0.0
  %488 = vmatpush1.msra.mxu0 0.0
  %489 = vmatprep.subr.mxu0 0.0
  %490 = vmatpush1.msra.mxu0 0.0
  %491 = vmatprep.subr.mxu0 0.0
  %492 = vmatpush1.msra.mxu0 0.0
  %493 = vmatprep.subr.mxu0 0.0
  %494 = vmatpush1.msra.mxu0 0.0
  %495 = vmatprep.subr.mxu0 0.0
  %496 = vmatpush1.msra.mxu0 0.0
  %497 = vmatprep.subr.mxu0 0.0
  %498 = vmatpush1.msra.mxu0 0.0
  %v499 = vand.u32 %v54, 4294901760
  %500 = vmatprep.subr.mxu0 %v499
  %v501 = vand.u32 %v51, 4294901760
  %502 = vmatpush1.msra.mxu0 %v501
  %v503 = vand.u32 %v41, 4294901760
  %504 = vmatprep.subr.mxu0 %v503
  %v505 = vand.u32 %v40, 4294901760
  %506 = vmatpush1.msra.mxu0 %v505
  %507 = vmatprep.subr.mxu0 0.0
  %508 = vmatpush2.msra.mxu0 0.0
  %509 = vmatprep.subr.mxu0 0.0
  %510 = vmatpush2.msra.mxu0 0.0
  %511 = vmatprep.subr.mxu0 0.0
  %512 = vmatpush2.msra.mxu0 0.0
  %513 = vmatprep.subr.mxu0 0.0
  %514 = vmatpush2.msra.mxu0 0.0
  %515 = vmatprep.subr.mxu0 0.0
  %516 = vmatpush2.msra.mxu0 0.0
  %517 = vmatprep.subr.mxu0 0.0
  %518 = vmatpush2.msra.mxu0 0.0
  %519 = vmatprep.subr.mxu0 0.0
  %520 = vmatpush2.msra.mxu0 0.0
  %521 = vmatprep.subr.mxu0 0.0
  %522 = vmatpush2.msra.mxu0 0.0
  %523 = vmatprep.subr.mxu0 0.0
  %524 = vmatpush2.msra.mxu0 0.0
  %525 = vmatprep.subr.mxu0 0.0
  %526 = vmatpush2.msra.mxu0 0.0
  %527 = vmatprep.subr.mxu0 0.0
  %528 = vmatpush2.msra.mxu0 0.0
  %529 = vmatprep.subr.mxu0 0.0
  %530 = vmatpush2.msra.mxu0 0.0
  %531 = vmatprep.subr.mxu0 0.0
  %532 = vmatpush2.msra.mxu0 0.0
  %533 = vmatprep.subr.mxu0 0.0
  %534 = vmatpush2.msra.mxu0 0.0
  %535 = vmatprep.subr.mxu0 0.0
  %536 = vmatpush2.msra.mxu0 0.0
  %537 = vmatprep.subr.mxu0 0.0
  %538 = vmatpush2.msra.mxu0 0.0
  %539 = vmatprep.mubr.f32.mxu0 0.0
  %v540 = vand.u32 %v47, 4294901760
  %541 = vmatmul.mubr.f32.gmra.mxu0 %v540
  %v542 = vpop.f32.mrf.mxu0
  %v543 = vadd.f32 %v467, %v542
  %v544 = vpop.f32.mrf.mxu0
  %v545 = vadd.f32 %v469, %v544
  %546 = vdwg.mxu0
  %v547 = vmul.f32 %v543, 0.5
  %v548 = vmul.f32 %v545, 0.5
  %v549 = vtanh.pop %v547
  %v550 = vtanh.pop %v548
  %v551 = vadd.f32 %v549, 1.0
  %v552 = vadd.f32 %v550, 1.0
  %v553 = vmul.f32 %v551, 0.5
  %v554 = vmul.f32 %v552, 0.5
  %v555 = vmul.f32 %v543, %v553
  %v556 = vmul.f32 %v545, %v554
  %v557 = vadd.f32 %v555, %v35
  %v558 = vadd.f32 %v556, %v35
  %vm559 = vcmask 39936
  %v561 = vsel %vm559, %v27, 0
  %v564 = vsel %vm559, %v28, 0
  %v567 = vsel %vm559, %v29, 0
  %v570 = vsel %vm559, %v30, 0
  %vm572 = vcmask 1044480
  %v574 = vsel %vm572, %v557, 0
  %v577 = vsel %vm572, %v558, 0
  %579 = vmatprep.subr.mxu0 0.0
  %580 = vmatpush1.msra.mxu0 0.0
  %581 = vmatprep.subr.mxu0 0.0
  %582 = vmatpush1.msra.mxu0 0.0
  %583 = vmatprep.subr.mxu0 0.0
  %584 = vmatpush1.msra.mxu0 0.0
  %585 = vmatprep.subr.mxu0 0.0
  %586 = vmatpush1.msra.mxu0 0.0
  %587 = vmatprep.subr.mxu0 0.0
  %588 = vmatpush1.msra.mxu0 0.0
  %589 = vmatprep.subr.mxu0 0.0
  %590 = vmatpush1.msra.mxu0 0.0
  %591 = vmatprep.subr.mxu0 0.0
  %592 = vmatpush1.msra.mxu0 0.0
  %593 = vmatprep.subr.mxu0 0.0
  %594 = vmatpush1.msra.mxu0 0.0
  %595 = vmatprep.subr.mxu0 0.0
  %596 = vmatpush1.msra.mxu0 0.0
  %597 = vmatprep.subr.mxu0 0.0
  %598 = vmatpush1.msra.mxu0 0.0
  %599 = vmatprep.subr.mxu0 0.0
  %600 = vmatpush1.msra.mxu0 0.0
  %601 = vmatprep.subr.mxu0 0.0
  %602 = vmatpush1.msra.mxu0 0.0
  %603 = vmatprep.subr.mxu0 0.0
  %604 = vmatpush1.msra.mxu0 0.0
  %605 = vmatprep.subr.mxu0 0.0
  %606 = vmatpush1.msra.mxu0 0.0
  %607 = vmatprep.subr.mxu0 0.0
  %608 = vmatpush1.msra.mxu0 0.0
  %v609 = vand.u32 %v577, 4294901760
  %610 = vmatprep.subr.mxu0 %v609
  %v611 = vand.u32 %v574, 4294901760
  %612 = vmatpush1.msra.mxu0 %v611
  %613 = vmatprep.subr.mxu0 0.0
  %614 = vmatpush2.msra.mxu0 0.0
  %615 = vmatprep.subr.mxu0 0.0
  %616 = vmatpush2.msra.mxu0 0.0
  %617 = vmatprep.subr.mxu0 0.0
  %618 = vmatpush2.msra.mxu0 0.0
  %619 = vmatprep.subr.mxu0 0.0
  %620 = vmatpush2.msra.mxu0 0.0
  %621 = vmatprep.subr.mxu0 0.0
  %622 = vmatpush2.msra.mxu0 0.0
  %623 = vmatprep.subr.mxu0 0.0
  %624 = vmatpush2.msra.mxu0 0.0
  %625 = vmatprep.subr.mxu0 0.0
  %626 = vmatpush2.msra.mxu0 0.0
  %627 = vmatprep.subr.mxu0 0.0
  %628 = vmatpush2.msra.mxu0 0.0
  %629 = vmatprep.subr.mxu0 0.0
  %630 = vmatpush2.msra.mxu0 0.0
  %631 = vmatprep.subr.mxu0 0.0
  %632 = vmatpush2.msra.mxu0 0.0
  %633 = vmatprep.subr.mxu0 0.0
  %634 = vmatpush2.msra.mxu0 0.0
  %635 = vmatprep.subr.mxu0 0.0
  %636 = vmatpush2.msra.mxu0 0.0
  %637 = vmatprep.subr.mxu0 0.0
  %638 = vmatpush2.msra.mxu0 0.0
  %639 = vmatprep.subr.mxu0 0.0
  %640 = vmatpush2.msra.mxu0 0.0
  %641 = vmatprep.subr.mxu0 0.0
  %642 = vmatpush2.msra.mxu0 0.0
  %643 = vmatprep.subr.mxu0 0.0
  %644 = vmatpush2.msra.mxu0 0.0
  %645 = vmatprep.mubr.f32.mxu0 0.0
  %v646 = vand.u32 %v561, 4294901760
  %v647 = vsub.f32 %v561, %v646
  %v648 = vand.u32 %v647, 4294901760
  %v649 = vsub.f32 %v647, %v648
  %v650 = vand.u32 %v649, 4294901760
  %651 = vmatmul.mubr.f32.gmra.mxu0 %v650
  %v652 = vpop.f32.mrf.mxu0
  %v653 = vadd.f32 0.0, %v652
  %v654 = vpop.f32.mrf.mxu0
  %v655 = vadd.f32 0.0, %v654
  %656 = vmatprep.mubr.f32.mxu0 0.0
  %v657 = vand.u32 %v564, 4294901760
  %v658 = vsub.f32 %v564, %v657
  %v659 = vand.u32 %v658, 4294901760
  %v660 = vsub.f32 %v658, %v659
  %v661 = vand.u32 %v660, 4294901760
  %662 = vmatmul.mubr.f32.gmra.mxu0 %v661
  %v663 = vpop.f32.mrf.mxu0
  %v664 = vadd.f32 0.0, %v663
  %v665 = vpop.f32.mrf.mxu0
  %v666 = vadd.f32 0.0, %v665
  %667 = vmatprep.mubr.f32.mxu0 0.0
  %v668 = vand.u32 %v567, 4294901760
  %v669 = vsub.f32 %v567, %v668
  %v670 = vand.u32 %v669, 4294901760
  %v671 = vsub.f32 %v669, %v670
  %v672 = vand.u32 %v671, 4294901760
  %673 = vmatmul.mubr.f32.gmra.mxu0 %v672
  %v674 = vpop.f32.mrf.mxu0
  %v675 = vadd.f32 0.0, %v674
  %v676 = vpop.f32.mrf.mxu0
  %v677 = vadd.f32 0.0, %v676
  %678 = vmatprep.mubr.f32.mxu0 0.0
  %v679 = vand.u32 %v570, 4294901760
  %v680 = vsub.f32 %v570, %v679
  %v681 = vand.u32 %v680, 4294901760
  %v682 = vsub.f32 %v680, %v681
  %v683 = vand.u32 %v682, 4294901760
  %684 = vmatmul.mubr.f32.gmra.mxu0 %v683
  %v685 = vpop.f32.mrf.mxu0
  %v686 = vadd.f32 0.0, %v685
  %v687 = vpop.f32.mrf.mxu0
  %v688 = vadd.f32 0.0, %v687
  %689 = vdwg.mxu0
  %690 = vmatprep.subr.mxu0 0.0
  %691 = vmatpush1.msra.mxu0 0.0
  %692 = vmatprep.subr.mxu0 0.0
  %693 = vmatpush1.msra.mxu0 0.0
  %694 = vmatprep.subr.mxu0 0.0
  %695 = vmatpush1.msra.mxu0 0.0
  %696 = vmatprep.subr.mxu0 0.0
  %697 = vmatpush1.msra.mxu0 0.0
  %698 = vmatprep.subr.mxu0 0.0
  %699 = vmatpush1.msra.mxu0 0.0
  %700 = vmatprep.subr.mxu0 0.0
  %701 = vmatpush1.msra.mxu0 0.0
  %702 = vmatprep.subr.mxu0 0.0
  %703 = vmatpush1.msra.mxu0 0.0
  %704 = vmatprep.subr.mxu0 0.0
  %705 = vmatpush1.msra.mxu0 0.0
  %706 = vmatprep.subr.mxu0 0.0
  %707 = vmatpush1.msra.mxu0 0.0
  %708 = vmatprep.subr.mxu0 0.0
  %709 = vmatpush1.msra.mxu0 0.0
  %710 = vmatprep.subr.mxu0 0.0
  %711 = vmatpush1.msra.mxu0 0.0
  %712 = vmatprep.subr.mxu0 0.0
  %713 = vmatpush1.msra.mxu0 0.0
  %714 = vmatprep.subr.mxu0 0.0
  %715 = vmatpush1.msra.mxu0 0.0
  %716 = vmatprep.subr.mxu0 0.0
  %717 = vmatpush1.msra.mxu0 0.0
  %718 = vmatprep.subr.mxu0 0.0
  %719 = vmatpush1.msra.mxu0 0.0
  %v720 = vand.u32 %v577, 4294901760
  %v721 = vsub.f32 %v577, %v720
  %v722 = vand.u32 %v721, 4294901760
  %v723 = vsub.f32 %v721, %v722
  %v724 = vand.u32 %v723, 4294901760
  %725 = vmatprep.subr.mxu0 %v724
  %v726 = vand.u32 %v574, 4294901760
  %v727 = vsub.f32 %v574, %v726
  %v728 = vand.u32 %v727, 4294901760
  %v729 = vsub.f32 %v727, %v728
  %v730 = vand.u32 %v729, 4294901760
  %731 = vmatpush1.msra.mxu0 %v730
  %732 = vmatprep.subr.mxu0 0.0
  %733 = vmatpush2.msra.mxu0 0.0
  %734 = vmatprep.subr.mxu0 0.0
  %735 = vmatpush2.msra.mxu0 0.0
  %736 = vmatprep.subr.mxu0 0.0
  %737 = vmatpush2.msra.mxu0 0.0
  %738 = vmatprep.subr.mxu0 0.0
  %739 = vmatpush2.msra.mxu0 0.0
  %740 = vmatprep.subr.mxu0 0.0
  %741 = vmatpush2.msra.mxu0 0.0
  %742 = vmatprep.subr.mxu0 0.0
  %743 = vmatpush2.msra.mxu0 0.0
  %744 = vmatprep.subr.mxu0 0.0
  %745 = vmatpush2.msra.mxu0 0.0
  %746 = vmatprep.subr.mxu0 0.0
  %747 = vmatpush2.msra.mxu0 0.0
  %748 = vmatprep.subr.mxu0 0.0
  %749 = vmatpush2.msra.mxu0 0.0
  %750 = vmatprep.subr.mxu0 0.0
  %751 = vmatpush2.msra.mxu0 0.0
  %752 = vmatprep.subr.mxu0 0.0
  %753 = vmatpush2.msra.mxu0 0.0
  %754 = vmatprep.subr.mxu0 0.0
  %755 = vmatpush2.msra.mxu0 0.0
  %756 = vmatprep.subr.mxu0 0.0
  %757 = vmatpush2.msra.mxu0 0.0
  %758 = vmatprep.subr.mxu0 0.0
  %759 = vmatpush2.msra.mxu0 0.0
  %760 = vmatprep.subr.mxu0 0.0
  %761 = vmatpush2.msra.mxu0 0.0
  %762 = vmatprep.subr.mxu0 0.0
  %763 = vmatpush2.msra.mxu0 0.0
  %764 = vmatprep.mubr.f32.mxu0 0.0
  %v765 = vand.u32 %v561, 4294901760
  %766 = vmatmul.mubr.f32.gmra.mxu0 %v765
  %v767 = vpop.f32.mrf.mxu0
  %v768 = vadd.f32 %v653, %v767
  %v769 = vpop.f32.mrf.mxu0
  %v770 = vadd.f32 %v655, %v769
  %771 = vmatprep.mubr.f32.mxu0 0.0
  %v772 = vand.u32 %v564, 4294901760
  %773 = vmatmul.mubr.f32.gmra.mxu0 %v772
  %v774 = vpop.f32.mrf.mxu0
  %v775 = vadd.f32 %v664, %v774
  %v776 = vpop.f32.mrf.mxu0
  %v777 = vadd.f32 %v666, %v776
  %778 = vmatprep.mubr.f32.mxu0 0.0
  %v779 = vand.u32 %v567, 4294901760
  %780 = vmatmul.mubr.f32.gmra.mxu0 %v779
  %v781 = vpop.f32.mrf.mxu0
  %v782 = vadd.f32 %v675, %v781
  %v783 = vpop.f32.mrf.mxu0
  %v784 = vadd.f32 %v677, %v783
  %785 = vmatprep.mubr.f32.mxu0 0.0
  %v786 = vand.u32 %v570, 4294901760
  %787 = vmatmul.mubr.f32.gmra.mxu0 %v786
  %v788 = vpop.f32.mrf.mxu0
  %v789 = vadd.f32 %v686, %v788
  %v790 = vpop.f32.mrf.mxu0
  %v791 = vadd.f32 %v688, %v790
  %792 = vdwg.mxu0
  %793 = vmatprep.subr.mxu0 0.0
  %794 = vmatpush1.msra.mxu0 0.0
  %795 = vmatprep.subr.mxu0 0.0
  %796 = vmatpush1.msra.mxu0 0.0
  %797 = vmatprep.subr.mxu0 0.0
  %798 = vmatpush1.msra.mxu0 0.0
  %799 = vmatprep.subr.mxu0 0.0
  %800 = vmatpush1.msra.mxu0 0.0
  %801 = vmatprep.subr.mxu0 0.0
  %802 = vmatpush1.msra.mxu0 0.0
  %803 = vmatprep.subr.mxu0 0.0
  %804 = vmatpush1.msra.mxu0 0.0
  %805 = vmatprep.subr.mxu0 0.0
  %806 = vmatpush1.msra.mxu0 0.0
  %807 = vmatprep.subr.mxu0 0.0
  %808 = vmatpush1.msra.mxu0 0.0
  %809 = vmatprep.subr.mxu0 0.0
  %810 = vmatpush1.msra.mxu0 0.0
  %811 = vmatprep.subr.mxu0 0.0
  %812 = vmatpush1.msra.mxu0 0.0
  %813 = vmatprep.subr.mxu0 0.0
  %814 = vmatpush1.msra.mxu0 0.0
  %815 = vmatprep.subr.mxu0 0.0
  %816 = vmatpush1.msra.mxu0 0.0
  %817 = vmatprep.subr.mxu0 0.0
  %818 = vmatpush1.msra.mxu0 0.0
  %819 = vmatprep.subr.mxu0 0.0
  %820 = vmatpush1.msra.mxu0 0.0
  %821 = vmatprep.subr.mxu0 0.0
  %822 = vmatpush1.msra.mxu0 0.0
  %v823 = vand.u32 %v577, 4294901760
  %v824 = vsub.f32 %v577, %v823
  %825 = vmatprep.subr.mxu0 %v824
  %v826 = vand.u32 %v574, 4294901760
  %v827 = vsub.f32 %v574, %v826
  %828 = vmatpush1.msra.mxu0 %v827
  %829 = vmatprep.subr.mxu0 0.0
  %830 = vmatpush2.msra.mxu0 0.0
  %831 = vmatprep.subr.mxu0 0.0
  %832 = vmatpush2.msra.mxu0 0.0
  %833 = vmatprep.subr.mxu0 0.0
  %834 = vmatpush2.msra.mxu0 0.0
  %835 = vmatprep.subr.mxu0 0.0
  %836 = vmatpush2.msra.mxu0 0.0
  %837 = vmatprep.subr.mxu0 0.0
  %838 = vmatpush2.msra.mxu0 0.0
  %839 = vmatprep.subr.mxu0 0.0
  %840 = vmatpush2.msra.mxu0 0.0
  %841 = vmatprep.subr.mxu0 0.0
  %842 = vmatpush2.msra.mxu0 0.0
  %843 = vmatprep.subr.mxu0 0.0
  %844 = vmatpush2.msra.mxu0 0.0
  %845 = vmatprep.subr.mxu0 0.0
  %846 = vmatpush2.msra.mxu0 0.0
  %847 = vmatprep.subr.mxu0 0.0
  %848 = vmatpush2.msra.mxu0 0.0
  %849 = vmatprep.subr.mxu0 0.0
  %850 = vmatpush2.msra.mxu0 0.0
  %851 = vmatprep.subr.mxu0 0.0
  %852 = vmatpush2.msra.mxu0 0.0
  %853 = vmatprep.subr.mxu0 0.0
  %854 = vmatpush2.msra.mxu0 0.0
  %855 = vmatprep.subr.mxu0 0.0
  %856 = vmatpush2.msra.mxu0 0.0
  %857 = vmatprep.subr.mxu0 0.0
  %858 = vmatpush2.msra.mxu0 0.0
  %859 = vmatprep.subr.mxu0 0.0
  %860 = vmatpush2.msra.mxu0 0.0
  %861 = vmatprep.mubr.f32.mxu0 0.0
  %v862 = vand.u32 %v561, 4294901760
  %v863 = vsub.f32 %v561, %v862
  %864 = vmatmul.mubr.f32.gmra.mxu0 %v863
  %v865 = vpop.f32.mrf.mxu0
  %v866 = vadd.f32 %v768, %v865
  %v867 = vpop.f32.mrf.mxu0
  %v868 = vadd.f32 %v770, %v867
  %869 = vmatprep.mubr.f32.mxu0 0.0
  %v870 = vand.u32 %v564, 4294901760
  %v871 = vsub.f32 %v564, %v870
  %872 = vmatmul.mubr.f32.gmra.mxu0 %v871
  %v873 = vpop.f32.mrf.mxu0
  %v874 = vadd.f32 %v775, %v873
  %v875 = vpop.f32.mrf.mxu0
  %v876 = vadd.f32 %v777, %v875
  %877 = vmatprep.mubr.f32.mxu0 0.0
  %v878 = vand.u32 %v567, 4294901760
  %v879 = vsub.f32 %v567, %v878
  %880 = vmatmul.mubr.f32.gmra.mxu0 %v879
  %v881 = vpop.f32.mrf.mxu0
  %v882 = vadd.f32 %v782, %v881
  %v883 = vpop.f32.mrf.mxu0
  %v884 = vadd.f32 %v784, %v883
  %885 = vmatprep.mubr.f32.mxu0 0.0
  %v886 = vand.u32 %v570, 4294901760
  %v887 = vsub.f32 %v570, %v886
  %888 = vmatmul.mubr.f32.gmra.mxu0 %v887
  %v889 = vpop.f32.mrf.mxu0
  %v890 = vadd.f32 %v789, %v889
  %v891 = vpop.f32.mrf.mxu0
  %v892 = vadd.f32 %v791, %v891
  %893 = vdwg.mxu0
  %894 = vmatprep.subr.mxu0 0.0
  %895 = vmatpush1.msra.mxu0 0.0
  %896 = vmatprep.subr.mxu0 0.0
  %897 = vmatpush1.msra.mxu0 0.0
  %898 = vmatprep.subr.mxu0 0.0
  %899 = vmatpush1.msra.mxu0 0.0
  %900 = vmatprep.subr.mxu0 0.0
  %901 = vmatpush1.msra.mxu0 0.0
  %902 = vmatprep.subr.mxu0 0.0
  %903 = vmatpush1.msra.mxu0 0.0
  %904 = vmatprep.subr.mxu0 0.0
  %905 = vmatpush1.msra.mxu0 0.0
  %906 = vmatprep.subr.mxu0 0.0
  %907 = vmatpush1.msra.mxu0 0.0
  %908 = vmatprep.subr.mxu0 0.0
  %909 = vmatpush1.msra.mxu0 0.0
  %910 = vmatprep.subr.mxu0 0.0
  %911 = vmatpush1.msra.mxu0 0.0
  %912 = vmatprep.subr.mxu0 0.0
  %913 = vmatpush1.msra.mxu0 0.0
  %914 = vmatprep.subr.mxu0 0.0
  %915 = vmatpush1.msra.mxu0 0.0
  %916 = vmatprep.subr.mxu0 0.0
  %917 = vmatpush1.msra.mxu0 0.0
  %918 = vmatprep.subr.mxu0 0.0
  %919 = vmatpush1.msra.mxu0 0.0
  %920 = vmatprep.subr.mxu0 0.0
  %921 = vmatpush1.msra.mxu0 0.0
  %922 = vmatprep.subr.mxu0 0.0
  %923 = vmatpush1.msra.mxu0 0.0
  %v924 = vand.u32 %v577, 4294901760
  %925 = vmatprep.subr.mxu0 %v924
  %v926 = vand.u32 %v574, 4294901760
  %927 = vmatpush1.msra.mxu0 %v926
  %928 = vmatprep.subr.mxu0 0.0
  %929 = vmatpush2.msra.mxu0 0.0
  %930 = vmatprep.subr.mxu0 0.0
  %931 = vmatpush2.msra.mxu0 0.0
  %932 = vmatprep.subr.mxu0 0.0
  %933 = vmatpush2.msra.mxu0 0.0
  %934 = vmatprep.subr.mxu0 0.0
  %935 = vmatpush2.msra.mxu0 0.0
  %936 = vmatprep.subr.mxu0 0.0
  %937 = vmatpush2.msra.mxu0 0.0
  %938 = vmatprep.subr.mxu0 0.0
  %939 = vmatpush2.msra.mxu0 0.0
  %940 = vmatprep.subr.mxu0 0.0
  %941 = vmatpush2.msra.mxu0 0.0
  %942 = vmatprep.subr.mxu0 0.0
  %943 = vmatpush2.msra.mxu0 0.0
  %944 = vmatprep.subr.mxu0 0.0
  %945 = vmatpush2.msra.mxu0 0.0
  %946 = vmatprep.subr.mxu0 0.0
  %947 = vmatpush2.msra.mxu0 0.0
  %948 = vmatprep.subr.mxu0 0.0
  %949 = vmatpush2.msra.mxu0 0.0
  %950 = vmatprep.subr.mxu0 0.0
  %951 = vmatpush2.msra.mxu0 0.0
  %952 = vmatprep.subr.mxu0 0.0
  %953 = vmatpush2.msra.mxu0 0.0
  %954 = vmatprep.subr.mxu0 0.0
  %955 = vmatpush2.msra.mxu0 0.0
  %956 = vmatprep.subr.mxu0 0.0
  %957 = vmatpush2.msra.mxu0 0.0
  %958 = vmatprep.subr.mxu0 0.0
  %959 = vmatpush2.msra.mxu0 0.0
  %960 = vmatprep.mubr.f32.mxu0 0.0
  %v961 = vand.u32 %v561, 4294901760
  %v962 = vsub.f32 %v561, %v961
  %v963 = vand.u32 %v962, 4294901760
  %964 = vmatmul.mubr.f32.gmra.mxu0 %v963
  %v965 = vpop.f32.mrf.mxu0
  %v966 = vadd.f32 %v866, %v965
  %v967 = vpop.f32.mrf.mxu0
  %v968 = vadd.f32 %v868, %v967
  %969 = vmatprep.mubr.f32.mxu0 0.0
  %v970 = vand.u32 %v564, 4294901760
  %v971 = vsub.f32 %v564, %v970
  %v972 = vand.u32 %v971, 4294901760
  %973 = vmatmul.mubr.f32.gmra.mxu0 %v972
  %v974 = vpop.f32.mrf.mxu0
  %v975 = vadd.f32 %v874, %v974
  %v976 = vpop.f32.mrf.mxu0
  %v977 = vadd.f32 %v876, %v976
  %978 = vmatprep.mubr.f32.mxu0 0.0
  %v979 = vand.u32 %v567, 4294901760
  %v980 = vsub.f32 %v567, %v979
  %v981 = vand.u32 %v980, 4294901760
  %982 = vmatmul.mubr.f32.gmra.mxu0 %v981
  %v983 = vpop.f32.mrf.mxu0
  %v984 = vadd.f32 %v882, %v983
  %v985 = vpop.f32.mrf.mxu0
  %v986 = vadd.f32 %v884, %v985
  %987 = vmatprep.mubr.f32.mxu0 0.0
  %v988 = vand.u32 %v570, 4294901760
  %v989 = vsub.f32 %v570, %v988
  %v990 = vand.u32 %v989, 4294901760
  %991 = vmatmul.mubr.f32.gmra.mxu0 %v990
  %v992 = vpop.f32.mrf.mxu0
  %v993 = vadd.f32 %v890, %v992
  %v994 = vpop.f32.mrf.mxu0
  %v995 = vadd.f32 %v892, %v994
  %996 = vdwg.mxu0
  %997 = vmatprep.subr.mxu0 0.0
  %998 = vmatpush1.msra.mxu0 0.0
  %999 = vmatprep.subr.mxu0 0.0
  %1000 = vmatpush1.msra.mxu0 0.0
  %1001 = vmatprep.subr.mxu0 0.0
  %1002 = vmatpush1.msra.mxu0 0.0
  %1003 = vmatprep.subr.mxu0 0.0
  %1004 = vmatpush1.msra.mxu0 0.0
  %1005 = vmatprep.subr.mxu0 0.0
  %1006 = vmatpush1.msra.mxu0 0.0
  %1007 = vmatprep.subr.mxu0 0.0
  %1008 = vmatpush1.msra.mxu0 0.0
  %1009 = vmatprep.subr.mxu0 0.0
  %1010 = vmatpush1.msra.mxu0 0.0
  %1011 = vmatprep.subr.mxu0 0.0
  %1012 = vmatpush1.msra.mxu0 0.0
  %1013 = vmatprep.subr.mxu0 0.0
  %1014 = vmatpush1.msra.mxu0 0.0
  %1015 = vmatprep.subr.mxu0 0.0
  %1016 = vmatpush1.msra.mxu0 0.0
  %1017 = vmatprep.subr.mxu0 0.0
  %1018 = vmatpush1.msra.mxu0 0.0
  %1019 = vmatprep.subr.mxu0 0.0
  %1020 = vmatpush1.msra.mxu0 0.0
  %1021 = vmatprep.subr.mxu0 0.0
  %1022 = vmatpush1.msra.mxu0 0.0
  %1023 = vmatprep.subr.mxu0 0.0
  %1024 = vmatpush1.msra.mxu0 0.0
  %1025 = vmatprep.subr.mxu0 0.0
  %1026 = vmatpush1.msra.mxu0 0.0
  %v1027 = vand.u32 %v577, 4294901760
  %v1028 = vsub.f32 %v577, %v1027
  %v1029 = vand.u32 %v1028, 4294901760
  %1030 = vmatprep.subr.mxu0 %v1029
  %v1031 = vand.u32 %v574, 4294901760
  %v1032 = vsub.f32 %v574, %v1031
  %v1033 = vand.u32 %v1032, 4294901760
  %1034 = vmatpush1.msra.mxu0 %v1033
  %1035 = vmatprep.subr.mxu0 0.0
  %1036 = vmatpush2.msra.mxu0 0.0
  %1037 = vmatprep.subr.mxu0 0.0
  %1038 = vmatpush2.msra.mxu0 0.0
  %1039 = vmatprep.subr.mxu0 0.0
  %1040 = vmatpush2.msra.mxu0 0.0
  %1041 = vmatprep.subr.mxu0 0.0
  %1042 = vmatpush2.msra.mxu0 0.0
  %1043 = vmatprep.subr.mxu0 0.0
  %1044 = vmatpush2.msra.mxu0 0.0
  %1045 = vmatprep.subr.mxu0 0.0
  %1046 = vmatpush2.msra.mxu0 0.0
  %1047 = vmatprep.subr.mxu0 0.0
  %1048 = vmatpush2.msra.mxu0 0.0
  %1049 = vmatprep.subr.mxu0 0.0
  %1050 = vmatpush2.msra.mxu0 0.0
  %1051 = vmatprep.subr.mxu0 0.0
  %1052 = vmatpush2.msra.mxu0 0.0
  %1053 = vmatprep.subr.mxu0 0.0
  %1054 = vmatpush2.msra.mxu0 0.0
  %1055 = vmatprep.subr.mxu0 0.0
  %1056 = vmatpush2.msra.mxu0 0.0
  %1057 = vmatprep.subr.mxu0 0.0
  %1058 = vmatpush2.msra.mxu0 0.0
  %1059 = vmatprep.subr.mxu0 0.0
  %1060 = vmatpush2.msra.mxu0 0.0
  %1061 = vmatprep.subr.mxu0 0.0
  %1062 = vmatpush2.msra.mxu0 0.0
  %1063 = vmatprep.subr.mxu0 0.0
  %1064 = vmatpush2.msra.mxu0 0.0
  %1065 = vmatprep.subr.mxu0 0.0
  %1066 = vmatpush2.msra.mxu0 0.0
  %1067 = vmatprep.mubr.f32.mxu0 0.0
  %v1068 = vand.u32 %v561, 4294901760
  %1069 = vmatmul.mubr.f32.gmra.mxu0 %v1068
  %v1070 = vpop.f32.mrf.mxu0
  %v1071 = vadd.f32 %v966, %v1070
  %v1072 = vpop.f32.mrf.mxu0
  %v1073 = vadd.f32 %v968, %v1072
  %1074 = vmatprep.mubr.f32.mxu0 0.0
  %v1075 = vand.u32 %v564, 4294901760
  %1076 = vmatmul.mubr.f32.gmra.mxu0 %v1075
  %v1077 = vpop.f32.mrf.mxu0
  %v1078 = vadd.f32 %v975, %v1077
  %v1079 = vpop.f32.mrf.mxu0
  %v1080 = vadd.f32 %v977, %v1079
  %1081 = vmatprep.mubr.f32.mxu0 0.0
  %v1082 = vand.u32 %v567, 4294901760
  %1083 = vmatmul.mubr.f32.gmra.mxu0 %v1082
  %v1084 = vpop.f32.mrf.mxu0
  %v1085 = vadd.f32 %v984, %v1084
  %v1086 = vpop.f32.mrf.mxu0
  %v1087 = vadd.f32 %v986, %v1086
  %1088 = vmatprep.mubr.f32.mxu0 0.0
  %v1089 = vand.u32 %v570, 4294901760
  %1090 = vmatmul.mubr.f32.gmra.mxu0 %v1089
  %v1091 = vpop.f32.mrf.mxu0
  %v1092 = vadd.f32 %v993, %v1091
  %v1093 = vpop.f32.mrf.mxu0
  %v1094 = vadd.f32 %v995, %v1093
  %1095 = vdwg.mxu0
  %1096 = vmatprep.subr.mxu0 0.0
  %1097 = vmatpush1.msra.mxu0 0.0
  %1098 = vmatprep.subr.mxu0 0.0
  %1099 = vmatpush1.msra.mxu0 0.0
  %1100 = vmatprep.subr.mxu0 0.0
  %1101 = vmatpush1.msra.mxu0 0.0
  %1102 = vmatprep.subr.mxu0 0.0
  %1103 = vmatpush1.msra.mxu0 0.0
  %1104 = vmatprep.subr.mxu0 0.0
  %1105 = vmatpush1.msra.mxu0 0.0
  %1106 = vmatprep.subr.mxu0 0.0
  %1107 = vmatpush1.msra.mxu0 0.0
  %1108 = vmatprep.subr.mxu0 0.0
  %1109 = vmatpush1.msra.mxu0 0.0
  %1110 = vmatprep.subr.mxu0 0.0
  %1111 = vmatpush1.msra.mxu0 0.0
  %1112 = vmatprep.subr.mxu0 0.0
  %1113 = vmatpush1.msra.mxu0 0.0
  %1114 = vmatprep.subr.mxu0 0.0
  %1115 = vmatpush1.msra.mxu0 0.0
  %1116 = vmatprep.subr.mxu0 0.0
  %1117 = vmatpush1.msra.mxu0 0.0
  %1118 = vmatprep.subr.mxu0 0.0
  %1119 = vmatpush1.msra.mxu0 0.0
  %1120 = vmatprep.subr.mxu0 0.0
  %1121 = vmatpush1.msra.mxu0 0.0
  %1122 = vmatprep.subr.mxu0 0.0
  %1123 = vmatpush1.msra.mxu0 0.0
  %1124 = vmatprep.subr.mxu0 0.0
  %1125 = vmatpush1.msra.mxu0 0.0
  %v1126 = vand.u32 %v577, 4294901760
  %1127 = vmatprep.subr.mxu0 %v1126
  %v1128 = vand.u32 %v574, 4294901760
  %1129 = vmatpush1.msra.mxu0 %v1128
  %1130 = vmatprep.subr.mxu0 0.0
  %1131 = vmatpush2.msra.mxu0 0.0
  %1132 = vmatprep.subr.mxu0 0.0
  %1133 = vmatpush2.msra.mxu0 0.0
  %1134 = vmatprep.subr.mxu0 0.0
  %1135 = vmatpush2.msra.mxu0 0.0
  %1136 = vmatprep.subr.mxu0 0.0
  %1137 = vmatpush2.msra.mxu0 0.0
  %1138 = vmatprep.subr.mxu0 0.0
  %1139 = vmatpush2.msra.mxu0 0.0
  %1140 = vmatprep.subr.mxu0 0.0
  %1141 = vmatpush2.msra.mxu0 0.0
  %1142 = vmatprep.subr.mxu0 0.0
  %1143 = vmatpush2.msra.mxu0 0.0
  %1144 = vmatprep.subr.mxu0 0.0
  %1145 = vmatpush2.msra.mxu0 0.0
  %1146 = vmatprep.subr.mxu0 0.0
  %1147 = vmatpush2.msra.mxu0 0.0
  %1148 = vmatprep.subr.mxu0 0.0
  %1149 = vmatpush2.msra.mxu0 0.0
  %1150 = vmatprep.subr.mxu0 0.0
  %1151 = vmatpush2.msra.mxu0 0.0
  %1152 = vmatprep.subr.mxu0 0.0
  %1153 = vmatpush2.msra.mxu0 0.0
  %1154 = vmatprep.subr.mxu0 0.0
  %1155 = vmatpush2.msra.mxu0 0.0
  %1156 = vmatprep.subr.mxu0 0.0
  %1157 = vmatpush2.msra.mxu0 0.0
  %1158 = vmatprep.subr.mxu0 0.0
  %1159 = vmatpush2.msra.mxu0 0.0
  %1160 = vmatprep.subr.mxu0 0.0
  %1161 = vmatpush2.msra.mxu0 0.0
  %1162 = vmatprep.mubr.f32.mxu0 0.0
  %v1163 = vand.u32 %v561, 4294901760
  %1164 = vmatmul.mubr.f32.gmra.mxu0 %v1163
  %v1165 = vpop.f32.mrf.mxu0
  %v1166 = vadd.f32 %v1071, %v1165
  %v1167 = vpop.f32.mrf.mxu0
  %v1168 = vadd.f32 %v1073, %v1167
  %1169 = vmatprep.mubr.f32.mxu0 0.0
  %v1170 = vand.u32 %v564, 4294901760
  %1171 = vmatmul.mubr.f32.gmra.mxu0 %v1170
  %v1172 = vpop.f32.mrf.mxu0
  %v1173 = vadd.f32 %v1078, %v1172
  %v1174 = vpop.f32.mrf.mxu0
  %v1175 = vadd.f32 %v1080, %v1174
  %1176 = vmatprep.mubr.f32.mxu0 0.0
  %v1177 = vand.u32 %v567, 4294901760
  %1178 = vmatmul.mubr.f32.gmra.mxu0 %v1177
  %v1179 = vpop.f32.mrf.mxu0
  %v1180 = vadd.f32 %v1085, %v1179
  %v1181 = vpop.f32.mrf.mxu0
  %v1182 = vadd.f32 %v1087, %v1181
  %1183 = vmatprep.mubr.f32.mxu0 0.0
  %v1184 = vand.u32 %v570, 4294901760
  %1185 = vmatmul.mubr.f32.gmra.mxu0 %v1184
  %v1186 = vpop.f32.mrf.mxu0
  %v1187 = vadd.f32 %v1092, %v1186
  %v1188 = vpop.f32.mrf.mxu0
  %v1189 = vadd.f32 %v1094, %v1188
  %1190 = vdwg.mxu0
  %v1191 = vmul.f32 %v1166, 0.5
  %v1192 = vmul.f32 %v1168, 0.5
  %v1193 = vmul.f32 %v1173, 0.5
  %v1194 = vmul.f32 %v1175, 0.5
  %v1195 = vmul.f32 %v1180, 0.5
  %v1196 = vmul.f32 %v1182, 0.5
  %v1197 = vmul.f32 %v1187, 0.5
  %v1198 = vmul.f32 %v1189, 0.5
  %v1199 = vtanh.pop %v1191
  %v1200 = vtanh.pop %v1192
  %v1201 = vtanh.pop %v1193
  %v1202 = vtanh.pop %v1194
  %v1203 = vtanh.pop %v1195
  %v1204 = vtanh.pop %v1196
  %v1205 = vtanh.pop %v1197
  %v1206 = vtanh.pop %v1198
  %v1207 = vadd.f32 %v1199, 1.0
  %v1208 = vadd.f32 %v1200, 1.0
  %v1209 = vadd.f32 %v1201, 1.0
  %v1210 = vadd.f32 %v1202, 1.0
  %v1211 = vadd.f32 %v1203, 1.0
  %v1212 = vadd.f32 %v1204, 1.0
  %v1213 = vadd.f32 %v1205, 1.0
  %v1214 = vadd.f32 %v1206, 1.0
  %v1215 = vmul.f32 %v1207, 0.5
  %v1216 = vmul.f32 %v1208, 0.5
  %v1217 = vmul.f32 %v1209, 0.5
  %v1218 = vmul.f32 %v1210, 0.5
  %v1219 = vmul.f32 %v1211, 0.5
  %v1220 = vmul.f32 %v1212, 0.5
  %v1221 = vmul.f32 %v1213, 0.5
  %v1222 = vmul.f32 %v1214, 0.5
  %v1223 = vmul.f32 %v1166, %v1215
  %v1224 = vmul.f32 %v1168, %v1216
  %v1225 = vmul.f32 %v1173, %v1217
  %v1226 = vmul.f32 %v1175, %v1218
  %v1227 = vmul.f32 %v1180, %v1219
  %v1228 = vmul.f32 %v1182, %v1220
  %v1229 = vmul.f32 %v1187, %v1221
  %v1230 = vmul.f32 %v1189, %v1222
  %v1231 = vld [vmem:[%s2] sm:$0xff]
  %v1232 = vld [vmem:[%s2 + $0x8] sm:$0x1]
  %v1233 = vld [vmem:[%s3] sm:$0xff]
  %v1234 = vld [vmem:[%s3 + $0x8] sm:$0x1]
  %1236 = vset.pattern.permute.xlu0 0
  %1237 = vperm.xlu0 %1236, %v1233
  %v1238 = vpop.permute.xlu0 %1237
  %1241 = vset.pattern.permute.xlu0 0
  %1242 = vperm.xlu0 %1241, %v1234
  %v1243 = vpop.permute.xlu0 %1242
  %vm1245 = vcmask 261120
  %v1247 = vsel %vm1245, %v1231, 0
  %v1250 = vsel %vm1245, %v1232, 0
  %1252 = vmatprep.subr.mxu0 0.0
  %1253 = vmatpush1.msra.mxu0 0.0
  %1254 = vmatprep.subr.mxu0 0.0
  %1255 = vmatpush1.msra.mxu0 0.0
  %1256 = vmatprep.subr.mxu0 0.0
  %1257 = vmatpush1.msra.mxu0 0.0
  %1258 = vmatprep.subr.mxu0 0.0
  %1259 = vmatpush1.msra.mxu0 0.0
  %1260 = vmatprep.subr.mxu0 0.0
  %1261 = vmatpush1.msra.mxu0 0.0
  %1262 = vmatprep.subr.mxu0 0.0
  %1263 = vmatpush1.msra.mxu0 0.0
  %1264 = vmatprep.subr.mxu0 0.0
  %1265 = vmatpush1.msra.mxu0 0.0
  %1266 = vmatprep.subr.mxu0 0.0
  %1267 = vmatpush1.msra.mxu0 0.0
  %1268 = vmatprep.subr.mxu0 0.0
  %1269 = vmatpush1.msra.mxu0 0.0
  %1270 = vmatprep.subr.mxu0 0.0
  %1271 = vmatpush1.msra.mxu0 0.0
  %1272 = vmatprep.subr.mxu0 0.0
  %1273 = vmatpush1.msra.mxu0 0.0
  %1274 = vmatprep.subr.mxu0 0.0
  %1275 = vmatpush1.msra.mxu0 0.0
  %v1276 = vand.u32 %v1230, 4294901760
  %1277 = vmatprep.subr.mxu0 %v1276
  %v1278 = vand.u32 %v1229, 4294901760
  %1279 = vmatpush1.msra.mxu0 %v1278
  %v1280 = vand.u32 %v1228, 4294901760
  %1281 = vmatprep.subr.mxu0 %v1280
  %v1282 = vand.u32 %v1227, 4294901760
  %1283 = vmatpush1.msra.mxu0 %v1282
  %v1284 = vand.u32 %v1226, 4294901760
  %1285 = vmatprep.subr.mxu0 %v1284
  %v1286 = vand.u32 %v1225, 4294901760
  %1287 = vmatpush1.msra.mxu0 %v1286
  %v1288 = vand.u32 %v1224, 4294901760
  %1289 = vmatprep.subr.mxu0 %v1288
  %v1290 = vand.u32 %v1223, 4294901760
  %1291 = vmatpush1.msra.mxu0 %v1290
  %1292 = vmatprep.subr.mxu0 0.0
  %1293 = vmatpush2.msra.mxu0 0.0
  %1294 = vmatprep.subr.mxu0 0.0
  %1295 = vmatpush2.msra.mxu0 0.0
  %1296 = vmatprep.subr.mxu0 0.0
  %1297 = vmatpush2.msra.mxu0 0.0
  %1298 = vmatprep.subr.mxu0 0.0
  %1299 = vmatpush2.msra.mxu0 0.0
  %1300 = vmatprep.subr.mxu0 0.0
  %1301 = vmatpush2.msra.mxu0 0.0
  %1302 = vmatprep.subr.mxu0 0.0
  %1303 = vmatpush2.msra.mxu0 0.0
  %1304 = vmatprep.subr.mxu0 0.0
  %1305 = vmatpush2.msra.mxu0 0.0
  %1306 = vmatprep.subr.mxu0 0.0
  %1307 = vmatpush2.msra.mxu0 0.0
  %1308 = vmatprep.subr.mxu0 0.0
  %1309 = vmatpush2.msra.mxu0 0.0
  %1310 = vmatprep.subr.mxu0 0.0
  %1311 = vmatpush2.msra.mxu0 0.0
  %1312 = vmatprep.subr.mxu0 0.0
  %1313 = vmatpush2.msra.mxu0 0.0
  %1314 = vmatprep.subr.mxu0 0.0
  %1315 = vmatpush2.msra.mxu0 0.0
  %1316 = vmatprep.subr.mxu0 0.0
  %1317 = vmatpush2.msra.mxu0 0.0
  %1318 = vmatprep.subr.mxu0 0.0
  %1319 = vmatpush2.msra.mxu0 0.0
  %1320 = vmatprep.subr.mxu0 0.0
  %1321 = vmatpush2.msra.mxu0 0.0
  %1322 = vmatprep.subr.mxu0 0.0
  %1323 = vmatpush2.msra.mxu0 0.0
  %1324 = vmatprep.mubr.f32.mxu0 0.0
  %v1325 = vand.u32 %v1247, 4294901760
  %v1326 = vsub.f32 %v1247, %v1325
  %v1327 = vand.u32 %v1326, 4294901760
  %v1328 = vsub.f32 %v1326, %v1327
  %v1329 = vand.u32 %v1328, 4294901760
  %1330 = vmatmul.mubr.f32.gmra.mxu0 %v1329
  %v1331 = vpop.f32.mrf.mxu0
  %v1332 = vadd.f32 %v1238, %v1331
  %v1333 = vpop.f32.mrf.mxu0
  %v1334 = vadd.f32 %v1238, %v1333
  %1335 = vmatprep.mubr.f32.mxu0 0.0
  %v1336 = vand.u32 %v1250, 4294901760
  %v1337 = vsub.f32 %v1250, %v1336
  %v1338 = vand.u32 %v1337, 4294901760
  %v1339 = vsub.f32 %v1337, %v1338
  %v1340 = vand.u32 %v1339, 4294901760
  %1341 = vmatmul.mubr.f32.gmra.mxu0 %v1340
  %v1342 = vpop.f32.mrf.mxu0
  %v1343 = vadd.f32 %v1243, %v1342
  %v1344 = vpop.f32.mrf.mxu0
  %v1345 = vadd.f32 %v1243, %v1344
  %1346 = vdwg.mxu0
  %1347 = vmatprep.subr.mxu0 0.0
  %1348 = vmatpush1.msra.mxu0 0.0
  %1349 = vmatprep.subr.mxu0 0.0
  %1350 = vmatpush1.msra.mxu0 0.0
  %1351 = vmatprep.subr.mxu0 0.0
  %1352 = vmatpush1.msra.mxu0 0.0
  %1353 = vmatprep.subr.mxu0 0.0
  %1354 = vmatpush1.msra.mxu0 0.0
  %1355 = vmatprep.subr.mxu0 0.0
  %1356 = vmatpush1.msra.mxu0 0.0
  %1357 = vmatprep.subr.mxu0 0.0
  %1358 = vmatpush1.msra.mxu0 0.0
  %1359 = vmatprep.subr.mxu0 0.0
  %1360 = vmatpush1.msra.mxu0 0.0
  %1361 = vmatprep.subr.mxu0 0.0
  %1362 = vmatpush1.msra.mxu0 0.0
  %1363 = vmatprep.subr.mxu0 0.0
  %1364 = vmatpush1.msra.mxu0 0.0
  %1365 = vmatprep.subr.mxu0 0.0
  %1366 = vmatpush1.msra.mxu0 0.0
  %1367 = vmatprep.subr.mxu0 0.0
  %1368 = vmatpush1.msra.mxu0 0.0
  %1369 = vmatprep.subr.mxu0 0.0
  %1370 = vmatpush1.msra.mxu0 0.0
  %v1371 = vand.u32 %v1230, 4294901760
  %v1372 = vsub.f32 %v1230, %v1371
  %v1373 = vand.u32 %v1372, 4294901760
  %v1374 = vsub.f32 %v1372, %v1373
  %v1375 = vand.u32 %v1374, 4294901760
  %1376 = vmatprep.subr.mxu0 %v1375
  %v1377 = vand.u32 %v1229, 4294901760
  %v1378 = vsub.f32 %v1229, %v1377
  %v1379 = vand.u32 %v1378, 4294901760
  %v1380 = vsub.f32 %v1378, %v1379
  %v1381 = vand.u32 %v1380, 4294901760
  %1382 = vmatpush1.msra.mxu0 %v1381
  %v1383 = vand.u32 %v1228, 4294901760
  %v1384 = vsub.f32 %v1228, %v1383
  %v1385 = vand.u32 %v1384, 4294901760
  %v1386 = vsub.f32 %v1384, %v1385
  %v1387 = vand.u32 %v1386, 4294901760
  %1388 = vmatprep.subr.mxu0 %v1387
  %v1389 = vand.u32 %v1227, 4294901760
  %v1390 = vsub.f32 %v1227, %v1389
  %v1391 = vand.u32 %v1390, 4294901760
  %v1392 = vsub.f32 %v1390, %v1391
  %v1393 = vand.u32 %v1392, 4294901760
  %1394 = vmatpush1.msra.mxu0 %v1393
  %v1395 = vand.u32 %v1226, 4294901760
  %v1396 = vsub.f32 %v1226, %v1395
  %v1397 = vand.u32 %v1396, 4294901760
  %v1398 = vsub.f32 %v1396, %v1397
  %v1399 = vand.u32 %v1398, 4294901760
  %1400 = vmatprep.subr.mxu0 %v1399
  %v1401 = vand.u32 %v1225, 4294901760
  %v1402 = vsub.f32 %v1225, %v1401
  %v1403 = vand.u32 %v1402, 4294901760
  %v1404 = vsub.f32 %v1402, %v1403
  %v1405 = vand.u32 %v1404, 4294901760
  %1406 = vmatpush1.msra.mxu0 %v1405
  %v1407 = vand.u32 %v1224, 4294901760
  %v1408 = vsub.f32 %v1224, %v1407
  %v1409 = vand.u32 %v1408, 4294901760
  %v1410 = vsub.f32 %v1408, %v1409
  %v1411 = vand.u32 %v1410, 4294901760
  %1412 = vmatprep.subr.mxu0 %v1411
  %v1413 = vand.u32 %v1223, 4294901760
  %v1414 = vsub.f32 %v1223, %v1413
  %v1415 = vand.u32 %v1414, 4294901760
  %v1416 = vsub.f32 %v1414, %v1415
  %v1417 = vand.u32 %v1416, 4294901760
  %1418 = vmatpush1.msra.mxu0 %v1417
  %1419 = vmatprep.subr.mxu0 0.0
  %1420 = vmatpush2.msra.mxu0 0.0
  %1421 = vmatprep.subr.mxu0 0.0
  %1422 = vmatpush2.msra.mxu0 0.0
  %1423 = vmatprep.subr.mxu0 0.0
  %1424 = vmatpush2.msra.mxu0 0.0
  %1425 = vmatprep.subr.mxu0 0.0
  %1426 = vmatpush2.msra.mxu0 0.0
  %1427 = vmatprep.subr.mxu0 0.0
  %1428 = vmatpush2.msra.mxu0 0.0
  %1429 = vmatprep.subr.mxu0 0.0
  %1430 = vmatpush2.msra.mxu0 0.0
  %1431 = vmatprep.subr.mxu0 0.0
  %1432 = vmatpush2.msra.mxu0 0.0
  %1433 = vmatprep.subr.mxu0 0.0
  %1434 = vmatpush2.msra.mxu0 0.0
  %1435 = vmatprep.subr.mxu0 0.0
  %1436 = vmatpush2.msra.mxu0 0.0
  %1437 = vmatprep.subr.mxu0 0.0
  %1438 = vmatpush2.msra.mxu0 0.0
  %1439 = vmatprep.subr.mxu0 0.0
  %1440 = vmatpush2.msra.mxu0 0.0
  %1441 = vmatprep.subr.mxu0 0.0
  %1442 = vmatpush2.msra.mxu0 0.0
  %1443 = vmatprep.subr.mxu0 0.0
  %1444 = vmatpush2.msra.mxu0 0.0
  %1445 = vmatprep.subr.mxu0 0.0
  %1446 = vmatpush2.msra.mxu0 0.0
  %1447 = vmatprep.subr.mxu0 0.0
  %1448 = vmatpush2.msra.mxu0 0.0
  %1449 = vmatprep.subr.mxu0 0.0
  %1450 = vmatpush2.msra.mxu0 0.0
  %1451 = vmatprep.mubr.f32.mxu0 0.0
  %v1452 = vand.u32 %v1247, 4294901760
  %1453 = vmatmul.mubr.f32.gmra.mxu0 %v1452
  %v1454 = vpop.f32.mrf.mxu0
  %v1455 = vadd.f32 %v1332, %v1454
  %v1456 = vpop.f32.mrf.mxu0
  %v1457 = vadd.f32 %v1334, %v1456
  %1458 = vmatprep.mubr.f32.mxu0 0.0
  %v1459 = vand.u32 %v1250, 4294901760
  %1460 = vmatmul.mubr.f32.gmra.mxu0 %v1459
  %v1461 = vpop.f32.mrf.mxu0
  %v1462 = vadd.f32 %v1343, %v1461
  %v1463 = vpop.f32.mrf.mxu0
  %v1464 = vadd.f32 %v1345, %v1463
  %1465 = vdwg.mxu0
  %1466 = vmatprep.subr.mxu0 0.0
  %1467 = vmatpush1.msra.mxu0 0.0
  %1468 = vmatprep.subr.mxu0 0.0
  %1469 = vmatpush1.msra.mxu0 0.0
  %1470 = vmatprep.subr.mxu0 0.0
  %1471 = vmatpush1.msra.mxu0 0.0
  %1472 = vmatprep.subr.mxu0 0.0
  %1473 = vmatpush1.msra.mxu0 0.0
  %1474 = vmatprep.subr.mxu0 0.0
  %1475 = vmatpush1.msra.mxu0 0.0
  %1476 = vmatprep.subr.mxu0 0.0
  %1477 = vmatpush1.msra.mxu0 0.0
  %1478 = vmatprep.subr.mxu0 0.0
  %1479 = vmatpush1.msra.mxu0 0.0
  %1480 = vmatprep.subr.mxu0 0.0
  %1481 = vmatpush1.msra.mxu0 0.0
  %1482 = vmatprep.subr.mxu0 0.0
  %1483 = vmatpush1.msra.mxu0 0.0
  %1484 = vmatprep.subr.mxu0 0.0
  %1485 = vmatpush1.msra.mxu0 0.0
  %1486 = vmatprep.subr.mxu0 0.0
  %1487 = vmatpush1.msra.mxu0 0.0
  %1488 = vmatprep.subr.mxu0 0.0
  %1489 = vmatpush1.msra.mxu0 0.0
  %v1490 = vand.u32 %v1230, 4294901760
  %v1491 = vsub.f32 %v1230, %v1490
  %1492 = vmatprep.subr.mxu0 %v1491
  %v1493 = vand.u32 %v1229, 4294901760
  %v1494 = vsub.f32 %v1229, %v1493
  %1495 = vmatpush1.msra.mxu0 %v1494
  %v1496 = vand.u32 %v1228, 4294901760
  %v1497 = vsub.f32 %v1228, %v1496
  %1498 = vmatprep.subr.mxu0 %v1497
  %v1499 = vand.u32 %v1227, 4294901760
  %v1500 = vsub.f32 %v1227, %v1499
  %1501 = vmatpush1.msra.mxu0 %v1500
  %v1502 = vand.u32 %v1226, 4294901760
  %v1503 = vsub.f32 %v1226, %v1502
  %1504 = vmatprep.subr.mxu0 %v1503
  %v1505 = vand.u32 %v1225, 4294901760
  %v1506 = vsub.f32 %v1225, %v1505
  %1507 = vmatpush1.msra.mxu0 %v1506
  %v1508 = vand.u32 %v1224, 4294901760
  %v1509 = vsub.f32 %v1224, %v1508
  %1510 = vmatprep.subr.mxu0 %v1509
  %v1511 = vand.u32 %v1223, 4294901760
  %v1512 = vsub.f32 %v1223, %v1511
  %1513 = vmatpush1.msra.mxu0 %v1512
  %1514 = vmatprep.subr.mxu0 0.0
  %1515 = vmatpush2.msra.mxu0 0.0
  %1516 = vmatprep.subr.mxu0 0.0
  %1517 = vmatpush2.msra.mxu0 0.0
  %1518 = vmatprep.subr.mxu0 0.0
  %1519 = vmatpush2.msra.mxu0 0.0
  %1520 = vmatprep.subr.mxu0 0.0
  %1521 = vmatpush2.msra.mxu0 0.0
  %1522 = vmatprep.subr.mxu0 0.0
  %1523 = vmatpush2.msra.mxu0 0.0
  %1524 = vmatprep.subr.mxu0 0.0
  %1525 = vmatpush2.msra.mxu0 0.0
  %1526 = vmatprep.subr.mxu0 0.0
  %1527 = vmatpush2.msra.mxu0 0.0
  %1528 = vmatprep.subr.mxu0 0.0
  %1529 = vmatpush2.msra.mxu0 0.0
  %1530 = vmatprep.subr.mxu0 0.0
  %1531 = vmatpush2.msra.mxu0 0.0
  %1532 = vmatprep.subr.mxu0 0.0
  %1533 = vmatpush2.msra.mxu0 0.0
  %1534 = vmatprep.subr.mxu0 0.0
  %1535 = vmatpush2.msra.mxu0 0.0
  %1536 = vmatprep.subr.mxu0 0.0
  %1537 = vmatpush2.msra.mxu0 0.0
  %1538 = vmatprep.subr.mxu0 0.0
  %1539 = vmatpush2.msra.mxu0 0.0
  %1540 = vmatprep.subr.mxu0 0.0
  %1541 = vmatpush2.msra.mxu0 0.0
  %1542 = vmatprep.subr.mxu0 0.0
  %1543 = vmatpush2.msra.mxu0 0.0
  %1544 = vmatprep.subr.mxu0 0.0
  %1545 = vmatpush2.msra.mxu0 0.0
  %1546 = vmatprep.mubr.f32.mxu0 0.0
  %v1547 = vand.u32 %v1247, 4294901760
  %v1548 = vsub.f32 %v1247, %v1547
  %1549 = vmatmul.mubr.f32.gmra.mxu0 %v1548
  %v1550 = vpop.f32.mrf.mxu0
  %v1551 = vadd.f32 %v1455, %v1550
  %v1552 = vpop.f32.mrf.mxu0
  %v1553 = vadd.f32 %v1457, %v1552
  %1554 = vmatprep.mubr.f32.mxu0 0.0
  %v1555 = vand.u32 %v1250, 4294901760
  %v1556 = vsub.f32 %v1250, %v1555
  %1557 = vmatmul.mubr.f32.gmra.mxu0 %v1556
  %v1558 = vpop.f32.mrf.mxu0
  %v1559 = vadd.f32 %v1462, %v1558
  %v1560 = vpop.f32.mrf.mxu0
  %v1561 = vadd.f32 %v1464, %v1560
  %1562 = vdwg.mxu0
  %1563 = vmatprep.subr.mxu0 0.0
  %1564 = vmatpush1.msra.mxu0 0.0
  %1565 = vmatprep.subr.mxu0 0.0
  %1566 = vmatpush1.msra.mxu0 0.0
  %1567 = vmatprep.subr.mxu0 0.0
  %1568 = vmatpush1.msra.mxu0 0.0
  %1569 = vmatprep.subr.mxu0 0.0
  %1570 = vmatpush1.msra.mxu0 0.0
  %1571 = vmatprep.subr.mxu0 0.0
  %1572 = vmatpush1.msra.mxu0 0.0
  %1573 = vmatprep.subr.mxu0 0.0
  %1574 = vmatpush1.msra.mxu0 0.0
  %1575 = vmatprep.subr.mxu0 0.0
  %1576 = vmatpush1.msra.mxu0 0.0
  %1577 = vmatprep.subr.mxu0 0.0
  %1578 = vmatpush1.msra.mxu0 0.0
  %1579 = vmatprep.subr.mxu0 0.0
  %1580 = vmatpush1.msra.mxu0 0.0
  %1581 = vmatprep.subr.mxu0 0.0
  %1582 = vmatpush1.msra.mxu0 0.0
  %1583 = vmatprep.subr.mxu0 0.0
  %1584 = vmatpush1.msra.mxu0 0.0
  %1585 = vmatprep.subr.mxu0 0.0
  %1586 = vmatpush1.msra.mxu0 0.0
  %v1587 = vand.u32 %v1230, 4294901760
  %1588 = vmatprep.subr.mxu0 %v1587
  %v1589 = vand.u32 %v1229, 4294901760
  %1590 = vmatpush1.msra.mxu0 %v1589
  %v1591 = vand.u32 %v1228, 4294901760
  %1592 = vmatprep.subr.mxu0 %v1591
  %v1593 = vand.u32 %v1227, 4294901760
  %1594 = vmatpush1.msra.mxu0 %v1593
  %v1595 = vand.u32 %v1226, 4294901760
  %1596 = vmatprep.subr.mxu0 %v1595
  %v1597 = vand.u32 %v1225, 4294901760
  %1598 = vmatpush1.msra.mxu0 %v1597
  %v1599 = vand.u32 %v1224, 4294901760
  %1600 = vmatprep.subr.mxu0 %v1599
  %v1601 = vand.u32 %v1223, 4294901760
  %1602 = vmatpush1.msra.mxu0 %v1601
  %1603 = vmatprep.subr.mxu0 0.0
  %1604 = vmatpush2.msra.mxu0 0.0
  %1605 = vmatprep.subr.mxu0 0.0
  %1606 = vmatpush2.msra.mxu0 0.0
  %1607 = vmatprep.subr.mxu0 0.0
  %1608 = vmatpush2.msra.mxu0 0.0
  %1609 = vmatprep.subr.mxu0 0.0
  %1610 = vmatpush2.msra.mxu0 0.0
  %1611 = vmatprep.subr.mxu0 0.0
  %1612 = vmatpush2.msra.mxu0 0.0
  %1613 = vmatprep.subr.mxu0 0.0
  %1614 = vmatpush2.msra.mxu0 0.0
  %1615 = vmatprep.subr.mxu0 0.0
  %1616 = vmatpush2.msra.mxu0 0.0
  %1617 = vmatprep.subr.mxu0 0.0
  %1618 = vmatpush2.msra.mxu0 0.0
  %1619 = vmatprep.subr.mxu0 0.0
  %1620 = vmatpush2.msra.mxu0 0.0
  %1621 = vmatprep.subr.mxu0 0.0
  %1622 = vmatpush2.msra.mxu0 0.0
  %1623 = vmatprep.subr.mxu0 0.0
  %1624 = vmatpush2.msra.mxu0 0.0
  %1625 = vmatprep.subr.mxu0 0.0
  %1626 = vmatpush2.msra.mxu0 0.0
  %1627 = vmatprep.subr.mxu0 0.0
  %1628 = vmatpush2.msra.mxu0 0.0
  %1629 = vmatprep.subr.mxu0 0.0
  %1630 = vmatpush2.msra.mxu0 0.0
  %1631 = vmatprep.subr.mxu0 0.0
  %1632 = vmatpush2.msra.mxu0 0.0
  %1633 = vmatprep.subr.mxu0 0.0
  %1634 = vmatpush2.msra.mxu0 0.0
  %1635 = vmatprep.mubr.f32.mxu0 0.0
  %v1636 = vand.u32 %v1247, 4294901760
  %v1637 = vsub.f32 %v1247, %v1636
  %v1638 = vand.u32 %v1637, 4294901760
  %1639 = vmatmul.mubr.f32.gmra.mxu0 %v1638
  %v1640 = vpop.f32.mrf.mxu0
  %v1641 = vadd.f32 %v1551, %v1640
  %v1642 = vpop.f32.mrf.mxu0
  %v1643 = vadd.f32 %v1553, %v1642
  %1644 = vmatprep.mubr.f32.mxu0 0.0
  %v1645 = vand.u32 %v1250, 4294901760
  %v1646 = vsub.f32 %v1250, %v1645
  %v1647 = vand.u32 %v1646, 4294901760
  %1648 = vmatmul.mubr.f32.gmra.mxu0 %v1647
  %v1649 = vpop.f32.mrf.mxu0
  %v1650 = vadd.f32 %v1559, %v1649
  %v1651 = vpop.f32.mrf.mxu0
  %v1652 = vadd.f32 %v1561, %v1651
  %1653 = vdwg.mxu0
  %1654 = vmatprep.subr.mxu0 0.0
  %1655 = vmatpush1.msra.mxu0 0.0
  %1656 = vmatprep.subr.mxu0 0.0
  %1657 = vmatpush1.msra.mxu0 0.0
  %1658 = vmatprep.subr.mxu0 0.0
  %1659 = vmatpush1.msra.mxu0 0.0
  %1660 = vmatprep.subr.mxu0 0.0
  %1661 = vmatpush1.msra.mxu0 0.0
  %1662 = vmatprep.subr.mxu0 0.0
  %1663 = vmatpush1.msra.mxu0 0.0
  %1664 = vmatprep.subr.mxu0 0.0
  %1665 = vmatpush1.msra.mxu0 0.0
  %1666 = vmatprep.subr.mxu0 0.0
  %1667 = vmatpush1.msra.mxu0 0.0
  %1668 = vmatprep.subr.mxu0 0.0
  %1669 = vmatpush1.msra.mxu0 0.0
  %1670 = vmatprep.subr.mxu0 0.0
  %1671 = vmatpush1.msra.mxu0 0.0
  %1672 = vmatprep.subr.mxu0 0.0
  %1673 = vmatpush1.msra.mxu0 0.0
  %1674 = vmatprep.subr.mxu0 0.0
  %1675 = vmatpush1.msra.mxu0 0.0
  %1676 = vmatprep.subr.mxu0 0.0
  %1677 = vmatpush1.msra.mxu0 0.0
  %v1678 = vand.u32 %v1230, 4294901760
  %v1679 = vsub.f32 %v1230, %v1678
  %v1680 = vand.u32 %v1679, 4294901760
  %1681 = vmatprep.subr.mxu0 %v1680
  %v1682 = vand.u32 %v1229, 4294901760
  %v1683 = vsub.f32 %v1229, %v1682
  %v1684 = vand.u32 %v1683, 4294901760
  %1685 = vmatpush1.msra.mxu0 %v1684
  %v1686 = vand.u32 %v1228, 4294901760
  %v1687 = vsub.f32 %v1228, %v1686
  %v1688 = vand.u32 %v1687, 4294901760
  %1689 = vmatprep.subr.mxu0 %v1688
  %v1690 = vand.u32 %v1227, 4294901760
  %v1691 = vsub.f32 %v1227, %v1690
  %v1692 = vand.u32 %v1691, 4294901760
  %1693 = vmatpush1.msra.mxu0 %v1692
  %v1694 = vand.u32 %v1226, 4294901760
  %v1695 = vsub.f32 %v1226, %v1694
  %v1696 = vand.u32 %v1695, 4294901760
  %1697 = vmatprep.subr.mxu0 %v1696
  %v1698 = vand.u32 %v1225, 4294901760
  %v1699 = vsub.f32 %v1225, %v1698
  %v1700 = vand.u32 %v1699, 4294901760
  %1701 = vmatpush1.msra.mxu0 %v1700
  %v1702 = vand.u32 %v1224, 4294901760
  %v1703 = vsub.f32 %v1224, %v1702
  %v1704 = vand.u32 %v1703, 4294901760
  %1705 = vmatprep.subr.mxu0 %v1704
  %v1706 = vand.u32 %v1223, 4294901760
  %v1707 = vsub.f32 %v1223, %v1706
  %v1708 = vand.u32 %v1707, 4294901760
  %1709 = vmatpush1.msra.mxu0 %v1708
  %1710 = vmatprep.subr.mxu0 0.0
  %1711 = vmatpush2.msra.mxu0 0.0
  %1712 = vmatprep.subr.mxu0 0.0
  %1713 = vmatpush2.msra.mxu0 0.0
  %1714 = vmatprep.subr.mxu0 0.0
  %1715 = vmatpush2.msra.mxu0 0.0
  %1716 = vmatprep.subr.mxu0 0.0
  %1717 = vmatpush2.msra.mxu0 0.0
  %1718 = vmatprep.subr.mxu0 0.0
  %1719 = vmatpush2.msra.mxu0 0.0
  %1720 = vmatprep.subr.mxu0 0.0
  %1721 = vmatpush2.msra.mxu0 0.0
  %1722 = vmatprep.subr.mxu0 0.0
  %1723 = vmatpush2.msra.mxu0 0.0
  %1724 = vmatprep.subr.mxu0 0.0
  %1725 = vmatpush2.msra.mxu0 0.0
  %1726 = vmatprep.subr.mxu0 0.0
  %1727 = vmatpush2.msra.mxu0 0.0
  %1728 = vmatprep.subr.mxu0 0.0
  %1729 = vmatpush2.msra.mxu0 0.0
  %1730 = vmatprep.subr.mxu0 0.0
  %1731 = vmatpush2.msra.mxu0 0.0
  %1732 = vmatprep.subr.mxu0 0.0
  %1733 = vmatpush2.msra.mxu0 0.0
  %1734 = vmatprep.subr.mxu0 0.0
  %1735 = vmatpush2.msra.mxu0 0.0
  %1736 = vmatprep.subr.mxu0 0.0
  %1737 = vmatpush2.msra.mxu0 0.0
  %1738 = vmatprep.subr.mxu0 0.0
  %1739 = vmatpush2.msra.mxu0 0.0
  %1740 = vmatprep.subr.mxu0 0.0
  %1741 = vmatpush2.msra.mxu0 0.0
  %1742 = vmatprep.mubr.f32.mxu0 0.0
  %v1743 = vand.u32 %v1247, 4294901760
  %1744 = vmatmul.mubr.f32.gmra.mxu0 %v1743
  %v1745 = vpop.f32.mrf.mxu0
  %v1746 = vadd.f32 %v1641, %v1745
  %v1747 = vpop.f32.mrf.mxu0
  %v1748 = vadd.f32 %v1643, %v1747
  %1749 = vmatprep.mubr.f32.mxu0 0.0
  %v1750 = vand.u32 %v1250, 4294901760
  %1751 = vmatmul.mubr.f32.gmra.mxu0 %v1750
  %v1752 = vpop.f32.mrf.mxu0
  %v1753 = vadd.f32 %v1650, %v1752
  %v1754 = vpop.f32.mrf.mxu0
  %v1755 = vadd.f32 %v1652, %v1754
  %1756 = vdwg.mxu0
  %1757 = vmatprep.subr.mxu0 0.0
  %1758 = vmatpush1.msra.mxu0 0.0
  %1759 = vmatprep.subr.mxu0 0.0
  %1760 = vmatpush1.msra.mxu0 0.0
  %1761 = vmatprep.subr.mxu0 0.0
  %1762 = vmatpush1.msra.mxu0 0.0
  %1763 = vmatprep.subr.mxu0 0.0
  %1764 = vmatpush1.msra.mxu0 0.0
  %1765 = vmatprep.subr.mxu0 0.0
  %1766 = vmatpush1.msra.mxu0 0.0
  %1767 = vmatprep.subr.mxu0 0.0
  %1768 = vmatpush1.msra.mxu0 0.0
  %1769 = vmatprep.subr.mxu0 0.0
  %1770 = vmatpush1.msra.mxu0 0.0
  %1771 = vmatprep.subr.mxu0 0.0
  %1772 = vmatpush1.msra.mxu0 0.0
  %1773 = vmatprep.subr.mxu0 0.0
  %1774 = vmatpush1.msra.mxu0 0.0
  %1775 = vmatprep.subr.mxu0 0.0
  %1776 = vmatpush1.msra.mxu0 0.0
  %1777 = vmatprep.subr.mxu0 0.0
  %1778 = vmatpush1.msra.mxu0 0.0
  %1779 = vmatprep.subr.mxu0 0.0
  %1780 = vmatpush1.msra.mxu0 0.0
  %v1781 = vand.u32 %v1230, 4294901760
  %1782 = vmatprep.subr.mxu0 %v1781
  %v1783 = vand.u32 %v1229, 4294901760
  %1784 = vmatpush1.msra.mxu0 %v1783
  %v1785 = vand.u32 %v1228, 4294901760
  %1786 = vmatprep.subr.mxu0 %v1785
  %v1787 = vand.u32 %v1227, 4294901760
  %1788 = vmatpush1.msra.mxu0 %v1787
  %v1789 = vand.u32 %v1226, 4294901760
  %1790 = vmatprep.subr.mxu0 %v1789
  %v1791 = vand.u32 %v1225, 4294901760
  %1792 = vmatpush1.msra.mxu0 %v1791
  %v1793 = vand.u32 %v1224, 4294901760
  %1794 = vmatprep.subr.mxu0 %v1793
  %v1795 = vand.u32 %v1223, 4294901760
  %1796 = vmatpush1.msra.mxu0 %v1795
  %1797 = vmatprep.subr.mxu0 0.0
  %1798 = vmatpush2.msra.mxu0 0.0
  %1799 = vmatprep.subr.mxu0 0.0
  %1800 = vmatpush2.msra.mxu0 0.0
  %1801 = vmatprep.subr.mxu0 0.0
  %1802 = vmatpush2.msra.mxu0 0.0
  %1803 = vmatprep.subr.mxu0 0.0
  %1804 = vmatpush2.msra.mxu0 0.0
  %1805 = vmatprep.subr.mxu0 0.0
  %1806 = vmatpush2.msra.mxu0 0.0
  %1807 = vmatprep.subr.mxu0 0.0
  %1808 = vmatpush2.msra.mxu0 0.0
  %1809 = vmatprep.subr.mxu0 0.0
  %1810 = vmatpush2.msra.mxu0 0.0
  %1811 = vmatprep.subr.mxu0 0.0
  %1812 = vmatpush2.msra.mxu0 0.0
  %1813 = vmatprep.subr.mxu0 0.0
  %1814 = vmatpush2.msra.mxu0 0.0
  %1815 = vmatprep.subr.mxu0 0.0
  %1816 = vmatpush2.msra.mxu0 0.0
  %1817 = vmatprep.subr.mxu0 0.0
  %1818 = vmatpush2.msra.mxu0 0.0
  %1819 = vmatprep.subr.mxu0 0.0
  %1820 = vmatpush2.msra.mxu0 0.0
  %1821 = vmatprep.subr.mxu0 0.0
  %1822 = vmatpush2.msra.mxu0 0.0
  %1823 = vmatprep.subr.mxu0 0.0
  %1824 = vmatpush2.msra.mxu0 0.0
  %1825 = vmatprep.subr.mxu0 0.0
  %1826 = vmatpush2.msra.mxu0 0.0
  %1827 = vmatprep.subr.mxu0 0.0
  %1828 = vmatpush2.msra.mxu0 0.0
  %1829 = vmatprep.mubr.f32.mxu0 0.0
  %v1830 = vand.u32 %v1247, 4294901760
  %1831 = vmatmul.mubr.f32.gmra.mxu0 %v1830
  %v1832 = vpop.f32.mrf.mxu0
  %v1833 = vadd.f32 %v1746, %v1832
  %v1834 = vpop.f32.mrf.mxu0
  %v1835 = vadd.f32 %v1748, %v1834
  %1836 = vmatprep.mubr.f32.mxu0 0.0
  %v1837 = vand.u32 %v1250, 4294901760
  %1838 = vmatmul.mubr.f32.gmra.mxu0 %v1837
  %v1839 = vpop.f32.mrf.mxu0
  %v1840 = vadd.f32 %v1753, %v1839
  %v1841 = vpop.f32.mrf.mxu0
  %v1842 = vadd.f32 %v1755, %v1841
  %1843 = vdwg.mxu0
  %v1844 = vmul.f32 %v1833, %v36
  %v1845 = vmul.f32 %v1835, %v37
  %v1846 = vmul.f32 %v1840, %v38
  %v1847 = vmul.f32 %v1842, %v39
  %v1848 = vsel %vm49, %v1846, 0.0
  %v1849 = vadd.f32 %v1844, %v1848
  %v1850 = vrot.slane %v1849, 4
  %v1851 = vadd.f32 %v1849, %v1850
  %v1852 = vrot.slane %v1851, 2
  %v1853 = vadd.f32 %v1851, %v1852
  %v1854 = vrot.slane %v1853, 1
  %v1855 = vadd.f32 %v1853, %v1854
  %v1856 = vsel %vm49, %v1847, 0.0
  %v1857 = vadd.f32 %v1845, %v1856
  %v1858 = vrot.slane %v1857, 4
  %v1859 = vadd.f32 %v1857, %v1858
  %v1860 = vrot.slane %v1859, 2
  %v1861 = vadd.f32 %v1859, %v1860
  %v1862 = vrot.slane %v1861, 1
  %v1863 = vadd.f32 %v1861, %v1862
  %v1864 = vmul.f32 %v1855, %v36
  %v1865 = vmul.f32 %v1863, %v37
  %v1868 = vcombine.low %v1864, %v1865
  %v1870 = vunpack.c.l.s4 1966171168
  %v1871 = vunpack.c.0.s8 %v1870
  %v1872 = vlaneseq
  %v1873 = vshrl.u32 %v1872, 7
  %v1874 = vsub.s32 %v1871, %v1873
  %v1875 = vrot.slane %v1868, %v1874
  %v1877 = vunpack.c.l.s4 1966171168
  %v1878 = vunpack.c.0.s8 %v1877
  %v1879 = vlaneseq
  %v1880 = vshrl.u32 %v1879, 7
  %v1881 = vsub.s32 %v1878, %v1880
  %v1882 = vrot.slane %v1875, %v1881
  %v1884 = vlaneseq
  %vm1885 = vcmp.ge.s32.totalorder %v1884, 0
  %vm1886 = vcmp.lt.s32.totalorder %v1884, 256
  %vm1887 = vmand %vm1885, %vm1886
  %1888 = vst.msk [vmem:[%s6] sm:$0x3] %vm1887, %v1882
  %s1889 = scalar_lea.vmem %s0, 32
  %v1890 = vld [vmem:[%s1889] sm:$0xff]
  %v1891 = vld [vmem:[%s1889 + $0x8] sm:$0xff]
  %v1892 = vld [vmem:[%s1889 + $0x10] sm:$0x1]
  %v1893 = vld [vmem:[%s1889 + $0x18] sm:$0x1]
  %v1894 = vmul.f32 %v1890, %v23
  %v1895 = vmul.f32 %v1891, %v24
  %v1896 = vmul.f32 %v1892, %v25
  %v1897 = vmul.f32 %v1893, %v26
  %s1898 = scalar_lea.vmem %s1, 8
  %v1899 = vld [vmem:[%s1898] sm:$0x1f]
  %v1901 = vsel %vm45, %v1899, 0
  %v1904 = vsel %vm49, %v1896, 0
  %v1907 = vsel %vm49, %v1897, 0
  %1909 = vmatprep.subr.mxu0 0.0
  %1910 = vmatpush1.msra.mxu0 0.0
  %1911 = vmatprep.subr.mxu0 0.0
  %1912 = vmatpush1.msra.mxu0 0.0
  %1913 = vmatprep.subr.mxu0 0.0
  %1914 = vmatpush1.msra.mxu0 0.0
  %1915 = vmatprep.subr.mxu0 0.0
  %1916 = vmatpush1.msra.mxu0 0.0
  %1917 = vmatprep.subr.mxu0 0.0
  %1918 = vmatpush1.msra.mxu0 0.0
  %1919 = vmatprep.subr.mxu0 0.0
  %1920 = vmatpush1.msra.mxu0 0.0
  %1921 = vmatprep.subr.mxu0 0.0
  %1922 = vmatpush1.msra.mxu0 0.0
  %1923 = vmatprep.subr.mxu0 0.0
  %1924 = vmatpush1.msra.mxu0 0.0
  %1925 = vmatprep.subr.mxu0 0.0
  %1926 = vmatpush1.msra.mxu0 0.0
  %1927 = vmatprep.subr.mxu0 0.0
  %1928 = vmatpush1.msra.mxu0 0.0
  %1929 = vmatprep.subr.mxu0 0.0
  %1930 = vmatpush1.msra.mxu0 0.0
  %1931 = vmatprep.subr.mxu0 0.0
  %1932 = vmatpush1.msra.mxu0 0.0
  %1933 = vmatprep.subr.mxu0 0.0
  %1934 = vmatpush1.msra.mxu0 0.0
  %1935 = vmatprep.subr.mxu0 0.0
  %1936 = vmatpush1.msra.mxu0 0.0
  %v1937 = vand.u32 %v1907, 4294901760
  %1938 = vmatprep.subr.mxu0 %v1937
  %v1939 = vand.u32 %v1904, 4294901760
  %1940 = vmatpush1.msra.mxu0 %v1939
  %v1941 = vand.u32 %v1895, 4294901760
  %1942 = vmatprep.subr.mxu0 %v1941
  %v1943 = vand.u32 %v1894, 4294901760
  %1944 = vmatpush1.msra.mxu0 %v1943
  %1945 = vmatprep.subr.mxu0 0.0
  %1946 = vmatpush2.msra.mxu0 0.0
  %1947 = vmatprep.subr.mxu0 0.0
  %1948 = vmatpush2.msra.mxu0 0.0
  %1949 = vmatprep.subr.mxu0 0.0
  %1950 = vmatpush2.msra.mxu0 0.0
  %1951 = vmatprep.subr.mxu0 0.0
  %1952 = vmatpush2.msra.mxu0 0.0
  %1953 = vmatprep.subr.mxu0 0.0
  %1954 = vmatpush2.msra.mxu0 0.0
  %1955 = vmatprep.subr.mxu0 0.0
  %1956 = vmatpush2.msra.mxu0 0.0
  %1957 = vmatprep.subr.mxu0 0.0
  %1958 = vmatpush2.msra.mxu0 0.0
  %1959 = vmatprep.subr.mxu0 0.0
  %1960 = vmatpush2.msra.mxu0 0.0
  %1961 = vmatprep.subr.mxu0 0.0
  %1962 = vmatpush2.msra.mxu0 0.0
  %1963 = vmatprep.subr.mxu0 0.0
  %1964 = vmatpush2.msra.mxu0 0.0
  %1965 = vmatprep.subr.mxu0 0.0
  %1966 = vmatpush2.msra.mxu0 0.0
  %1967 = vmatprep.subr.mxu0 0.0
  %1968 = vmatpush2.msra.mxu0 0.0
  %1969 = vmatprep.subr.mxu0 0.0
  %1970 = vmatpush2.msra.mxu0 0.0
  %1971 = vmatprep.subr.mxu0 0.0
  %1972 = vmatpush2.msra.mxu0 0.0
  %1973 = vmatprep.subr.mxu0 0.0
  %1974 = vmatpush2.msra.mxu0 0.0
  %1975 = vmatprep.subr.mxu0 0.0
  %1976 = vmatpush2.msra.mxu0 0.0
  %1977 = vmatprep.mubr.f32.mxu0 0.0
  %v1978 = vand.u32 %v1901, 4294901760
  %v1979 = vsub.f32 %v1901, %v1978
  %v1980 = vand.u32 %v1979, 4294901760
  %v1981 = vsub.f32 %v1979, %v1980
  %v1982 = vand.u32 %v1981, 4294901760
  %1983 = vmatmul.mubr.f32.gmra.mxu0 %v1982
  %v1984 = vpop.f32.mrf.mxu0
  %v1985 = vadd.f32 0.0, %v1984
  %v1986 = vpop.f32.mrf.mxu0
  %v1987 = vadd.f32 0.0, %v1986
  %1988 = vdwg.mxu0
  %1989 = vmatprep.subr.mxu0 0.0
  %1990 = vmatpush1.msra.mxu0 0.0
  %1991 = vmatprep.subr.mxu0 0.0
  %1992 = vmatpush1.msra.mxu0 0.0
  %1993 = vmatprep.subr.mxu0 0.0
  %1994 = vmatpush1.msra.mxu0 0.0
  %1995 = vmatprep.subr.mxu0 0.0
  %1996 = vmatpush1.msra.mxu0 0.0
  %1997 = vmatprep.subr.mxu0 0.0
  %1998 = vmatpush1.msra.mxu0 0.0
  %1999 = vmatprep.subr.mxu0 0.0
  %2000 = vmatpush1.msra.mxu0 0.0
  %2001 = vmatprep.subr.mxu0 0.0
  %2002 = vmatpush1.msra.mxu0 0.0
  %2003 = vmatprep.subr.mxu0 0.0
  %2004 = vmatpush1.msra.mxu0 0.0
  %2005 = vmatprep.subr.mxu0 0.0
  %2006 = vmatpush1.msra.mxu0 0.0
  %2007 = vmatprep.subr.mxu0 0.0
  %2008 = vmatpush1.msra.mxu0 0.0
  %2009 = vmatprep.subr.mxu0 0.0
  %2010 = vmatpush1.msra.mxu0 0.0
  %2011 = vmatprep.subr.mxu0 0.0
  %2012 = vmatpush1.msra.mxu0 0.0
  %2013 = vmatprep.subr.mxu0 0.0
  %2014 = vmatpush1.msra.mxu0 0.0
  %2015 = vmatprep.subr.mxu0 0.0
  %2016 = vmatpush1.msra.mxu0 0.0
  %v2017 = vand.u32 %v1907, 4294901760
  %v2018 = vsub.f32 %v1907, %v2017
  %v2019 = vand.u32 %v2018, 4294901760
  %v2020 = vsub.f32 %v2018, %v2019
  %v2021 = vand.u32 %v2020, 4294901760
  %2022 = vmatprep.subr.mxu0 %v2021
  %v2023 = vand.u32 %v1904, 4294901760
  %v2024 = vsub.f32 %v1904, %v2023
  %v2025 = vand.u32 %v2024, 4294901760
  %v2026 = vsub.f32 %v2024, %v2025
  %v2027 = vand.u32 %v2026, 4294901760
  %2028 = vmatpush1.msra.mxu0 %v2027
  %v2029 = vand.u32 %v1895, 4294901760
  %v2030 = vsub.f32 %v1895, %v2029
  %v2031 = vand.u32 %v2030, 4294901760
  %v2032 = vsub.f32 %v2030, %v2031
  %v2033 = vand.u32 %v2032, 4294901760
  %2034 = vmatprep.subr.mxu0 %v2033
  %v2035 = vand.u32 %v1894, 4294901760
  %v2036 = vsub.f32 %v1894, %v2035
  %v2037 = vand.u32 %v2036, 4294901760
  %v2038 = vsub.f32 %v2036, %v2037
  %v2039 = vand.u32 %v2038, 4294901760
  %2040 = vmatpush1.msra.mxu0 %v2039
  %2041 = vmatprep.subr.mxu0 0.0
  %2042 = vmatpush2.msra.mxu0 0.0
  %2043 = vmatprep.subr.mxu0 0.0
  %2044 = vmatpush2.msra.mxu0 0.0
  %2045 = vmatprep.subr.mxu0 0.0
  %2046 = vmatpush2.msra.mxu0 0.0
  %2047 = vmatprep.subr.mxu0 0.0
  %2048 = vmatpush2.msra.mxu0 0.0
  %2049 = vmatprep.subr.mxu0 0.0
  %2050 = vmatpush2.msra.mxu0 0.0
  %2051 = vmatprep.subr.mxu0 0.0
  %2052 = vmatpush2.msra.mxu0 0.0
  %2053 = vmatprep.subr.mxu0 0.0
  %2054 = vmatpush2.msra.mxu0 0.0
  %2055 = vmatprep.subr.mxu0 0.0
  %2056 = vmatpush2.msra.mxu0 0.0
  %2057 = vmatprep.subr.mxu0 0.0
  %2058 = vmatpush2.msra.mxu0 0.0
  %2059 = vmatprep.subr.mxu0 0.0
  %2060 = vmatpush2.msra.mxu0 0.0
  %2061 = vmatprep.subr.mxu0 0.0
  %2062 = vmatpush2.msra.mxu0 0.0
  %2063 = vmatprep.subr.mxu0 0.0
  %2064 = vmatpush2.msra.mxu0 0.0
  %2065 = vmatprep.subr.mxu0 0.0
  %2066 = vmatpush2.msra.mxu0 0.0
  %2067 = vmatprep.subr.mxu0 0.0
  %2068 = vmatpush2.msra.mxu0 0.0
  %2069 = vmatprep.subr.mxu0 0.0
  %2070 = vmatpush2.msra.mxu0 0.0
  %2071 = vmatprep.subr.mxu0 0.0
  %2072 = vmatpush2.msra.mxu0 0.0
  %2073 = vmatprep.mubr.f32.mxu0 0.0
  %v2074 = vand.u32 %v1901, 4294901760
  %2075 = vmatmul.mubr.f32.gmra.mxu0 %v2074
  %v2076 = vpop.f32.mrf.mxu0
  %v2077 = vadd.f32 %v1985, %v2076
  %v2078 = vpop.f32.mrf.mxu0
  %v2079 = vadd.f32 %v1987, %v2078
  %2080 = vdwg.mxu0
  %2081 = vmatprep.subr.mxu0 0.0
  %2082 = vmatpush1.msra.mxu0 0.0
  %2083 = vmatprep.subr.mxu0 0.0
  %2084 = vmatpush1.msra.mxu0 0.0
  %2085 = vmatprep.subr.mxu0 0.0
  %2086 = vmatpush1.msra.mxu0 0.0
  %2087 = vmatprep.subr.mxu0 0.0
  %2088 = vmatpush1.msra.mxu0 0.0
  %2089 = vmatprep.subr.mxu0 0.0
  %2090 = vmatpush1.msra.mxu0 0.0
  %2091 = vmatprep.subr.mxu0 0.0
  %2092 = vmatpush1.msra.mxu0 0.0
  %2093 = vmatprep.subr.mxu0 0.0
  %2094 = vmatpush1.msra.mxu0 0.0
  %2095 = vmatprep.subr.mxu0 0.0
  %2096 = vmatpush1.msra.mxu0 0.0
  %2097 = vmatprep.subr.mxu0 0.0
  %2098 = vmatpush1.msra.mxu0 0.0
  %2099 = vmatprep.subr.mxu0 0.0
  %2100 = vmatpush1.msra.mxu0 0.0
  %2101 = vmatprep.subr.mxu0 0.0
  %2102 = vmatpush1.msra.mxu0 0.0
  %2103 = vmatprep.subr.mxu0 0.0
  %2104 = vmatpush1.msra.mxu0 0.0
  %2105 = vmatprep.subr.mxu0 0.0
  %2106 = vmatpush1.msra.mxu0 0.0
  %2107 = vmatprep.subr.mxu0 0.0
  %2108 = vmatpush1.msra.mxu0 0.0
  %v2109 = vand.u32 %v1907, 4294901760
  %v2110 = vsub.f32 %v1907, %v2109
  %2111 = vmatprep.subr.mxu0 %v2110
  %v2112 = vand.u32 %v1904, 4294901760
  %v2113 = vsub.f32 %v1904, %v2112
  %2114 = vmatpush1.msra.mxu0 %v2113
  %v2115 = vand.u32 %v1895, 4294901760
  %v2116 = vsub.f32 %v1895, %v2115
  %2117 = vmatprep.subr.mxu0 %v2116
  %v2118 = vand.u32 %v1894, 4294901760
  %v2119 = vsub.f32 %v1894, %v2118
  %2120 = vmatpush1.msra.mxu0 %v2119
  %2121 = vmatprep.subr.mxu0 0.0
  %2122 = vmatpush2.msra.mxu0 0.0
  %2123 = vmatprep.subr.mxu0 0.0
  %2124 = vmatpush2.msra.mxu0 0.0
  %2125 = vmatprep.subr.mxu0 0.0
  %2126 = vmatpush2.msra.mxu0 0.0
  %2127 = vmatprep.subr.mxu0 0.0
  %2128 = vmatpush2.msra.mxu0 0.0
  %2129 = vmatprep.subr.mxu0 0.0
  %2130 = vmatpush2.msra.mxu0 0.0
  %2131 = vmatprep.subr.mxu0 0.0
  %2132 = vmatpush2.msra.mxu0 0.0
  %2133 = vmatprep.subr.mxu0 0.0
  %2134 = vmatpush2.msra.mxu0 0.0
  %2135 = vmatprep.subr.mxu0 0.0
  %2136 = vmatpush2.msra.mxu0 0.0
  %2137 = vmatprep.subr.mxu0 0.0
  %2138 = vmatpush2.msra.mxu0 0.0
  %2139 = vmatprep.subr.mxu0 0.0
  %2140 = vmatpush2.msra.mxu0 0.0
  %2141 = vmatprep.subr.mxu0 0.0
  %2142 = vmatpush2.msra.mxu0 0.0
  %2143 = vmatprep.subr.mxu0 0.0
  %2144 = vmatpush2.msra.mxu0 0.0
  %2145 = vmatprep.subr.mxu0 0.0
  %2146 = vmatpush2.msra.mxu0 0.0
  %2147 = vmatprep.subr.mxu0 0.0
  %2148 = vmatpush2.msra.mxu0 0.0
  %2149 = vmatprep.subr.mxu0 0.0
  %2150 = vmatpush2.msra.mxu0 0.0
  %2151 = vmatprep.subr.mxu0 0.0
  %2152 = vmatpush2.msra.mxu0 0.0
  %2153 = vmatprep.mubr.f32.mxu0 0.0
  %v2154 = vand.u32 %v1901, 4294901760
  %v2155 = vsub.f32 %v1901, %v2154
  %2156 = vmatmul.mubr.f32.gmra.mxu0 %v2155
  %v2157 = vpop.f32.mrf.mxu0
  %v2158 = vadd.f32 %v2077, %v2157
  %v2159 = vpop.f32.mrf.mxu0
  %v2160 = vadd.f32 %v2079, %v2159
  %2161 = vdwg.mxu0
  %2162 = vmatprep.subr.mxu0 0.0
  %2163 = vmatpush1.msra.mxu0 0.0
  %2164 = vmatprep.subr.mxu0 0.0
  %2165 = vmatpush1.msra.mxu0 0.0
  %2166 = vmatprep.subr.mxu0 0.0
  %2167 = vmatpush1.msra.mxu0 0.0
  %2168 = vmatprep.subr.mxu0 0.0
  %2169 = vmatpush1.msra.mxu0 0.0
  %2170 = vmatprep.subr.mxu0 0.0
  %2171 = vmatpush1.msra.mxu0 0.0
  %2172 = vmatprep.subr.mxu0 0.0
  %2173 = vmatpush1.msra.mxu0 0.0
  %2174 = vmatprep.subr.mxu0 0.0
  %2175 = vmatpush1.msra.mxu0 0.0
  %2176 = vmatprep.subr.mxu0 0.0
  %2177 = vmatpush1.msra.mxu0 0.0
  %2178 = vmatprep.subr.mxu0 0.0
  %2179 = vmatpush1.msra.mxu0 0.0
  %2180 = vmatprep.subr.mxu0 0.0
  %2181 = vmatpush1.msra.mxu0 0.0
  %2182 = vmatprep.subr.mxu0 0.0
  %2183 = vmatpush1.msra.mxu0 0.0
  %2184 = vmatprep.subr.mxu0 0.0
  %2185 = vmatpush1.msra.mxu0 0.0
  %2186 = vmatprep.subr.mxu0 0.0
  %2187 = vmatpush1.msra.mxu0 0.0
  %2188 = vmatprep.subr.mxu0 0.0
  %2189 = vmatpush1.msra.mxu0 0.0
  %v2190 = vand.u32 %v1907, 4294901760
  %2191 = vmatprep.subr.mxu0 %v2190
  %v2192 = vand.u32 %v1904, 4294901760
  %2193 = vmatpush1.msra.mxu0 %v2192
  %v2194 = vand.u32 %v1895, 4294901760
  %2195 = vmatprep.subr.mxu0 %v2194
  %v2196 = vand.u32 %v1894, 4294901760
  %2197 = vmatpush1.msra.mxu0 %v2196
  %2198 = vmatprep.subr.mxu0 0.0
  %2199 = vmatpush2.msra.mxu0 0.0
  %2200 = vmatprep.subr.mxu0 0.0
  %2201 = vmatpush2.msra.mxu0 0.0
  %2202 = vmatprep.subr.mxu0 0.0
  %2203 = vmatpush2.msra.mxu0 0.0
  %2204 = vmatprep.subr.mxu0 0.0
  %2205 = vmatpush2.msra.mxu0 0.0
  %2206 = vmatprep.subr.mxu0 0.0
  %2207 = vmatpush2.msra.mxu0 0.0
  %2208 = vmatprep.subr.mxu0 0.0
  %2209 = vmatpush2.msra.mxu0 0.0
  %2210 = vmatprep.subr.mxu0 0.0
  %2211 = vmatpush2.msra.mxu0 0.0
  %2212 = vmatprep.subr.mxu0 0.0
  %2213 = vmatpush2.msra.mxu0 0.0
  %2214 = vmatprep.subr.mxu0 0.0
  %2215 = vmatpush2.msra.mxu0 0.0
  %2216 = vmatprep.subr.mxu0 0.0
  %2217 = vmatpush2.msra.mxu0 0.0
  %2218 = vmatprep.subr.mxu0 0.0
  %2219 = vmatpush2.msra.mxu0 0.0
  %2220 = vmatprep.subr.mxu0 0.0
  %2221 = vmatpush2.msra.mxu0 0.0
  %2222 = vmatprep.subr.mxu0 0.0
  %2223 = vmatpush2.msra.mxu0 0.0
  %2224 = vmatprep.subr.mxu0 0.0
  %2225 = vmatpush2.msra.mxu0 0.0
  %2226 = vmatprep.subr.mxu0 0.0
  %2227 = vmatpush2.msra.mxu0 0.0
  %2228 = vmatprep.subr.mxu0 0.0
  %2229 = vmatpush2.msra.mxu0 0.0
  %2230 = vmatprep.mubr.f32.mxu0 0.0
  %v2231 = vand.u32 %v1901, 4294901760
  %v2232 = vsub.f32 %v1901, %v2231
  %v2233 = vand.u32 %v2232, 4294901760
  %2234 = vmatmul.mubr.f32.gmra.mxu0 %v2233
  %v2235 = vpop.f32.mrf.mxu0
  %v2236 = vadd.f32 %v2158, %v2235
  %v2237 = vpop.f32.mrf.mxu0
  %v2238 = vadd.f32 %v2160, %v2237
  %2239 = vdwg.mxu0
  %2240 = vmatprep.subr.mxu0 0.0
  %2241 = vmatpush1.msra.mxu0 0.0
  %2242 = vmatprep.subr.mxu0 0.0
  %2243 = vmatpush1.msra.mxu0 0.0
  %2244 = vmatprep.subr.mxu0 0.0
  %2245 = vmatpush1.msra.mxu0 0.0
  %2246 = vmatprep.subr.mxu0 0.0
  %2247 = vmatpush1.msra.mxu0 0.0
  %2248 = vmatprep.subr.mxu0 0.0
  %2249 = vmatpush1.msra.mxu0 0.0
  %2250 = vmatprep.subr.mxu0 0.0
  %2251 = vmatpush1.msra.mxu0 0.0
  %2252 = vmatprep.subr.mxu0 0.0
  %2253 = vmatpush1.msra.mxu0 0.0
  %2254 = vmatprep.subr.mxu0 0.0
  %2255 = vmatpush1.msra.mxu0 0.0
  %2256 = vmatprep.subr.mxu0 0.0
  %2257 = vmatpush1.msra.mxu0 0.0
  %2258 = vmatprep.subr.mxu0 0.0
  %2259 = vmatpush1.msra.mxu0 0.0
  %2260 = vmatprep.subr.mxu0 0.0
  %2261 = vmatpush1.msra.mxu0 0.0
  %2262 = vmatprep.subr.mxu0 0.0
  %2263 = vmatpush1.msra.mxu0 0.0
  %2264 = vmatprep.subr.mxu0 0.0
  %2265 = vmatpush1.msra.mxu0 0.0
  %2266 = vmatprep.subr.mxu0 0.0
  %2267 = vmatpush1.msra.mxu0 0.0
  %v2268 = vand.u32 %v1907, 4294901760
  %v2269 = vsub.f32 %v1907, %v2268
  %v2270 = vand.u32 %v2269, 4294901760
  %2271 = vmatprep.subr.mxu0 %v2270
  %v2272 = vand.u32 %v1904, 4294901760
  %v2273 = vsub.f32 %v1904, %v2272
  %v2274 = vand.u32 %v2273, 4294901760
  %2275 = vmatpush1.msra.mxu0 %v2274
  %v2276 = vand.u32 %v1895, 4294901760
  %v2277 = vsub.f32 %v1895, %v2276
  %v2278 = vand.u32 %v2277, 4294901760
  %2279 = vmatprep.subr.mxu0 %v2278
  %v2280 = vand.u32 %v1894, 4294901760
  %v2281 = vsub.f32 %v1894, %v2280
  %v2282 = vand.u32 %v2281, 4294901760
  %2283 = vmatpush1.msra.mxu0 %v2282
  %2284 = vmatprep.subr.mxu0 0.0
  %2285 = vmatpush2.msra.mxu0 0.0
  %2286 = vmatprep.subr.mxu0 0.0
  %2287 = vmatpush2.msra.mxu0 0.0
  %2288 = vmatprep.subr.mxu0 0.0
  %2289 = vmatpush2.msra.mxu0 0.0
  %2290 = vmatprep.subr.mxu0 0.0
  %2291 = vmatpush2.msra.mxu0 0.0
  %2292 = vmatprep.subr.mxu0 0.0
  %2293 = vmatpush2.msra.mxu0 0.0
  %2294 = vmatprep.subr.mxu0 0.0
  %2295 = vmatpush2.msra.mxu0 0.0
  %2296 = vmatprep.subr.mxu0 0.0
  %2297 = vmatpush2.msra.mxu0 0.0
  %2298 = vmatprep.subr.mxu0 0.0
  %2299 = vmatpush2.msra.mxu0 0.0
  %2300 = vmatprep.subr.mxu0 0.0
  %2301 = vmatpush2.msra.mxu0 0.0
  %2302 = vmatprep.subr.mxu0 0.0
  %2303 = vmatpush2.msra.mxu0 0.0
  %2304 = vmatprep.subr.mxu0 0.0
  %2305 = vmatpush2.msra.mxu0 0.0
  %2306 = vmatprep.subr.mxu0 0.0
  %2307 = vmatpush2.msra.mxu0 0.0
  %2308 = vmatprep.subr.mxu0 0.0
  %2309 = vmatpush2.msra.mxu0 0.0
  %2310 = vmatprep.subr.mxu0 0.0
  %2311 = vmatpush2.msra.mxu0 0.0
  %2312 = vmatprep.subr.mxu0 0.0
  %2313 = vmatpush2.msra.mxu0 0.0
  %2314 = vmatprep.subr.mxu0 0.0
  %2315 = vmatpush2.msra.mxu0 0.0
  %2316 = vmatprep.mubr.f32.mxu0 0.0
  %v2317 = vand.u32 %v1901, 4294901760
  %2318 = vmatmul.mubr.f32.gmra.mxu0 %v2317
  %v2319 = vpop.f32.mrf.mxu0
  %v2320 = vadd.f32 %v2236, %v2319
  %v2321 = vpop.f32.mrf.mxu0
  %v2322 = vadd.f32 %v2238, %v2321
  %2323 = vdwg.mxu0
  %2324 = vmatprep.subr.mxu0 0.0
  %2325 = vmatpush1.msra.mxu0 0.0
  %2326 = vmatprep.subr.mxu0 0.0
  %2327 = vmatpush1.msra.mxu0 0.0
  %2328 = vmatprep.subr.mxu0 0.0
  %2329 = vmatpush1.msra.mxu0 0.0
  %2330 = vmatprep.subr.mxu0 0.0
  %2331 = vmatpush1.msra.mxu0 0.0
  %2332 = vmatprep.subr.mxu0 0.0
  %2333 = vmatpush1.msra.mxu0 0.0
  %2334 = vmatprep.subr.mxu0 0.0
  %2335 = vmatpush1.msra.mxu0 0.0
  %2336 = vmatprep.subr.mxu0 0.0
  %2337 = vmatpush1.msra.mxu0 0.0
  %2338 = vmatprep.subr.mxu0 0.0
  %2339 = vmatpush1.msra.mxu0 0.0
  %2340 = vmatprep.subr.mxu0 0.0
  %2341 = vmatpush1.msra.mxu0 0.0
  %2342 = vmatprep.subr.mxu0 0.0
  %2343 = vmatpush1.msra.mxu0 0.0
  %2344 = vmatprep.subr.mxu0 0.0
  %2345 = vmatpush1.msra.mxu0 0.0
  %2346 = vmatprep.subr.mxu0 0.0
  %2347 = vmatpush1.msra.mxu0 0.0
  %2348 = vmatprep.subr.mxu0 0.0
  %2349 = vmatpush1.msra.mxu0 0.0
  %2350 = vmatprep.subr.mxu0 0.0
  %2351 = vmatpush1.msra.mxu0 0.0
  %v2352 = vand.u32 %v1907, 4294901760
  %2353 = vmatprep.subr.mxu0 %v2352
  %v2354 = vand.u32 %v1904, 4294901760
  %2355 = vmatpush1.msra.mxu0 %v2354
  %v2356 = vand.u32 %v1895, 4294901760
  %2357 = vmatprep.subr.mxu0 %v2356
  %v2358 = vand.u32 %v1894, 4294901760
  %2359 = vmatpush1.msra.mxu0 %v2358
  %2360 = vmatprep.subr.mxu0 0.0
  %2361 = vmatpush2.msra.mxu0 0.0
  %2362 = vmatprep.subr.mxu0 0.0
  %2363 = vmatpush2.msra.mxu0 0.0
  %2364 = vmatprep.subr.mxu0 0.0
  %2365 = vmatpush2.msra.mxu0 0.0
  %2366 = vmatprep.subr.mxu0 0.0
  %2367 = vmatpush2.msra.mxu0 0.0
  %2368 = vmatprep.subr.mxu0 0.0
  %2369 = vmatpush2.msra.mxu0 0.0
  %2370 = vmatprep.subr.mxu0 0.0
  %2371 = vmatpush2.msra.mxu0 0.0
  %2372 = vmatprep.subr.mxu0 0.0
  %2373 = vmatpush2.msra.mxu0 0.0
  %2374 = vmatprep.subr.mxu0 0.0
  %2375 = vmatpush2.msra.mxu0 0.0
  %2376 = vmatprep.subr.mxu0 0.0
  %2377 = vmatpush2.msra.mxu0 0.0
  %2378 = vmatprep.subr.mxu0 0.0
  %2379 = vmatpush2.msra.mxu0 0.0
  %2380 = vmatprep.subr.mxu0 0.0
  %2381 = vmatpush2.msra.mxu0 0.0
  %2382 = vmatprep.subr.mxu0 0.0
  %2383 = vmatpush2.msra.mxu0 0.0
  %2384 = vmatprep.subr.mxu0 0.0
  %2385 = vmatpush2.msra.mxu0 0.0
  %2386 = vmatprep.subr.mxu0 0.0
  %2387 = vmatpush2.msra.mxu0 0.0
  %2388 = vmatprep.subr.mxu0 0.0
  %2389 = vmatpush2.msra.mxu0 0.0
  %2390 = vmatprep.subr.mxu0 0.0
  %2391 = vmatpush2.msra.mxu0 0.0
  %2392 = vmatprep.mubr.f32.mxu0 0.0
  %v2393 = vand.u32 %v1901, 4294901760
  %2394 = vmatmul.mubr.f32.gmra.mxu0 %v2393
  %v2395 = vpop.f32.mrf.mxu0
  %v2396 = vadd.f32 %v2320, %v2395
  %v2397 = vpop.f32.mrf.mxu0
  %v2398 = vadd.f32 %v2322, %v2397
  %2399 = vdwg.mxu0
  %v2400 = vmul.f32 %v2396, 0.5
  %v2401 = vmul.f32 %v2398, 0.5
  %v2402 = vtanh.pop %v2400
  %v2403 = vtanh.pop %v2401
  %v2404 = vadd.f32 %v2402, 1.0
  %v2405 = vadd.f32 %v2403, 1.0
  %v2406 = vmul.f32 %v2404, 0.5
  %v2407 = vmul.f32 %v2405, 0.5
  %v2408 = vmul.f32 %v2396, %v2406
  %v2409 = vmul.f32 %v2398, %v2407
  %v2410 = vadd.f32 %v2408, %v35
  %v2411 = vadd.f32 %v2409, %v35
  %v2413 = vsel %vm572, %v2410, 0
  %v2416 = vsel %vm572, %v2411, 0
  %2418 = vmatprep.subr.mxu0 0.0
  %2419 = vmatpush1.msra.mxu0 0.0
  %2420 = vmatprep.subr.mxu0 0.0
  %2421 = vmatpush1.msra.mxu0 0.0
  %2422 = vmatprep.subr.mxu0 0.0
  %2423 = vmatpush1.msra.mxu0 0.0
  %2424 = vmatprep.subr.mxu0 0.0
  %2425 = vmatpush1.msra.mxu0 0.0
  %2426 = vmatprep.subr.mxu0 0.0
  %2427 = vmatpush1.msra.mxu0 0.0
  %2428 = vmatprep.subr.mxu0 0.0
  %2429 = vmatpush1.msra.mxu0 0.0
  %2430 = vmatprep.subr.mxu0 0.0
  %2431 = vmatpush1.msra.mxu0 0.0
  %2432 = vmatprep.subr.mxu0 0.0
  %2433 = vmatpush1.msra.mxu0 0.0
  %2434 = vmatprep.subr.mxu0 0.0
  %2435 = vmatpush1.msra.mxu0 0.0
  %2436 = vmatprep.subr.mxu0 0.0
  %2437 = vmatpush1.msra.mxu0 0.0
  %2438 = vmatprep.subr.mxu0 0.0
  %2439 = vmatpush1.msra.mxu0 0.0
  %2440 = vmatprep.subr.mxu0 0.0
  %2441 = vmatpush1.msra.mxu0 0.0
  %2442 = vmatprep.subr.mxu0 0.0
  %2443 = vmatpush1.msra.mxu0 0.0
  %2444 = vmatprep.subr.mxu0 0.0
  %2445 = vmatpush1.msra.mxu0 0.0
  %2446 = vmatprep.subr.mxu0 0.0
  %2447 = vmatpush1.msra.mxu0 0.0
  %v2448 = vand.u32 %v2416, 4294901760
  %2449 = vmatprep.subr.mxu0 %v2448
  %v2450 = vand.u32 %v2413, 4294901760
  %2451 = vmatpush1.msra.mxu0 %v2450
  %2452 = vmatprep.subr.mxu0 0.0
  %2453 = vmatpush2.msra.mxu0 0.0
  %2454 = vmatprep.subr.mxu0 0.0
  %2455 = vmatpush2.msra.mxu0 0.0
  %2456 = vmatprep.subr.mxu0 0.0
  %2457 = vmatpush2.msra.mxu0 0.0
  %2458 = vmatprep.subr.mxu0 0.0
  %2459 = vmatpush2.msra.mxu0 0.0
  %2460 = vmatprep.subr.mxu0 0.0
  %2461 = vmatpush2.msra.mxu0 0.0
  %2462 = vmatprep.subr.mxu0 0.0
  %2463 = vmatpush2.msra.mxu0 0.0
  %2464 = vmatprep.subr.mxu0 0.0
  %2465 = vmatpush2.msra.mxu0 0.0
  %2466 = vmatprep.subr.mxu0 0.0
  %2467 = vmatpush2.msra.mxu0 0.0
  %2468 = vmatprep.subr.mxu0 0.0
  %2469 = vmatpush2.msra.mxu0 0.0
  %2470 = vmatprep.subr.mxu0 0.0
  %2471 = vmatpush2.msra.mxu0 0.0
  %2472 = vmatprep.subr.mxu0 0.0
  %2473 = vmatpush2.msra.mxu0 0.0
  %2474 = vmatprep.subr.mxu0 0.0
  %2475 = vmatpush2.msra.mxu0 0.0
  %2476 = vmatprep.subr.mxu0 0.0
  %2477 = vmatpush2.msra.mxu0 0.0
  %2478 = vmatprep.subr.mxu0 0.0
  %2479 = vmatpush2.msra.mxu0 0.0
  %2480 = vmatprep.subr.mxu0 0.0
  %2481 = vmatpush2.msra.mxu0 0.0
  %2482 = vmatprep.subr.mxu0 0.0
  %2483 = vmatpush2.msra.mxu0 0.0
  %2484 = vmatprep.mubr.f32.mxu0 0.0
  %v2485 = vand.u32 %v561, 4294901760
  %v2486 = vsub.f32 %v561, %v2485
  %v2487 = vand.u32 %v2486, 4294901760
  %v2488 = vsub.f32 %v2486, %v2487
  %v2489 = vand.u32 %v2488, 4294901760
  %2490 = vmatmul.mubr.f32.gmra.mxu0 %v2489
  %v2491 = vpop.f32.mrf.mxu0
  %v2492 = vadd.f32 0.0, %v2491
  %v2493 = vpop.f32.mrf.mxu0
  %v2494 = vadd.f32 0.0, %v2493
  %2495 = vmatprep.mubr.f32.mxu0 0.0
  %v2496 = vand.u32 %v564, 4294901760
  %v2497 = vsub.f32 %v564, %v2496
  %v2498 = vand.u32 %v2497, 4294901760
  %v2499 = vsub.f32 %v2497, %v2498
  %v2500 = vand.u32 %v2499, 4294901760
  %2501 = vmatmul.mubr.f32.gmra.mxu0 %v2500
  %v2502 = vpop.f32.mrf.mxu0
  %v2503 = vadd.f32 0.0, %v2502
  %v2504 = vpop.f32.mrf.mxu0
  %v2505 = vadd.f32 0.0, %v2504
  %2506 = vmatprep.mubr.f32.mxu0 0.0
  %v2507 = vand.u32 %v567, 4294901760
  %v2508 = vsub.f32 %v567, %v2507
  %v2509 = vand.u32 %v2508, 4294901760
  %v2510 = vsub.f32 %v2508, %v2509
  %v2511 = vand.u32 %v2510, 4294901760
  %2512 = vmatmul.mubr.f32.gmra.mxu0 %v2511
  %v2513 = vpop.f32.mrf.mxu0
  %v2514 = vadd.f32 0.0, %v2513
  %v2515 = vpop.f32.mrf.mxu0
  %v2516 = vadd.f32 0.0, %v2515
  %2517 = vmatprep.mubr.f32.mxu0 0.0
  %v2518 = vand.u32 %v570, 4294901760
  %v2519 = vsub.f32 %v570, %v2518
  %v2520 = vand.u32 %v2519, 4294901760
  %v2521 = vsub.f32 %v2519, %v2520
  %v2522 = vand.u32 %v2521, 4294901760
  %2523 = vmatmul.mubr.f32.gmra.mxu0 %v2522
  %v2524 = vpop.f32.mrf.mxu0
  %v2525 = vadd.f32 0.0, %v2524
  %v2526 = vpop.f32.mrf.mxu0
  %v2527 = vadd.f32 0.0, %v2526
  %2528 = vdwg.mxu0
  %2529 = vmatprep.subr.mxu0 0.0
  %2530 = vmatpush1.msra.mxu0 0.0
  %2531 = vmatprep.subr.mxu0 0.0
  %2532 = vmatpush1.msra.mxu0 0.0
  %2533 = vmatprep.subr.mxu0 0.0
  %2534 = vmatpush1.msra.mxu0 0.0
  %2535 = vmatprep.subr.mxu0 0.0
  %2536 = vmatpush1.msra.mxu0 0.0
  %2537 = vmatprep.subr.mxu0 0.0
  %2538 = vmatpush1.msra.mxu0 0.0
  %2539 = vmatprep.subr.mxu0 0.0
  %2540 = vmatpush1.msra.mxu0 0.0
  %2541 = vmatprep.subr.mxu0 0.0
  %2542 = vmatpush1.msra.mxu0 0.0
  %2543 = vmatprep.subr.mxu0 0.0
  %2544 = vmatpush1.msra.mxu0 0.0
  %2545 = vmatprep.subr.mxu0 0.0
  %2546 = vmatpush1.msra.mxu0 0.0
  %2547 = vmatprep.subr.mxu0 0.0
  %2548 = vmatpush1.msra.mxu0 0.0
  %2549 = vmatprep.subr.mxu0 0.0
  %2550 = vmatpush1.msra.mxu0 0.0
  %2551 = vmatprep.subr.mxu0 0.0
  %2552 = vmatpush1.msra.mxu0 0.0
  %2553 = vmatprep.subr.mxu0 0.0
  %2554 = vmatpush1.msra.mxu0 0.0
  %2555 = vmatprep.subr.mxu0 0.0
  %2556 = vmatpush1.msra.mxu0 0.0
  %2557 = vmatprep.subr.mxu0 0.0
  %2558 = vmatpush1.msra.mxu0 0.0
  %v2559 = vand.u32 %v2416, 4294901760
  %v2560 = vsub.f32 %v2416, %v2559
  %v2561 = vand.u32 %v2560, 4294901760
  %v2562 = vsub.f32 %v2560, %v2561
  %v2563 = vand.u32 %v2562, 4294901760
  %2564 = vmatprep.subr.mxu0 %v2563
  %v2565 = vand.u32 %v2413, 4294901760
  %v2566 = vsub.f32 %v2413, %v2565
  %v2567 = vand.u32 %v2566, 4294901760
  %v2568 = vsub.f32 %v2566, %v2567
  %v2569 = vand.u32 %v2568, 4294901760
  %2570 = vmatpush1.msra.mxu0 %v2569
  %2571 = vmatprep.subr.mxu0 0.0
  %2572 = vmatpush2.msra.mxu0 0.0
  %2573 = vmatprep.subr.mxu0 0.0
  %2574 = vmatpush2.msra.mxu0 0.0
  %2575 = vmatprep.subr.mxu0 0.0
  %2576 = vmatpush2.msra.mxu0 0.0
  %2577 = vmatprep.subr.mxu0 0.0
  %2578 = vmatpush2.msra.mxu0 0.0
  %2579 = vmatprep.subr.mxu0 0.0
  %2580 = vmatpush2.msra.mxu0 0.0
  %2581 = vmatprep.subr.mxu0 0.0
  %2582 = vmatpush2.msra.mxu0 0.0
  %2583 = vmatprep.subr.mxu0 0.0
  %2584 = vmatpush2.msra.mxu0 0.0
  %2585 = vmatprep.subr.mxu0 0.0
  %2586 = vmatpush2.msra.mxu0 0.0
  %2587 = vmatprep.subr.mxu0 0.0
  %2588 = vmatpush2.msra.mxu0 0.0
  %2589 = vmatprep.subr.mxu0 0.0
  %2590 = vmatpush2.msra.mxu0 0.0
  %2591 = vmatprep.subr.mxu0 0.0
  %2592 = vmatpush2.msra.mxu0 0.0
  %2593 = vmatprep.subr.mxu0 0.0
  %2594 = vmatpush2.msra.mxu0 0.0
  %2595 = vmatprep.subr.mxu0 0.0
  %2596 = vmatpush2.msra.mxu0 0.0
  %2597 = vmatprep.subr.mxu0 0.0
  %2598 = vmatpush2.msra.mxu0 0.0
  %2599 = vmatprep.subr.mxu0 0.0
  %2600 = vmatpush2.msra.mxu0 0.0
  %2601 = vmatprep.subr.mxu0 0.0
  %2602 = vmatpush2.msra.mxu0 0.0
  %2603 = vmatprep.mubr.f32.mxu0 0.0
  %v2604 = vand.u32 %v561, 4294901760
  %2605 = vmatmul.mubr.f32.gmra.mxu0 %v2604
  %v2606 = vpop.f32.mrf.mxu0
  %v2607 = vadd.f32 %v2492, %v2606
  %v2608 = vpop.f32.mrf.mxu0
  %v2609 = vadd.f32 %v2494, %v2608
  %2610 = vmatprep.mubr.f32.mxu0 0.0
  %v2611 = vand.u32 %v564, 4294901760
  %2612 = vmatmul.mubr.f32.gmra.mxu0 %v2611
  %v2613 = vpop.f32.mrf.mxu0
  %v2614 = vadd.f32 %v2503, %v2613
  %v2615 = vpop.f32.mrf.mxu0
  %v2616 = vadd.f32 %v2505, %v2615
  %2617 = vmatprep.mubr.f32.mxu0 0.0
  %v2618 = vand.u32 %v567, 4294901760
  %2619 = vmatmul.mubr.f32.gmra.mxu0 %v2618
  %v2620 = vpop.f32.mrf.mxu0
  %v2621 = vadd.f32 %v2514, %v2620
  %v2622 = vpop.f32.mrf.mxu0
  %v2623 = vadd.f32 %v2516, %v2622
  %2624 = vmatprep.mubr.f32.mxu0 0.0
  %v2625 = vand.u32 %v570, 4294901760
  %2626 = vmatmul.mubr.f32.gmra.mxu0 %v2625
  %v2627 = vpop.f32.mrf.mxu0
  %v2628 = vadd.f32 %v2525, %v2627
  %v2629 = vpop.f32.mrf.mxu0
  %v2630 = vadd.f32 %v2527, %v2629
  %2631 = vdwg.mxu0
  %2632 = vmatprep.subr.mxu0 0.0
  %2633 = vmatpush1.msra.mxu0 0.0
  %2634 = vmatprep.subr.mxu0 0.0
  %2635 = vmatpush1.msra.mxu0 0.0
  %2636 = vmatprep.subr.mxu0 0.0
  %2637 = vmatpush1.msra.mxu0 0.0
  %2638 = vmatprep.subr.mxu0 0.0
  %2639 = vmatpush1.msra.mxu0 0.0
  %2640 = vmatprep.subr.mxu0 0.0
  %2641 = vmatpush1.msra.mxu0 0.0
  %2642 = vmatprep.subr.mxu0 0.0
  %2643 = vmatpush1.msra.mxu0 0.0
  %2644 = vmatprep.subr.mxu0 0.0
  %2645 = vmatpush1.msra.mxu0 0.0
  %2646 = vmatprep.subr.mxu0 0.0
  %2647 = vmatpush1.msra.mxu0 0.0
  %2648 = vmatprep.subr.mxu0 0.0
  %2649 = vmatpush1.msra.mxu0 0.0
  %2650 = vmatprep.subr.mxu0 0.0
  %2651 = vmatpush1.msra.mxu0 0.0
  %2652 = vmatprep.subr.mxu0 0.0
  %2653 = vmatpush1.msra.mxu0 0.0
  %2654 = vmatprep.subr.mxu0 0.0
  %2655 = vmatpush1.msra.mxu0 0.0
  %2656 = vmatprep.subr.mxu0 0.0
  %2657 = vmatpush1.msra.mxu0 0.0
  %2658 = vmatprep.subr.mxu0 0.0
  %2659 = vmatpush1.msra.mxu0 0.0
  %2660 = vmatprep.subr.mxu0 0.0
  %2661 = vmatpush1.msra.mxu0 0.0
  %v2662 = vand.u32 %v2416, 4294901760
  %v2663 = vsub.f32 %v2416, %v2662
  %2664 = vmatprep.subr.mxu0 %v2663
  %v2665 = vand.u32 %v2413, 4294901760
  %v2666 = vsub.f32 %v2413, %v2665
  %2667 = vmatpush1.msra.mxu0 %v2666
  %2668 = vmatprep.subr.mxu0 0.0
  %2669 = vmatpush2.msra.mxu0 0.0
  %2670 = vmatprep.subr.mxu0 0.0
  %2671 = vmatpush2.msra.mxu0 0.0
  %2672 = vmatprep.subr.mxu0 0.0
  %2673 = vmatpush2.msra.mxu0 0.0
  %2674 = vmatprep.subr.mxu0 0.0
  %2675 = vmatpush2.msra.mxu0 0.0
  %2676 = vmatprep.subr.mxu0 0.0
  %2677 = vmatpush2.msra.mxu0 0.0
  %2678 = vmatprep.subr.mxu0 0.0
  %2679 = vmatpush2.msra.mxu0 0.0
  %2680 = vmatprep.subr.mxu0 0.0
  %2681 = vmatpush2.msra.mxu0 0.0
  %2682 = vmatprep.subr.mxu0 0.0
  %2683 = vmatpush2.msra.mxu0 0.0
  %2684 = vmatprep.subr.mxu0 0.0
  %2685 = vmatpush2.msra.mxu0 0.0
  %2686 = vmatprep.subr.mxu0 0.0
  %2687 = vmatpush2.msra.mxu0 0.0
  %2688 = vmatprep.subr.mxu0 0.0
  %2689 = vmatpush2.msra.mxu0 0.0
  %2690 = vmatprep.subr.mxu0 0.0
  %2691 = vmatpush2.msra.mxu0 0.0
  %2692 = vmatprep.subr.mxu0 0.0
  %2693 = vmatpush2.msra.mxu0 0.0
  %2694 = vmatprep.subr.mxu0 0.0
  %2695 = vmatpush2.msra.mxu0 0.0
  %2696 = vmatprep.subr.mxu0 0.0
  %2697 = vmatpush2.msra.mxu0 0.0
  %2698 = vmatprep.subr.mxu0 0.0
  %2699 = vmatpush2.msra.mxu0 0.0
  %2700 = vmatprep.mubr.f32.mxu0 0.0
  %v2701 = vand.u32 %v561, 4294901760
  %v2702 = vsub.f32 %v561, %v2701
  %2703 = vmatmul.mubr.f32.gmra.mxu0 %v2702
  %v2704 = vpop.f32.mrf.mxu0
  %v2705 = vadd.f32 %v2607, %v2704
  %v2706 = vpop.f32.mrf.mxu0
  %v2707 = vadd.f32 %v2609, %v2706
  %2708 = vmatprep.mubr.f32.mxu0 0.0
  %v2709 = vand.u32 %v564, 4294901760
  %v2710 = vsub.f32 %v564, %v2709
  %2711 = vmatmul.mubr.f32.gmra.mxu0 %v2710
  %v2712 = vpop.f32.mrf.mxu0
  %v2713 = vadd.f32 %v2614, %v2712
  %v2714 = vpop.f32.mrf.mxu0
  %v2715 = vadd.f32 %v2616, %v2714
  %2716 = vmatprep.mubr.f32.mxu0 0.0
  %v2717 = vand.u32 %v567, 4294901760
  %v2718 = vsub.f32 %v567, %v2717
  %2719 = vmatmul.mubr.f32.gmra.mxu0 %v2718
  %v2720 = vpop.f32.mrf.mxu0
  %v2721 = vadd.f32 %v2621, %v2720
  %v2722 = vpop.f32.mrf.mxu0
  %v2723 = vadd.f32 %v2623, %v2722
  %2724 = vmatprep.mubr.f32.mxu0 0.0
  %v2725 = vand.u32 %v570, 4294901760
  %v2726 = vsub.f32 %v570, %v2725
  %2727 = vmatmul.mubr.f32.gmra.mxu0 %v2726
  %v2728 = vpop.f32.mrf.mxu0
  %v2729 = vadd.f32 %v2628, %v2728
  %v2730 = vpop.f32.mrf.mxu0
  %v2731 = vadd.f32 %v2630, %v2730
  %2732 = vdwg.mxu0
  %2733 = vmatprep.subr.mxu0 0.0
  %2734 = vmatpush1.msra.mxu0 0.0
  %2735 = vmatprep.subr.mxu0 0.0
  %2736 = vmatpush1.msra.mxu0 0.0
  %2737 = vmatprep.subr.mxu0 0.0
  %2738 = vmatpush1.msra.mxu0 0.0
  %2739 = vmatprep.subr.mxu0 0.0
  %2740 = vmatpush1.msra.mxu0 0.0
  %2741 = vmatprep.subr.mxu0 0.0
  %2742 = vmatpush1.msra.mxu0 0.0
  %2743 = vmatprep.subr.mxu0 0.0
  %2744 = vmatpush1.msra.mxu0 0.0
  %2745 = vmatprep.subr.mxu0 0.0
  %2746 = vmatpush1.msra.mxu0 0.0
  %2747 = vmatprep.subr.mxu0 0.0
  %2748 = vmatpush1.msra.mxu0 0.0
  %2749 = vmatprep.subr.mxu0 0.0
  %2750 = vmatpush1.msra.mxu0 0.0
  %2751 = vmatprep.subr.mxu0 0.0
  %2752 = vmatpush1.msra.mxu0 0.0
  %2753 = vmatprep.subr.mxu0 0.0
  %2754 = vmatpush1.msra.mxu0 0.0
  %2755 = vmatprep.subr.mxu0 0.0
  %2756 = vmatpush1.msra.mxu0 0.0
  %2757 = vmatprep.subr.mxu0 0.0
  %2758 = vmatpush1.msra.mxu0 0.0
  %2759 = vmatprep.subr.mxu0 0.0
  %2760 = vmatpush1.msra.mxu0 0.0
  %2761 = vmatprep.subr.mxu0 0.0
  %2762 = vmatpush1.msra.mxu0 0.0
  %v2763 = vand.u32 %v2416, 4294901760
  %2764 = vmatprep.subr.mxu0 %v2763
  %v2765 = vand.u32 %v2413, 4294901760
  %2766 = vmatpush1.msra.mxu0 %v2765
  %2767 = vmatprep.subr.mxu0 0.0
  %2768 = vmatpush2.msra.mxu0 0.0
  %2769 = vmatprep.subr.mxu0 0.0
  %2770 = vmatpush2.msra.mxu0 0.0
  %2771 = vmatprep.subr.mxu0 0.0
  %2772 = vmatpush2.msra.mxu0 0.0
  %2773 = vmatprep.subr.mxu0 0.0
  %2774 = vmatpush2.msra.mxu0 0.0
  %2775 = vmatprep.subr.mxu0 0.0
  %2776 = vmatpush2.msra.mxu0 0.0
  %2777 = vmatprep.subr.mxu0 0.0
  %2778 = vmatpush2.msra.mxu0 0.0
  %2779 = vmatprep.subr.mxu0 0.0
  %2780 = vmatpush2.msra.mxu0 0.0
  %2781 = vmatprep.subr.mxu0 0.0
  %2782 = vmatpush2.msra.mxu0 0.0
  %2783 = vmatprep.subr.mxu0 0.0
  %2784 = vmatpush2.msra.mxu0 0.0
  %2785 = vmatprep.subr.mxu0 0.0
  %2786 = vmatpush2.msra.mxu0 0.0
  %2787 = vmatprep.subr.mxu0 0.0
  %2788 = vmatpush2.msra.mxu0 0.0
  %2789 = vmatprep.subr.mxu0 0.0
  %2790 = vmatpush2.msra.mxu0 0.0
  %2791 = vmatprep.subr.mxu0 0.0
  %2792 = vmatpush2.msra.mxu0 0.0
  %2793 = vmatprep.subr.mxu0 0.0
  %2794 = vmatpush2.msra.mxu0 0.0
  %2795 = vmatprep.subr.mxu0 0.0
  %2796 = vmatpush2.msra.mxu0 0.0
  %2797 = vmatprep.subr.mxu0 0.0
  %2798 = vmatpush2.msra.mxu0 0.0
  %2799 = vmatprep.mubr.f32.mxu0 0.0
  %v2800 = vand.u32 %v561, 4294901760
  %v2801 = vsub.f32 %v561, %v2800
  %v2802 = vand.u32 %v2801, 4294901760
  %2803 = vmatmul.mubr.f32.gmra.mxu0 %v2802
  %v2804 = vpop.f32.mrf.mxu0
  %v2805 = vadd.f32 %v2705, %v2804
  %v2806 = vpop.f32.mrf.mxu0
  %v2807 = vadd.f32 %v2707, %v2806
  %2808 = vmatprep.mubr.f32.mxu0 0.0
  %v2809 = vand.u32 %v564, 4294901760
  %v2810 = vsub.f32 %v564, %v2809
  %v2811 = vand.u32 %v2810, 4294901760
  %2812 = vmatmul.mubr.f32.gmra.mxu0 %v2811
  %v2813 = vpop.f32.mrf.mxu0
  %v2814 = vadd.f32 %v2713, %v2813
  %v2815 = vpop.f32.mrf.mxu0
  %v2816 = vadd.f32 %v2715, %v2815
  %2817 = vmatprep.mubr.f32.mxu0 0.0
  %v2818 = vand.u32 %v567, 4294901760
  %v2819 = vsub.f32 %v567, %v2818
  %v2820 = vand.u32 %v2819, 4294901760
  %2821 = vmatmul.mubr.f32.gmra.mxu0 %v2820
  %v2822 = vpop.f32.mrf.mxu0
  %v2823 = vadd.f32 %v2721, %v2822
  %v2824 = vpop.f32.mrf.mxu0
  %v2825 = vadd.f32 %v2723, %v2824
  %2826 = vmatprep.mubr.f32.mxu0 0.0
  %v2827 = vand.u32 %v570, 4294901760
  %v2828 = vsub.f32 %v570, %v2827
  %v2829 = vand.u32 %v2828, 4294901760
  %2830 = vmatmul.mubr.f32.gmra.mxu0 %v2829
  %v2831 = vpop.f32.mrf.mxu0
  %v2832 = vadd.f32 %v2729, %v2831
  %v2833 = vpop.f32.mrf.mxu0
  %v2834 = vadd.f32 %v2731, %v2833
  %2835 = vdwg.mxu0
  %2836 = vmatprep.subr.mxu0 0.0
  %2837 = vmatpush1.msra.mxu0 0.0
  %2838 = vmatprep.subr.mxu0 0.0
  %2839 = vmatpush1.msra.mxu0 0.0
  %2840 = vmatprep.subr.mxu0 0.0
  %2841 = vmatpush1.msra.mxu0 0.0
  %2842 = vmatprep.subr.mxu0 0.0
  %2843 = vmatpush1.msra.mxu0 0.0
  %2844 = vmatprep.subr.mxu0 0.0
  %2845 = vmatpush1.msra.mxu0 0.0
  %2846 = vmatprep.subr.mxu0 0.0
  %2847 = vmatpush1.msra.mxu0 0.0
  %2848 = vmatprep.subr.mxu0 0.0
  %2849 = vmatpush1.msra.mxu0 0.0
  %2850 = vmatprep.subr.mxu0 0.0
  %2851 = vmatpush1.msra.mxu0 0.0
  %2852 = vmatprep.subr.mxu0 0.0
  %2853 = vmatpush1.msra.mxu0 0.0
  %2854 = vmatprep.subr.mxu0 0.0
  %2855 = vmatpush1.msra.mxu0 0.0
  %2856 = vmatprep.subr.mxu0 0.0
  %2857 = vmatpush1.msra.mxu0 0.0
  %2858 = vmatprep.subr.mxu0 0.0
  %2859 = vmatpush1.msra.mxu0 0.0
  %2860 = vmatprep.subr.mxu0 0.0
  %2861 = vmatpush1.msra.mxu0 0.0
  %2862 = vmatprep.subr.mxu0 0.0
  %2863 = vmatpush1.msra.mxu0 0.0
  %2864 = vmatprep.subr.mxu0 0.0
  %2865 = vmatpush1.msra.mxu0 0.0
  %v2866 = vand.u32 %v2416, 4294901760
  %v2867 = vsub.f32 %v2416, %v2866
  %v2868 = vand.u32 %v2867, 4294901760
  %2869 = vmatprep.subr.mxu0 %v2868
  %v2870 = vand.u32 %v2413, 4294901760
  %v2871 = vsub.f32 %v2413, %v2870
  %v2872 = vand.u32 %v2871, 4294901760
  %2873 = vmatpush1.msra.mxu0 %v2872
  %2874 = vmatprep.subr.mxu0 0.0
  %2875 = vmatpush2.msra.mxu0 0.0
  %2876 = vmatprep.subr.mxu0 0.0
  %2877 = vmatpush2.msra.mxu0 0.0
  %2878 = vmatprep.subr.mxu0 0.0
  %2879 = vmatpush2.msra.mxu0 0.0
  %2880 = vmatprep.subr.mxu0 0.0
  %2881 = vmatpush2.msra.mxu0 0.0
  %2882 = vmatprep.subr.mxu0 0.0
  %2883 = vmatpush2.msra.mxu0 0.0
  %2884 = vmatprep.subr.mxu0 0.0
  %2885 = vmatpush2.msra.mxu0 0.0
  %2886 = vmatprep.subr.mxu0 0.0
  %2887 = vmatpush2.msra.mxu0 0.0
  %2888 = vmatprep.subr.mxu0 0.0
  %2889 = vmatpush2.msra.mxu0 0.0
  %2890 = vmatprep.subr.mxu0 0.0
  %2891 = vmatpush2.msra.mxu0 0.0
  %2892 = vmatprep.subr.mxu0 0.0
  %2893 = vmatpush2.msra.mxu0 0.0
  %2894 = vmatprep.subr.mxu0 0.0
  %2895 = vmatpush2.msra.mxu0 0.0
  %2896 = vmatprep.subr.mxu0 0.0
  %2897 = vmatpush2.msra.mxu0 0.0
  %2898 = vmatprep.subr.mxu0 0.0
  %2899 = vmatpush2.msra.mxu0 0.0
  %2900 = vmatprep.subr.mxu0 0.0
  %2901 = vmatpush2.msra.mxu0 0.0
  %2902 = vmatprep.subr.mxu0 0.0
  %2903 = vmatpush2.msra.mxu0 0.0
  %2904 = vmatprep.subr.mxu0 0.0
  %2905 = vmatpush2.msra.mxu0 0.0
  %2906 = vmatprep.mubr.f32.mxu0 0.0
  %v2907 = vand.u32 %v561, 4294901760
  %2908 = vmatmul.mubr.f32.gmra.mxu0 %v2907
  %v2909 = vpop.f32.mrf.mxu0
  %v2910 = vadd.f32 %v2805, %v2909
  %v2911 = vpop.f32.mrf.mxu0
  %v2912 = vadd.f32 %v2807, %v2911
  %2913 = vmatprep.mubr.f32.mxu0 0.0
  %v2914 = vand.u32 %v564, 4294901760
  %2915 = vmatmul.mubr.f32.gmra.mxu0 %v2914
  %v2916 = vpop.f32.mrf.mxu0
  %v2917 = vadd.f32 %v2814, %v2916
  %v2918 = vpop.f32.mrf.mxu0
  %v2919 = vadd.f32 %v2816, %v2918
  %2920 = vmatprep.mubr.f32.mxu0 0.0
  %v2921 = vand.u32 %v567, 4294901760
  %2922 = vmatmul.mubr.f32.gmra.mxu0 %v2921
  %v2923 = vpop.f32.mrf.mxu0
  %v2924 = vadd.f32 %v2823, %v2923
  %v2925 = vpop.f32.mrf.mxu0
  %v2926 = vadd.f32 %v2825, %v2925
  %2927 = vmatprep.mubr.f32.mxu0 0.0
  %v2928 = vand.u32 %v570, 4294901760
  %2929 = vmatmul.mubr.f32.gmra.mxu0 %v2928
  %v2930 = vpop.f32.mrf.mxu0
  %v2931 = vadd.f32 %v2832, %v2930
  %v2932 = vpop.f32.mrf.mxu0
  %v2933 = vadd.f32 %v2834, %v2932
  %2934 = vdwg.mxu0
  %2935 = vmatprep.subr.mxu0 0.0
  %2936 = vmatpush1.msra.mxu0 0.0
  %2937 = vmatprep.subr.mxu0 0.0
  %2938 = vmatpush1.msra.mxu0 0.0
  %2939 = vmatprep.subr.mxu0 0.0
  %2940 = vmatpush1.msra.mxu0 0.0
  %2941 = vmatprep.subr.mxu0 0.0
  %2942 = vmatpush1.msra.mxu0 0.0
  %2943 = vmatprep.subr.mxu0 0.0
  %2944 = vmatpush1.msra.mxu0 0.0
  %2945 = vmatprep.subr.mxu0 0.0
  %2946 = vmatpush1.msra.mxu0 0.0
  %2947 = vmatprep.subr.mxu0 0.0
  %2948 = vmatpush1.msra.mxu0 0.0
  %2949 = vmatprep.subr.mxu0 0.0
  %2950 = vmatpush1.msra.mxu0 0.0
  %2951 = vmatprep.subr.mxu0 0.0
  %2952 = vmatpush1.msra.mxu0 0.0
  %2953 = vmatprep.subr.mxu0 0.0
  %2954 = vmatpush1.msra.mxu0 0.0
  %2955 = vmatprep.subr.mxu0 0.0
  %2956 = vmatpush1.msra.mxu0 0.0
  %2957 = vmatprep.subr.mxu0 0.0
  %2958 = vmatpush1.msra.mxu0 0.0
  %2959 = vmatprep.subr.mxu0 0.0
  %2960 = vmatpush1.msra.mxu0 0.0
  %2961 = vmatprep.subr.mxu0 0.0
  %2962 = vmatpush1.msra.mxu0 0.0
  %2963 = vmatprep.subr.mxu0 0.0
  %2964 = vmatpush1.msra.mxu0 0.0
  %v2965 = vand.u32 %v2416, 4294901760
  %2966 = vmatprep.subr.mxu0 %v2965
  %v2967 = vand.u32 %v2413, 4294901760
  %2968 = vmatpush1.msra.mxu0 %v2967
  %2969 = vmatprep.subr.mxu0 0.0
  %2970 = vmatpush2.msra.mxu0 0.0
  %2971 = vmatprep.subr.mxu0 0.0
  %2972 = vmatpush2.msra.mxu0 0.0
  %2973 = vmatprep.subr.mxu0 0.0
  %2974 = vmatpush2.msra.mxu0 0.0
  %2975 = vmatprep.subr.mxu0 0.0
  %2976 = vmatpush2.msra.mxu0 0.0
  %2977 = vmatprep.subr.mxu0 0.0
  %2978 = vmatpush2.msra.mxu0 0.0
  %2979 = vmatprep.subr.mxu0 0.0
  %2980 = vmatpush2.msra.mxu0 0.0
  %2981 = vmatprep.subr.mxu0 0.0
  %2982 = vmatpush2.msra.mxu0 0.0
  %2983 = vmatprep.subr.mxu0 0.0
  %2984 = vmatpush2.msra.mxu0 0.0
  %2985 = vmatprep.subr.mxu0 0.0
  %2986 = vmatpush2.msra.mxu0 0.0
  %2987 = vmatprep.subr.mxu0 0.0
  %2988 = vmatpush2.msra.mxu0 0.0
  %2989 = vmatprep.subr.mxu0 0.0
  %2990 = vmatpush2.msra.mxu0 0.0
  %2991 = vmatprep.subr.mxu0 0.0
  %2992 = vmatpush2.msra.mxu0 0.0
  %2993 = vmatprep.subr.mxu0 0.0
  %2994 = vmatpush2.msra.mxu0 0.0
  %2995 = vmatprep.subr.mxu0 0.0
  %2996 = vmatpush2.msra.mxu0 0.0
  %2997 = vmatprep.subr.mxu0 0.0
  %2998 = vmatpush2.msra.mxu0 0.0
  %2999 = vmatprep.subr.mxu0 0.0
  %3000 = vmatpush2.msra.mxu0 0.0
  %3001 = vmatprep.mubr.f32.mxu0 0.0
  %v3002 = vand.u32 %v561, 4294901760
  %3003 = vmatmul.mubr.f32.gmra.mxu0 %v3002
  %v3004 = vpop.f32.mrf.mxu0
  %v3005 = vadd.f32 %v2910, %v3004
  %v3006 = vpop.f32.mrf.mxu0
  %v3007 = vadd.f32 %v2912, %v3006
  %3008 = vmatprep.mubr.f32.mxu0 0.0
  %v3009 = vand.u32 %v564, 4294901760
  %3010 = vmatmul.mubr.f32.gmra.mxu0 %v3009
  %v3011 = vpop.f32.mrf.mxu0
  %v3012 = vadd.f32 %v2917, %v3011
  %v3013 = vpop.f32.mrf.mxu0
  %v3014 = vadd.f32 %v2919, %v3013
  %3015 = vmatprep.mubr.f32.mxu0 0.0
  %v3016 = vand.u32 %v567, 4294901760
  %3017 = vmatmul.mubr.f32.gmra.mxu0 %v3016
  %v3018 = vpop.f32.mrf.mxu0
  %v3019 = vadd.f32 %v2924, %v3018
  %v3020 = vpop.f32.mrf.mxu0
  %v3021 = vadd.f32 %v2926, %v3020
  %3022 = vmatprep.mubr.f32.mxu0 0.0
  %v3023 = vand.u32 %v570, 4294901760
  %3024 = vmatmul.mubr.f32.gmra.mxu0 %v3023
  %v3025 = vpop.f32.mrf.mxu0
  %v3026 = vadd.f32 %v2931, %v3025
  %v3027 = vpop.f32.mrf.mxu0
  %v3028 = vadd.f32 %v2933, %v3027
  %3029 = vdwg.mxu0
  %v3030 = vmul.f32 %v3005, 0.5
  %v3031 = vmul.f32 %v3007, 0.5
  %v3032 = vmul.f32 %v3012, 0.5
  %v3033 = vmul.f32 %v3014, 0.5
  %v3034 = vmul.f32 %v3019, 0.5
  %v3035 = vmul.f32 %v3021, 0.5
  %v3036 = vmul.f32 %v3026, 0.5
  %v3037 = vmul.f32 %v3028, 0.5
  %v3038 = vtanh.pop %v3030
  %v3039 = vtanh.pop %v3031
  %v3040 = vtanh.pop %v3032
  %v3041 = vtanh.pop %v3033
  %v3042 = vtanh.pop %v3034
  %v3043 = vtanh.pop %v3035
  %v3044 = vtanh.pop %v3036
  %v3045 = vtanh.pop %v3037
  %v3046 = vadd.f32 %v3038, 1.0
  %v3047 = vadd.f32 %v3039, 1.0
  %v3048 = vadd.f32 %v3040, 1.0
  %v3049 = vadd.f32 %v3041, 1.0
  %v3050 = vadd.f32 %v3042, 1.0
  %v3051 = vadd.f32 %v3043, 1.0
  %v3052 = vadd.f32 %v3044, 1.0
  %v3053 = vadd.f32 %v3045, 1.0
  %v3054 = vmul.f32 %v3046, 0.5
  %v3055 = vmul.f32 %v3047, 0.5
  %v3056 = vmul.f32 %v3048, 0.5
  %v3057 = vmul.f32 %v3049, 0.5
  %v3058 = vmul.f32 %v3050, 0.5
  %v3059 = vmul.f32 %v3051, 0.5
  %v3060 = vmul.f32 %v3052, 0.5
  %v3061 = vmul.f32 %v3053, 0.5
  %v3062 = vmul.f32 %v3005, %v3054
  %v3063 = vmul.f32 %v3007, %v3055
  %v3064 = vmul.f32 %v3012, %v3056
  %v3065 = vmul.f32 %v3014, %v3057
  %v3066 = vmul.f32 %v3019, %v3058
  %v3067 = vmul.f32 %v3021, %v3059
  %v3068 = vmul.f32 %v3026, %v3060
  %v3069 = vmul.f32 %v3028, %v3061
  %s3070 = scalar_lea.vmem %s2, 16
  %v3071 = vld [vmem:[%s3070] sm:$0xff]
  %v3072 = vld [vmem:[%s3070 + $0x8] sm:$0x1]
  %s3073 = scalar_lea.vmem %s3, 16
  %v3074 = vld [vmem:[%s3073] sm:$0xff]
  %v3075 = vld [vmem:[%s3073 + $0x8] sm:$0x1]
  %3077 = vset.pattern.permute.xlu0 0
  %3078 = vperm.xlu0 %3077, %v3074
  %v3079 = vpop.permute.xlu0 %3078
  %3082 = vset.pattern.permute.xlu0 0
  %3083 = vperm.xlu0 %3082, %v3075
  %v3084 = vpop.permute.xlu0 %3083
  %v3087 = vsel %vm1245, %v3071, 0
  %v3090 = vsel %vm1245, %v3072, 0
  %3092 = vmatprep.subr.mxu0 0.0
  %3093 = vmatpush1.msra.mxu0 0.0
  %3094 = vmatprep.subr.mxu0 0.0
  %3095 = vmatpush1.msra.mxu0 0.0
  %3096 = vmatprep.subr.mxu0 0.0
  %3097 = vmatpush1.msra.mxu0 0.0
  %3098 = vmatprep.subr.mxu0 0.0
  %3099 = vmatpush1.msra.mxu0 0.0
  %3100 = vmatprep.subr.mxu0 0.0
  %3101 = vmatpush1.msra.mxu0 0.0
  %3102 = vmatprep.subr.mxu0 0.0
  %3103 = vmatpush1.msra.mxu0 0.0
  %3104 = vmatprep.subr.mxu0 0.0
  %3105 = vmatpush1.msra.mxu0 0.0
  %3106 = vmatprep.subr.mxu0 0.0
  %3107 = vmatpush1.msra.mxu0 0.0
  %3108 = vmatprep.subr.mxu0 0.0
  %3109 = vmatpush1.msra.mxu0 0.0
  %3110 = vmatprep.subr.mxu0 0.0
  %3111 = vmatpush1.msra.mxu0 0.0
  %3112 = vmatprep.subr.mxu0 0.0
  %3113 = vmatpush1.msra.mxu0 0.0
  %3114 = vmatprep.subr.mxu0 0.0
  %3115 = vmatpush1.msra.mxu0 0.0
  %v3116 = vand.u32 %v3069, 4294901760
  %3117 = vmatprep.subr.mxu0 %v3116
  %v3118 = vand.u32 %v3068, 4294901760
  %3119 = vmatpush1.msra.mxu0 %v3118
  %v3120 = vand.u32 %v3067, 4294901760
  %3121 = vmatprep.subr.mxu0 %v3120
  %v3122 = vand.u32 %v3066, 4294901760
  %3123 = vmatpush1.msra.mxu0 %v3122
  %v3124 = vand.u32 %v3065, 4294901760
  %3125 = vmatprep.subr.mxu0 %v3124
  %v3126 = vand.u32 %v3064, 4294901760
  %3127 = vmatpush1.msra.mxu0 %v3126
  %v3128 = vand.u32 %v3063, 4294901760
  %3129 = vmatprep.subr.mxu0 %v3128
  %v3130 = vand.u32 %v3062, 4294901760
  %3131 = vmatpush1.msra.mxu0 %v3130
  %3132 = vmatprep.subr.mxu0 0.0
  %3133 = vmatpush2.msra.mxu0 0.0
  %3134 = vmatprep.subr.mxu0 0.0
  %3135 = vmatpush2.msra.mxu0 0.0
  %3136 = vmatprep.subr.mxu0 0.0
  %3137 = vmatpush2.msra.mxu0 0.0
  %3138 = vmatprep.subr.mxu0 0.0
  %3139 = vmatpush2.msra.mxu0 0.0
  %3140 = vmatprep.subr.mxu0 0.0
  %3141 = vmatpush2.msra.mxu0 0.0
  %3142 = vmatprep.subr.mxu0 0.0
  %3143 = vmatpush2.msra.mxu0 0.0
  %3144 = vmatprep.subr.mxu0 0.0
  %3145 = vmatpush2.msra.mxu0 0.0
  %3146 = vmatprep.subr.mxu0 0.0
  %3147 = vmatpush2.msra.mxu0 0.0
  %3148 = vmatprep.subr.mxu0 0.0
  %3149 = vmatpush2.msra.mxu0 0.0
  %3150 = vmatprep.subr.mxu0 0.0
  %3151 = vmatpush2.msra.mxu0 0.0
  %3152 = vmatprep.subr.mxu0 0.0
  %3153 = vmatpush2.msra.mxu0 0.0
  %3154 = vmatprep.subr.mxu0 0.0
  %3155 = vmatpush2.msra.mxu0 0.0
  %3156 = vmatprep.subr.mxu0 0.0
  %3157 = vmatpush2.msra.mxu0 0.0
  %3158 = vmatprep.subr.mxu0 0.0
  %3159 = vmatpush2.msra.mxu0 0.0
  %3160 = vmatprep.subr.mxu0 0.0
  %3161 = vmatpush2.msra.mxu0 0.0
  %3162 = vmatprep.subr.mxu0 0.0
  %3163 = vmatpush2.msra.mxu0 0.0
  %3164 = vmatprep.mubr.f32.mxu0 0.0
  %v3165 = vand.u32 %v3087, 4294901760
  %v3166 = vsub.f32 %v3087, %v3165
  %v3167 = vand.u32 %v3166, 4294901760
  %v3168 = vsub.f32 %v3166, %v3167
  %v3169 = vand.u32 %v3168, 4294901760
  %3170 = vmatmul.mubr.f32.gmra.mxu0 %v3169
  %v3171 = vpop.f32.mrf.mxu0
  %v3172 = vadd.f32 %v3079, %v3171
  %v3173 = vpop.f32.mrf.mxu0
  %v3174 = vadd.f32 %v3079, %v3173
  %3175 = vmatprep.mubr.f32.mxu0 0.0
  %v3176 = vand.u32 %v3090, 4294901760
  %v3177 = vsub.f32 %v3090, %v3176
  %v3178 = vand.u32 %v3177, 4294901760
  %v3179 = vsub.f32 %v3177, %v3178
  %v3180 = vand.u32 %v3179, 4294901760
  %3181 = vmatmul.mubr.f32.gmra.mxu0 %v3180
  %v3182 = vpop.f32.mrf.mxu0
  %v3183 = vadd.f32 %v3084, %v3182
  %v3184 = vpop.f32.mrf.mxu0
  %v3185 = vadd.f32 %v3084, %v3184
  %3186 = vdwg.mxu0
  %3187 = vmatprep.subr.mxu0 0.0
  %3188 = vmatpush1.msra.mxu0 0.0
  %3189 = vmatprep.subr.mxu0 0.0
  %3190 = vmatpush1.msra.mxu0 0.0
  %3191 = vmatprep.subr.mxu0 0.0
  %3192 = vmatpush1.msra.mxu0 0.0
  %3193 = vmatprep.subr.mxu0 0.0
  %3194 = vmatpush1.msra.mxu0 0.0
  %3195 = vmatprep.subr.mxu0 0.0
  %3196 = vmatpush1.msra.mxu0 0.0
  %3197 = vmatprep.subr.mxu0 0.0
  %3198 = vmatpush1.msra.mxu0 0.0
  %3199 = vmatprep.subr.mxu0 0.0
  %3200 = vmatpush1.msra.mxu0 0.0
  %3201 = vmatprep.subr.mxu0 0.0
  %3202 = vmatpush1.msra.mxu0 0.0
  %3203 = vmatprep.subr.mxu0 0.0
  %3204 = vmatpush1.msra.mxu0 0.0
  %3205 = vmatprep.subr.mxu0 0.0
  %3206 = vmatpush1.msra.mxu0 0.0
  %3207 = vmatprep.subr.mxu0 0.0
  %3208 = vmatpush1.msra.mxu0 0.0
  %3209 = vmatprep.subr.mxu0 0.0
  %3210 = vmatpush1.msra.mxu0 0.0
  %v3211 = vand.u32 %v3069, 4294901760
  %v3212 = vsub.f32 %v3069, %v3211
  %v3213 = vand.u32 %v3212, 4294901760
  %v3214 = vsub.f32 %v3212, %v3213
  %v3215 = vand.u32 %v3214, 4294901760
  %3216 = vmatprep.subr.mxu0 %v3215
  %v3217 = vand.u32 %v3068, 4294901760
  %v3218 = vsub.f32 %v3068, %v3217
  %v3219 = vand.u32 %v3218, 4294901760
  %v3220 = vsub.f32 %v3218, %v3219
  %v3221 = vand.u32 %v3220, 4294901760
  %3222 = vmatpush1.msra.mxu0 %v3221
  %v3223 = vand.u32 %v3067, 4294901760
  %v3224 = vsub.f32 %v3067, %v3223
  %v3225 = vand.u32 %v3224, 4294901760
  %v3226 = vsub.f32 %v3224, %v3225
  %v3227 = vand.u32 %v3226, 4294901760
  %3228 = vmatprep.subr.mxu0 %v3227
  %v3229 = vand.u32 %v3066, 4294901760
  %v3230 = vsub.f32 %v3066, %v3229
  %v3231 = vand.u32 %v3230, 4294901760
  %v3232 = vsub.f32 %v3230, %v3231
  %v3233 = vand.u32 %v3232, 4294901760
  %3234 = vmatpush1.msra.mxu0 %v3233
  %v3235 = vand.u32 %v3065, 4294901760
  %v3236 = vsub.f32 %v3065, %v3235
  %v3237 = vand.u32 %v3236, 4294901760
  %v3238 = vsub.f32 %v3236, %v3237
  %v3239 = vand.u32 %v3238, 4294901760
  %3240 = vmatprep.subr.mxu0 %v3239
  %v3241 = vand.u32 %v3064, 4294901760
  %v3242 = vsub.f32 %v3064, %v3241
  %v3243 = vand.u32 %v3242, 4294901760
  %v3244 = vsub.f32 %v3242, %v3243
  %v3245 = vand.u32 %v3244, 4294901760
  %3246 = vmatpush1.msra.mxu0 %v3245
  %v3247 = vand.u32 %v3063, 4294901760
  %v3248 = vsub.f32 %v3063, %v3247
  %v3249 = vand.u32 %v3248, 4294901760
  %v3250 = vsub.f32 %v3248, %v3249
  %v3251 = vand.u32 %v3250, 4294901760
  %3252 = vmatprep.subr.mxu0 %v3251
  %v3253 = vand.u32 %v3062, 4294901760
  %v3254 = vsub.f32 %v3062, %v3253
  %v3255 = vand.u32 %v3254, 4294901760
  %v3256 = vsub.f32 %v3254, %v3255
  %v3257 = vand.u32 %v3256, 4294901760
  %3258 = vmatpush1.msra.mxu0 %v3257
  %3259 = vmatprep.subr.mxu0 0.0
  %3260 = vmatpush2.msra.mxu0 0.0
  %3261 = vmatprep.subr.mxu0 0.0
  %3262 = vmatpush2.msra.mxu0 0.0
  %3263 = vmatprep.subr.mxu0 0.0
  %3264 = vmatpush2.msra.mxu0 0.0
  %3265 = vmatprep.subr.mxu0 0.0
  %3266 = vmatpush2.msra.mxu0 0.0
  %3267 = vmatprep.subr.mxu0 0.0
  %3268 = vmatpush2.msra.mxu0 0.0
  %3269 = vmatprep.subr.mxu0 0.0
  %3270 = vmatpush2.msra.mxu0 0.0
  %3271 = vmatprep.subr.mxu0 0.0
  %3272 = vmatpush2.msra.mxu0 0.0
  %3273 = vmatprep.subr.mxu0 0.0
  %3274 = vmatpush2.msra.mxu0 0.0
  %3275 = vmatprep.subr.mxu0 0.0
  %3276 = vmatpush2.msra.mxu0 0.0
  %3277 = vmatprep.subr.mxu0 0.0
  %3278 = vmatpush2.msra.mxu0 0.0
  %3279 = vmatprep.subr.mxu0 0.0
  %3280 = vmatpush2.msra.mxu0 0.0
  %3281 = vmatprep.subr.mxu0 0.0
  %3282 = vmatpush2.msra.mxu0 0.0
  %3283 = vmatprep.subr.mxu0 0.0
  %3284 = vmatpush2.msra.mxu0 0.0
  %3285 = vmatprep.subr.mxu0 0.0
  %3286 = vmatpush2.msra.mxu0 0.0
  %3287 = vmatprep.subr.mxu0 0.0
  %3288 = vmatpush2.msra.mxu0 0.0
  %3289 = vmatprep.subr.mxu0 0.0
  %3290 = vmatpush2.msra.mxu0 0.0
  %3291 = vmatprep.mubr.f32.mxu0 0.0
  %v3292 = vand.u32 %v3087, 4294901760
  %3293 = vmatmul.mubr.f32.gmra.mxu0 %v3292
  %v3294 = vpop.f32.mrf.mxu0
  %v3295 = vadd.f32 %v3172, %v3294
  %v3296 = vpop.f32.mrf.mxu0
  %v3297 = vadd.f32 %v3174, %v3296
  %3298 = vmatprep.mubr.f32.mxu0 0.0
  %v3299 = vand.u32 %v3090, 4294901760
  %3300 = vmatmul.mubr.f32.gmra.mxu0 %v3299
  %v3301 = vpop.f32.mrf.mxu0
  %v3302 = vadd.f32 %v3183, %v3301
  %v3303 = vpop.f32.mrf.mxu0
  %v3304 = vadd.f32 %v3185, %v3303
  %3305 = vdwg.mxu0
  %3306 = vmatprep.subr.mxu0 0.0
  %3307 = vmatpush1.msra.mxu0 0.0
  %3308 = vmatprep.subr.mxu0 0.0
  %3309 = vmatpush1.msra.mxu0 0.0
  %3310 = vmatprep.subr.mxu0 0.0
  %3311 = vmatpush1.msra.mxu0 0.0
  %3312 = vmatprep.subr.mxu0 0.0
  %3313 = vmatpush1.msra.mxu0 0.0
  %3314 = vmatprep.subr.mxu0 0.0
  %3315 = vmatpush1.msra.mxu0 0.0
  %3316 = vmatprep.subr.mxu0 0.0
  %3317 = vmatpush1.msra.mxu0 0.0
  %3318 = vmatprep.subr.mxu0 0.0
  %3319 = vmatpush1.msra.mxu0 0.0
  %3320 = vmatprep.subr.mxu0 0.0
  %3321 = vmatpush1.msra.mxu0 0.0
  %3322 = vmatprep.subr.mxu0 0.0
  %3323 = vmatpush1.msra.mxu0 0.0
  %3324 = vmatprep.subr.mxu0 0.0
  %3325 = vmatpush1.msra.mxu0 0.0
  %3326 = vmatprep.subr.mxu0 0.0
  %3327 = vmatpush1.msra.mxu0 0.0
  %3328 = vmatprep.subr.mxu0 0.0
  %3329 = vmatpush1.msra.mxu0 0.0
  %v3330 = vand.u32 %v3069, 4294901760
  %v3331 = vsub.f32 %v3069, %v3330
  %3332 = vmatprep.subr.mxu0 %v3331
  %v3333 = vand.u32 %v3068, 4294901760
  %v3334 = vsub.f32 %v3068, %v3333
  %3335 = vmatpush1.msra.mxu0 %v3334
  %v3336 = vand.u32 %v3067, 4294901760
  %v3337 = vsub.f32 %v3067, %v3336
  %3338 = vmatprep.subr.mxu0 %v3337
  %v3339 = vand.u32 %v3066, 4294901760
  %v3340 = vsub.f32 %v3066, %v3339
  %3341 = vmatpush1.msra.mxu0 %v3340
  %v3342 = vand.u32 %v3065, 4294901760
  %v3343 = vsub.f32 %v3065, %v3342
  %3344 = vmatprep.subr.mxu0 %v3343
  %v3345 = vand.u32 %v3064, 4294901760
  %v3346 = vsub.f32 %v3064, %v3345
  %3347 = vmatpush1.msra.mxu0 %v3346
  %v3348 = vand.u32 %v3063, 4294901760
  %v3349 = vsub.f32 %v3063, %v3348
  %3350 = vmatprep.subr.mxu0 %v3349
  %v3351 = vand.u32 %v3062, 4294901760
  %v3352 = vsub.f32 %v3062, %v3351
  %3353 = vmatpush1.msra.mxu0 %v3352
  %3354 = vmatprep.subr.mxu0 0.0
  %3355 = vmatpush2.msra.mxu0 0.0
  %3356 = vmatprep.subr.mxu0 0.0
  %3357 = vmatpush2.msra.mxu0 0.0
  %3358 = vmatprep.subr.mxu0 0.0
  %3359 = vmatpush2.msra.mxu0 0.0
  %3360 = vmatprep.subr.mxu0 0.0
  %3361 = vmatpush2.msra.mxu0 0.0
  %3362 = vmatprep.subr.mxu0 0.0
  %3363 = vmatpush2.msra.mxu0 0.0
  %3364 = vmatprep.subr.mxu0 0.0
  %3365 = vmatpush2.msra.mxu0 0.0
  %3366 = vmatprep.subr.mxu0 0.0
  %3367 = vmatpush2.msra.mxu0 0.0
  %3368 = vmatprep.subr.mxu0 0.0
  %3369 = vmatpush2.msra.mxu0 0.0
  %3370 = vmatprep.subr.mxu0 0.0
  %3371 = vmatpush2.msra.mxu0 0.0
  %3372 = vmatprep.subr.mxu0 0.0
  %3373 = vmatpush2.msra.mxu0 0.0
  %3374 = vmatprep.subr.mxu0 0.0
  %3375 = vmatpush2.msra.mxu0 0.0
  %3376 = vmatprep.subr.mxu0 0.0
  %3377 = vmatpush2.msra.mxu0 0.0
  %3378 = vmatprep.subr.mxu0 0.0
  %3379 = vmatpush2.msra.mxu0 0.0
  %3380 = vmatprep.subr.mxu0 0.0
  %3381 = vmatpush2.msra.mxu0 0.0
  %3382 = vmatprep.subr.mxu0 0.0
  %3383 = vmatpush2.msra.mxu0 0.0
  %3384 = vmatprep.subr.mxu0 0.0
  %3385 = vmatpush2.msra.mxu0 0.0
  %3386 = vmatprep.mubr.f32.mxu0 0.0
  %v3387 = vand.u32 %v3087, 4294901760
  %v3388 = vsub.f32 %v3087, %v3387
  %3389 = vmatmul.mubr.f32.gmra.mxu0 %v3388
  %v3390 = vpop.f32.mrf.mxu0
  %v3391 = vadd.f32 %v3295, %v3390
  %v3392 = vpop.f32.mrf.mxu0
  %v3393 = vadd.f32 %v3297, %v3392
  %3394 = vmatprep.mubr.f32.mxu0 0.0
  %v3395 = vand.u32 %v3090, 4294901760
  %v3396 = vsub.f32 %v3090, %v3395
  %3397 = vmatmul.mubr.f32.gmra.mxu0 %v3396
  %v3398 = vpop.f32.mrf.mxu0
  %v3399 = vadd.f32 %v3302, %v3398
  %v3400 = vpop.f32.mrf.mxu0
  %v3401 = vadd.f32 %v3304, %v3400
  %3402 = vdwg.mxu0
  %3403 = vmatprep.subr.mxu0 0.0
  %3404 = vmatpush1.msra.mxu0 0.0
  %3405 = vmatprep.subr.mxu0 0.0
  %3406 = vmatpush1.msra.mxu0 0.0
  %3407 = vmatprep.subr.mxu0 0.0
  %3408 = vmatpush1.msra.mxu0 0.0
  %3409 = vmatprep.subr.mxu0 0.0
  %3410 = vmatpush1.msra.mxu0 0.0
  %3411 = vmatprep.subr.mxu0 0.0
  %3412 = vmatpush1.msra.mxu0 0.0
  %3413 = vmatprep.subr.mxu0 0.0
  %3414 = vmatpush1.msra.mxu0 0.0
  %3415 = vmatprep.subr.mxu0 0.0
  %3416 = vmatpush1.msra.mxu0 0.0
  %3417 = vmatprep.subr.mxu0 0.0
  %3418 = vmatpush1.msra.mxu0 0.0
  %3419 = vmatprep.subr.mxu0 0.0
  %3420 = vmatpush1.msra.mxu0 0.0
  %3421 = vmatprep.subr.mxu0 0.0
  %3422 = vmatpush1.msra.mxu0 0.0
  %3423 = vmatprep.subr.mxu0 0.0
  %3424 = vmatpush1.msra.mxu0 0.0
  %3425 = vmatprep.subr.mxu0 0.0
  %3426 = vmatpush1.msra.mxu0 0.0
  %v3427 = vand.u32 %v3069, 4294901760
  %3428 = vmatprep.subr.mxu0 %v3427
  %v3429 = vand.u32 %v3068, 4294901760
  %3430 = vmatpush1.msra.mxu0 %v3429
  %v3431 = vand.u32 %v3067, 4294901760
  %3432 = vmatprep.subr.mxu0 %v3431
  %v3433 = vand.u32 %v3066, 4294901760
  %3434 = vmatpush1.msra.mxu0 %v3433
  %v3435 = vand.u32 %v3065, 4294901760
  %3436 = vmatprep.subr.mxu0 %v3435
  %v3437 = vand.u32 %v3064, 4294901760
  %3438 = vmatpush1.msra.mxu0 %v3437
  %v3439 = vand.u32 %v3063, 4294901760
  %3440 = vmatprep.subr.mxu0 %v3439
  %v3441 = vand.u32 %v3062, 4294901760
  %3442 = vmatpush1.msra.mxu0 %v3441
  %3443 = vmatprep.subr.mxu0 0.0
  %3444 = vmatpush2.msra.mxu0 0.0
  %3445 = vmatprep.subr.mxu0 0.0
  %3446 = vmatpush2.msra.mxu0 0.0
  %3447 = vmatprep.subr.mxu0 0.0
  %3448 = vmatpush2.msra.mxu0 0.0
  %3449 = vmatprep.subr.mxu0 0.0
  %3450 = vmatpush2.msra.mxu0 0.0
  %3451 = vmatprep.subr.mxu0 0.0
  %3452 = vmatpush2.msra.mxu0 0.0
  %3453 = vmatprep.subr.mxu0 0.0
  %3454 = vmatpush2.msra.mxu0 0.0
  %3455 = vmatprep.subr.mxu0 0.0
  %3456 = vmatpush2.msra.mxu0 0.0
  %3457 = vmatprep.subr.mxu0 0.0
  %3458 = vmatpush2.msra.mxu0 0.0
  %3459 = vmatprep.subr.mxu0 0.0
  %3460 = vmatpush2.msra.mxu0 0.0
  %3461 = vmatprep.subr.mxu0 0.0
  %3462 = vmatpush2.msra.mxu0 0.0
  %3463 = vmatprep.subr.mxu0 0.0
  %3464 = vmatpush2.msra.mxu0 0.0
  %3465 = vmatprep.subr.mxu0 0.0
  %3466 = vmatpush2.msra.mxu0 0.0
  %3467 = vmatprep.subr.mxu0 0.0
  %3468 = vmatpush2.msra.mxu0 0.0
  %3469 = vmatprep.subr.mxu0 0.0
  %3470 = vmatpush2.msra.mxu0 0.0
  %3471 = vmatprep.subr.mxu0 0.0
  %3472 = vmatpush2.msra.mxu0 0.0
  %3473 = vmatprep.subr.mxu0 0.0
  %3474 = vmatpush2.msra.mxu0 0.0
  %3475 = vmatprep.mubr.f32.mxu0 0.0
  %v3476 = vand.u32 %v3087, 4294901760
  %v3477 = vsub.f32 %v3087, %v3476
  %v3478 = vand.u32 %v3477, 4294901760
  %3479 = vmatmul.mubr.f32.gmra.mxu0 %v3478
  %v3480 = vpop.f32.mrf.mxu0
  %v3481 = vadd.f32 %v3391, %v3480
  %v3482 = vpop.f32.mrf.mxu0
  %v3483 = vadd.f32 %v3393, %v3482
  %3484 = vmatprep.mubr.f32.mxu0 0.0
  %v3485 = vand.u32 %v3090, 4294901760
  %v3486 = vsub.f32 %v3090, %v3485
  %v3487 = vand.u32 %v3486, 4294901760
  %3488 = vmatmul.mubr.f32.gmra.mxu0 %v3487
  %v3489 = vpop.f32.mrf.mxu0
  %v3490 = vadd.f32 %v3399, %v3489
  %v3491 = vpop.f32.mrf.mxu0
  %v3492 = vadd.f32 %v3401, %v3491
  %3493 = vdwg.mxu0
  %3494 = vmatprep.subr.mxu0 0.0
  %3495 = vmatpush1.msra.mxu0 0.0
  %3496 = vmatprep.subr.mxu0 0.0
  %3497 = vmatpush1.msra.mxu0 0.0
  %3498 = vmatprep.subr.mxu0 0.0
  %3499 = vmatpush1.msra.mxu0 0.0
  %3500 = vmatprep.subr.mxu0 0.0
  %3501 = vmatpush1.msra.mxu0 0.0
  %3502 = vmatprep.subr.mxu0 0.0
  %3503 = vmatpush1.msra.mxu0 0.0
  %3504 = vmatprep.subr.mxu0 0.0
  %3505 = vmatpush1.msra.mxu0 0.0
  %3506 = vmatprep.subr.mxu0 0.0
  %3507 = vmatpush1.msra.mxu0 0.0
  %3508 = vmatprep.subr.mxu0 0.0
  %3509 = vmatpush1.msra.mxu0 0.0
  %3510 = vmatprep.subr.mxu0 0.0
  %3511 = vmatpush1.msra.mxu0 0.0
  %3512 = vmatprep.subr.mxu0 0.0
  %3513 = vmatpush1.msra.mxu0 0.0
  %3514 = vmatprep.subr.mxu0 0.0
  %3515 = vmatpush1.msra.mxu0 0.0
  %3516 = vmatprep.subr.mxu0 0.0
  %3517 = vmatpush1.msra.mxu0 0.0
  %v3518 = vand.u32 %v3069, 4294901760
  %v3519 = vsub.f32 %v3069, %v3518
  %v3520 = vand.u32 %v3519, 4294901760
  %3521 = vmatprep.subr.mxu0 %v3520
  %v3522 = vand.u32 %v3068, 4294901760
  %v3523 = vsub.f32 %v3068, %v3522
  %v3524 = vand.u32 %v3523, 4294901760
  %3525 = vmatpush1.msra.mxu0 %v3524
  %v3526 = vand.u32 %v3067, 4294901760
  %v3527 = vsub.f32 %v3067, %v3526
  %v3528 = vand.u32 %v3527, 4294901760
  %3529 = vmatprep.subr.mxu0 %v3528
  %v3530 = vand.u32 %v3066, 4294901760
  %v3531 = vsub.f32 %v3066, %v3530
  %v3532 = vand.u32 %v3531, 4294901760
  %3533 = vmatpush1.msra.mxu0 %v3532
  %v3534 = vand.u32 %v3065, 4294901760
  %v3535 = vsub.f32 %v3065, %v3534
  %v3536 = vand.u32 %v3535, 4294901760
  %3537 = vmatprep.subr.mxu0 %v3536
  %v3538 = vand.u32 %v3064, 4294901760
  %v3539 = vsub.f32 %v3064, %v3538
  %v3540 = vand.u32 %v3539, 4294901760
  %3541 = vmatpush1.msra.mxu0 %v3540
  %v3542 = vand.u32 %v3063, 4294901760
  %v3543 = vsub.f32 %v3063, %v3542
  %v3544 = vand.u32 %v3543, 4294901760
  %3545 = vmatprep.subr.mxu0 %v3544
  %v3546 = vand.u32 %v3062, 4294901760
  %v3547 = vsub.f32 %v3062, %v3546
  %v3548 = vand.u32 %v3547, 4294901760
  %3549 = vmatpush1.msra.mxu0 %v3548
  %3550 = vmatprep.subr.mxu0 0.0
  %3551 = vmatpush2.msra.mxu0 0.0
  %3552 = vmatprep.subr.mxu0 0.0
  %3553 = vmatpush2.msra.mxu0 0.0
  %3554 = vmatprep.subr.mxu0 0.0
  %3555 = vmatpush2.msra.mxu0 0.0
  %3556 = vmatprep.subr.mxu0 0.0
  %3557 = vmatpush2.msra.mxu0 0.0
  %3558 = vmatprep.subr.mxu0 0.0
  %3559 = vmatpush2.msra.mxu0 0.0
  %3560 = vmatprep.subr.mxu0 0.0
  %3561 = vmatpush2.msra.mxu0 0.0
  %3562 = vmatprep.subr.mxu0 0.0
  %3563 = vmatpush2.msra.mxu0 0.0
  %3564 = vmatprep.subr.mxu0 0.0
  %3565 = vmatpush2.msra.mxu0 0.0
  %3566 = vmatprep.subr.mxu0 0.0
  %3567 = vmatpush2.msra.mxu0 0.0
  %3568 = vmatprep.subr.mxu0 0.0
  %3569 = vmatpush2.msra.mxu0 0.0
  %3570 = vmatprep.subr.mxu0 0.0
  %3571 = vmatpush2.msra.mxu0 0.0
  %3572 = vmatprep.subr.mxu0 0.0
  %3573 = vmatpush2.msra.mxu0 0.0
  %3574 = vmatprep.subr.mxu0 0.0
  %3575 = vmatpush2.msra.mxu0 0.0
  %3576 = vmatprep.subr.mxu0 0.0
  %3577 = vmatpush2.msra.mxu0 0.0
  %3578 = vmatprep.subr.mxu0 0.0
  %3579 = vmatpush2.msra.mxu0 0.0
  %3580 = vmatprep.subr.mxu0 0.0
  %3581 = vmatpush2.msra.mxu0 0.0
  %3582 = vmatprep.mubr.f32.mxu0 0.0
  %v3583 = vand.u32 %v3087, 4294901760
  %3584 = vmatmul.mubr.f32.gmra.mxu0 %v3583
  %v3585 = vpop.f32.mrf.mxu0
  %v3586 = vadd.f32 %v3481, %v3585
  %v3587 = vpop.f32.mrf.mxu0
  %v3588 = vadd.f32 %v3483, %v3587
  %3589 = vmatprep.mubr.f32.mxu0 0.0
  %v3590 = vand.u32 %v3090, 4294901760
  %3591 = vmatmul.mubr.f32.gmra.mxu0 %v3590
  %v3592 = vpop.f32.mrf.mxu0
  %v3593 = vadd.f32 %v3490, %v3592
  %v3594 = vpop.f32.mrf.mxu0
  %v3595 = vadd.f32 %v3492, %v3594
  %3596 = vdwg.mxu0
  %3597 = vmatprep.subr.mxu0 0.0
  %3598 = vmatpush1.msra.mxu0 0.0
  %3599 = vmatprep.subr.mxu0 0.0
  %3600 = vmatpush1.msra.mxu0 0.0
  %3601 = vmatprep.subr.mxu0 0.0
  %3602 = vmatpush1.msra.mxu0 0.0
  %3603 = vmatprep.subr.mxu0 0.0
  %3604 = vmatpush1.msra.mxu0 0.0
  %3605 = vmatprep.subr.mxu0 0.0
  %3606 = vmatpush1.msra.mxu0 0.0
  %3607 = vmatprep.subr.mxu0 0.0
  %3608 = vmatpush1.msra.mxu0 0.0
  %3609 = vmatprep.subr.mxu0 0.0
  %3610 = vmatpush1.msra.mxu0 0.0
  %3611 = vmatprep.subr.mxu0 0.0
  %3612 = vmatpush1.msra.mxu0 0.0
  %3613 = vmatprep.subr.mxu0 0.0
  %3614 = vmatpush1.msra.mxu0 0.0
  %3615 = vmatprep.subr.mxu0 0.0
  %3616 = vmatpush1.msra.mxu0 0.0
  %3617 = vmatprep.subr.mxu0 0.0
  %3618 = vmatpush1.msra.mxu0 0.0
  %3619 = vmatprep.subr.mxu0 0.0
  %3620 = vmatpush1.msra.mxu0 0.0
  %v3621 = vand.u32 %v3069, 4294901760
  %3622 = vmatprep.subr.mxu0 %v3621
  %v3623 = vand.u32 %v3068, 4294901760
  %3624 = vmatpush1.msra.mxu0 %v3623
  %v3625 = vand.u32 %v3067, 4294901760
  %3626 = vmatprep.subr.mxu0 %v3625
  %v3627 = vand.u32 %v3066, 4294901760
  %3628 = vmatpush1.msra.mxu0 %v3627
  %v3629 = vand.u32 %v3065, 4294901760
  %3630 = vmatprep.subr.mxu0 %v3629
  %v3631 = vand.u32 %v3064, 4294901760
  %3632 = vmatpush1.msra.mxu0 %v3631
  %v3633 = vand.u32 %v3063, 4294901760
  %3634 = vmatprep.subr.mxu0 %v3633
  %v3635 = vand.u32 %v3062, 4294901760
  %3636 = vmatpush1.msra.mxu0 %v3635
  %3637 = vmatprep.subr.mxu0 0.0
  %3638 = vmatpush2.msra.mxu0 0.0
  %3639 = vmatprep.subr.mxu0 0.0
  %3640 = vmatpush2.msra.mxu0 0.0
  %3641 = vmatprep.subr.mxu0 0.0
  %3642 = vmatpush2.msra.mxu0 0.0
  %3643 = vmatprep.subr.mxu0 0.0
  %3644 = vmatpush2.msra.mxu0 0.0
  %3645 = vmatprep.subr.mxu0 0.0
  %3646 = vmatpush2.msra.mxu0 0.0
  %3647 = vmatprep.subr.mxu0 0.0
  %3648 = vmatpush2.msra.mxu0 0.0
  %3649 = vmatprep.subr.mxu0 0.0
  %3650 = vmatpush2.msra.mxu0 0.0
  %3651 = vmatprep.subr.mxu0 0.0
  %3652 = vmatpush2.msra.mxu0 0.0
  %3653 = vmatprep.subr.mxu0 0.0
  %3654 = vmatpush2.msra.mxu0 0.0
  %3655 = vmatprep.subr.mxu0 0.0
  %3656 = vmatpush2.msra.mxu0 0.0
  %3657 = vmatprep.subr.mxu0 0.0
  %3658 = vmatpush2.msra.mxu0 0.0
  %3659 = vmatprep.subr.mxu0 0.0
  %3660 = vmatpush2.msra.mxu0 0.0
  %3661 = vmatprep.subr.mxu0 0.0
  %3662 = vmatpush2.msra.mxu0 0.0
  %3663 = vmatprep.subr.mxu0 0.0
  %3664 = vmatpush2.msra.mxu0 0.0
  %3665 = vmatprep.subr.mxu0 0.0
  %3666 = vmatpush2.msra.mxu0 0.0
  %3667 = vmatprep.subr.mxu0 0.0
  %3668 = vmatpush2.msra.mxu0 0.0
  %3669 = vmatprep.mubr.f32.mxu0 0.0
  %v3670 = vand.u32 %v3087, 4294901760
  %3671 = vmatmul.mubr.f32.gmra.mxu0 %v3670
  %v3672 = vpop.f32.mrf.mxu0
  %v3673 = vadd.f32 %v3586, %v3672
  %v3674 = vpop.f32.mrf.mxu0
  %v3675 = vadd.f32 %v3588, %v3674
  %3676 = vmatprep.mubr.f32.mxu0 0.0
  %v3677 = vand.u32 %v3090, 4294901760
  %3678 = vmatmul.mubr.f32.gmra.mxu0 %v3677
  %v3679 = vpop.f32.mrf.mxu0
  %v3680 = vadd.f32 %v3593, %v3679
  %v3681 = vpop.f32.mrf.mxu0
  %v3682 = vadd.f32 %v3595, %v3681
  %3683 = vdwg.mxu0
  %v3684 = vmul.f32 %v3673, %v1890
  %v3685 = vmul.f32 %v3675, %v1891
  %v3686 = vmul.f32 %v3680, %v1892
  %v3687 = vmul.f32 %v3682, %v1893
  %v3688 = vsel %vm49, %v3686, 0.0
  %v3689 = vadd.f32 %v3684, %v3688
  %v3690 = vrot.slane %v3689, 4
  %v3691 = vadd.f32 %v3689, %v3690
  %v3692 = vrot.slane %v3691, 2
  %v3693 = vadd.f32 %v3691, %v3692
  %v3694 = vrot.slane %v3693, 1
  %v3695 = vadd.f32 %v3693, %v3694
  %v3696 = vsel %vm49, %v3687, 0.0
  %v3697 = vadd.f32 %v3685, %v3696
  %v3698 = vrot.slane %v3697, 4
  %v3699 = vadd.f32 %v3697, %v3698
  %v3700 = vrot.slane %v3699, 2
  %v3701 = vadd.f32 %v3699, %v3700
  %v3702 = vrot.slane %v3701, 1
  %v3703 = vadd.f32 %v3701, %v3702
  %v3704 = vmul.f32 %v3695, %v1890
  %v3705 = vmul.f32 %v3703, %v1891
  %v3708 = vcombine.low %v3704, %v3705
  %v3710 = vunpack.c.l.s4 1966171168
  %v3711 = vunpack.c.0.s8 %v3710
  %v3712 = vlaneseq
  %v3713 = vshrl.u32 %v3712, 7
  %v3714 = vsub.s32 %v3711, %v3713
  %v3715 = vrot.slane %v3708, %v3714
  %v3717 = vunpack.c.l.s4 1966171168
  %v3718 = vunpack.c.0.s8 %v3717
  %v3719 = vlaneseq
  %v3720 = vshrl.u32 %v3719, 7
  %v3721 = vsub.s32 %v3718, %v3720
  %v3722 = vrot.slane %v3715, %v3721
  %s3724 = scalar_lea.vmem %s6, 2
  %3725 = vst.msk [vmem:[%s3724] sm:$0x3] %vm1887, %v3722
  // Predicated region
  $region26: #{conv_spin_rate_forward.1} parent=0 // pred_check
    _
  $region27: #{conv_spin_rate_forward.1} parent=0 // pred_check_branch
    %3727 = sbr.rel (0) target = $region29
  $region28: #{conv_spin_rate_forward.1} parent=0 // pred_region
    _
  $region29: #{conv_spin_rate_forward.1} parent=0 // pred_fallthru
    _
  // Predicated region
  $region30: #{conv_spin_rate_forward.1} parent=0 // pred_check
    _
  $region31: #{conv_spin_rate_forward.1} parent=0 // pred_check_branch
    %3729 = sbr.rel (0) target = $region33
  $region32: #{conv_spin_rate_forward.1} parent=0 // pred_region
    _
  $region33: #{conv_spin_rate_forward.1} parent=0 // pred_fallthru
    _

</llo_original>
